<compile_context>
chip_gen: v7x
topology: tpu7x:2x2x1
jax: 0.10.0
libtpu: 0.0.40
codegen_flags: <defaults>
</compile_context>

<pallas_src>
import math
import jax
import jax.numpy as jnp
from jax.experimental import pallas as pl
from jax.experimental.pallas import tpu as pltpu

# ---------------- constants ----------------
D_IN = 33
D_MODEL = 64          # see TODO above
D_K = D_V = 64
D_FF = 512
PEP_MAX_LEN = 15      # attention mask in Decoder.forward is (B, 15, 15)
S_PAD = 16            # internal seq padding: aligns blocks to the 8-sublane granule
N_HEADS = 2           # n_heads / n_layers are not defined in the snippet; fixed small
N_LAYERS = 1
B_TILE = 8            # sequences folded per grid step -> 8*16 = 128 MXU rows
LN_EPS = 1e-5
NEG_INF = -1000000000.0


# ---------------- kernel ----------------
def _layernorm(h):
    """LayerNorm with default weight=1, bias=0 (fresh nn.LayerNorm each call)."""
    mu = jnp.mean(h, axis=-1, keepdims=True)
    var = jnp.mean((h - mu) ** 2, axis=-1, keepdims=True)
    return (h - mu) * jax.lax.rsqrt(var + LN_EPS)


def decoder_kernel(x_ref, line_w_ref, bias_pe_ref,
                   wq_ref, wk_ref, wv_ref, wo_ref, w1_ref, w2_ref,
                   o_ref, attn_ref):
    """Fused embed + N_LAYERS decoder layers for B_TILE batch-folded sequences."""
    m = x_ref.shape[0]                 # B_TILE * S_PAD (rows of this block)
    b_tile = m // S_PAD
    scale = 1.0 / math.sqrt(D_K)

    # ---- embedding: Linear(33, 64) + (bias + positional encoding) pre-tiled ----
    x = jnp.dot(x_ref[...], line_w_ref[...], preferred_element_type=jnp.float32)
    x = x + bias_pe_ref[...]           # [M, D_MODEL]

    # Constant bias that masks the internal padded key position (>= 15).  The
    # original all-False pad mask contributes nothing and is not materialized.
    key_ids = jax.lax.broadcasted_iota(jnp.int32, (S_PAD, S_PAD), 1)
    pad_bias = jnp.where(key_ids >= PEP_MAX_LEN, NEG_INF, 0.0)   # [S_PAD, S_PAD]

    for l in range(N_LAYERS):          # static unroll over layers
        # ---- Multi-head self-attention: full-width QKV matmuls (M x 128) ----
        q_all = jnp.dot(x, wq_ref[l], preferred_element_type=jnp.float32)
        k_all = jnp.dot(x, wk_ref[l], preferred_element_type=jnp.float32)
        v_all = jnp.dot(x, wv_ref[l], preferred_element_type=jnp.float32)
        # Tile-preserving reshapes (S_PAD=16 is a multiple of the 8-sublane granule).
        q3 = q_all.reshape(b_tile, S_PAD, N_HEADS * D_K)
        k3 = k_all.reshape(b_tile, S_PAD, N_HEADS * D_K)
        v3 = v_all.reshape(b_tile, S_PAD, N_HEADS * D_V)

        ctx_heads = []
        for h in range(N_HEADS):       # static unroll over heads
            qh = q3[:, :, h * D_K:(h + 1) * D_K]
            kh = k3[:, :, h * D_K:(h + 1) * D_K]
            vh = v3[:, :, h * D_V:(h + 1) * D_V]
            s = jnp.einsum('bqd,bkd->bqk', qh, kh,
                           preferred_element_type=jnp.float32) * scale + pad_bias
            s = s - jnp.max(s, axis=-1, keepdims=True)
            e = jnp.exp(s)
            attn = e * pl.reciprocal(jnp.sum(e, axis=-1, keepdims=True), approx=True)
            attn_ref[l * N_HEADS + h] = attn                      # [b_tile, 16, 16]
            ctx_heads.append(jnp.einsum('bqk,bkd->bqd', attn, vh,
                                        preferred_element_type=jnp.float32))

        # concat heads -> one [M, 128] @ [128, 64] output projection
        ctx = jnp.concatenate(ctx_heads, axis=-1).reshape(m, N_HEADS * D_V)
        attn_out = jnp.dot(ctx, wo_ref[l], preferred_element_type=jnp.float32)

        ln1 = _layernorm(attn_out + x)

        # ---- PoswiseFeedForwardNet: Linear(64,512) -> ReLU -> Linear(512,64) ----
        f = jnp.maximum(jnp.dot(ln1, w1_ref[l], preferred_element_type=jnp.float32), 0.0)
        f = jnp.dot(f, w2_ref[l], preferred_element_type=jnp.float32)
        x = _layernorm(f + ln1)

    o_ref[...] = x


# ---------------- wrapper ----------------
def decoder_forward(dec_inputs, params, b_tile=B_TILE):
    """dec_inputs: [B, pep_max_len, 33] float32 -> (out [B,15,64], [attn [B,H,15,15]])."""
    B, S, _ = dec_inputs.shape
    assert S == PEP_MAX_LEN
    n_tiles = -(-B // b_tile)
    B_pad = n_tiles * b_tile
    M = b_tile * S_PAD

    # Pad batch to a multiple of b_tile and seq 15 -> 16, then flatten rows so the
    # kernel sees lane/MXU-friendly [M, feature] blocks.
    x = jnp.zeros((B_pad, S_PAD, D_IN), jnp.float32)
    x = x.at[:B, :S, :].set(dec_inputs.astype(jnp.float32))
    x2d = x.reshape(B_pad * S_PAD, D_IN)

    # Precompute (linear bias + positional encoding), tiled over the batch fold.
    bias_pe = jnp.tile(params["line_b"][None, :] + params["pe_pad"], (b_tile, 1))

    stack = lambda name: jnp.stack([lp[name] for lp in params["layers"]])
    wq, wk, wv = stack("wq"), stack("wk"), stack("wv")
    wo, w1, w2 = stack("wo"), stack("w1"), stack("w2")

    def full(shape):
        n = len(shape)
        return pl.BlockSpec(shape, lambda i: (0,) * n)

    out2d, attn_all = pl.pallas_call(
        decoder_kernel,
        grid=(B_pad // b_tile,),
        in_specs=[
            pl.BlockSpec((M, D_IN), lambda i: (i, 0)),            # folded activations
            full((D_IN, D_MODEL)),                                # line_w
            full((M, D_MODEL)),                                   # bias + pos-enc tile
            full((N_LAYERS, D_MODEL, N_HEADS * D_K)),             # W_Q (stacked layers)
            full((N_LAYERS, D_MODEL, N_HEADS * D_K)),             # W_K
            full((N_LAYERS, D_MODEL, N_HEADS * D_V)),             # W_V
            full((N_LAYERS, N_HEADS * D_V, D_MODEL)),             # fc (W_O)
            full((N_LAYERS, D_MODEL, D_FF)),                      # FFN W1
            full((N_LAYERS, D_FF, D_MODEL)),                      # FFN W2
        ],
        out_specs=(
            pl.BlockSpec((M, D_MODEL), lambda i: (i, 0)),
            pl.BlockSpec((N_LAYERS * N_HEADS, b_tile, S_PAD, S_PAD),
                         lambda i: (0, i, 0, 0)),
        ),
        out_shape=(
            jax.ShapeDtypeStruct((B_pad * S_PAD, D_MODEL), jnp.float32),
            jax.ShapeDtypeStruct((N_LAYERS * N_HEADS, B_pad, S_PAD, S_PAD), jnp.float32),
        ),
        compiler_params=pltpu.CompilerParams(
            dimension_semantics=("parallel",)),   # >=2 grid steps -> shards over v7x TCs
    )(x2d, params["line_w"], bias_pe, wq, wk, wv, wo, w1, w2)

    out = out2d.reshape(B_pad, S_PAD, D_MODEL)[:B, :PEP_MAX_LEN, :]
    attn_all = attn_all.reshape(N_LAYERS, N_HEADS, B_pad, S_PAD, S_PAD)
    attns = [jnp.transpose(attn_all[l], (1, 0, 2, 3))[:B, :, :PEP_MAX_LEN, :PEP_MAX_LEN]
             for l in range(N_LAYERS)]
    return out, attns


# ---------------- parameter init (deterministic) ----------------
def positional_encoding(seq_len, d_model):
    pos = jnp.arange(seq_len, dtype=jnp.float32)[:, None]
    div = jnp.exp(jnp.arange(0, d_model, 2, dtype=jnp.float32)
                  * (-math.log(10000.0) / d_model))
    pe = jnp.zeros((seq_len, d_model), jnp.float32)
    pe = pe.at[:, 0::2].set(jnp.sin(pos * div))
    pe = pe.at[:, 1::2].set(jnp.cos(pos * div))
    return pe


def _linear_w(key, fan_in, fan_out):
    bound = 1.0 / math.sqrt(fan_in)
    return jax.random.uniform(key, (fan_in, fan_out), jnp.float32, -bound, bound)


def make_params(key):
    keys = jax.random.split(key, 2 + 6 * N_LAYERS)
    params = {
        "line_w": _linear_w(keys[0], D_IN, D_MODEL),              # [33, 64]
        "line_b": jax.random.uniform(keys[1], (D_MODEL,), jnp.float32,
                                     -1.0 / math.sqrt(D_IN), 1.0 / math.sqrt(D_IN)),
        "pe_pad": positional_encoding(S_PAD, D_MODEL),            # [16, 64]
        "layers": [],
    }
    k = 2
    for _ in range(N_LAYERS):
        params["layers"].append({
            "wq": _linear_w(keys[k + 0], D_MODEL, N_HEADS * D_K),
            "wk": _linear_w(keys[k + 1], D_MODEL, N_HEADS * D_K),
            "wv": _linear_w(keys[k + 2], D_MODEL, N_HEADS * D_V),
            "wo": _linear_w(keys[k + 3], N_HEADS * D_V, D_MODEL),
            "w1": _linear_w(keys[k + 4], D_MODEL, D_FF),
            "w2": _linear_w(keys[k + 5], D_FF, D_MODEL),
        })
        k += 6
    return params


# ---------------- pure-JAX reference (correctness check) ----------------
def ref_forward(dec_inputs, params):
    pe = params["pe_pad"][:PEP_MAX_LEN]
    x = dec_inputs @ params["line_w"] + params["line_b"] + pe[None]
    B, S, _ = x.shape
    attns = []
    for lp in params["layers"]:
        q = (x @ lp["wq"]).reshape(B, S, N_HEADS, D_K).transpose(0, 2, 1, 3)
        k = (x @ lp["wk"]).reshape(B, S, N_HEADS, D_K).transpose(0, 2, 1, 3)
        v = (x @ lp["wv"]).reshape(B, S, N_HEADS, D_V).transpose(0, 2, 1, 3)
        scores = jnp.einsum("bhqd,bhkd->bhqk", q, k) / math.sqrt(D_K)
        attn = jax.nn.softmax(scores, axis=-1)
        attns.append(attn)
        ctx = jnp.einsum("bhqk,bhkd->bhqd", attn, v).transpose(0, 2, 1, 3)
        ctx = ctx.reshape(B, S, N_HEADS * D_V)
        ln1 = _layernorm(ctx @ lp["wo"] + x)
        f = jnp.maximum(ln1 @ lp["w1"], 0.0) @ lp["w2"]
        x = _layernorm(f + ln1)
    return x, attns


# ---------------- main ----------------
if __name__ == "__main__":
    key = jax.random.PRNGKey(0)
    k_param, k_in = jax.random.split(key)
    params = make_params(k_param)

    B = 16   # 2 grid steps of B_TILE=8 folded sequences
    dec_inputs = jax.random.normal(k_in, (B, PEP_MAX_LEN, D_IN), jnp.float32)

    out, attns = decoder_forward(dec_inputs, params)
    out = jax.block_until_ready(out)
    attns = [jax.block_until_ready(a) for a in attns]

    ref_out, ref_attns = ref_forward(dec_inputs, params)
    ref_out = jax.block_until_ready(ref_out)

    assert out.shape == (B, PEP_MAX_LEN, D_MODEL)
    assert attns[0].shape == (B, N_HEADS, PEP_MAX_LEN, PEP_MAX_LEN)
    # Tolerance loosened vs v1 because the softmax denominator uses the EUP
    # approximate reciprocal (~1e-3 relative error budget end to end).
    assert jnp.allclose(out, ref_out, atol=1e-2, rtol=1e-2), "output mismatch vs reference"
    assert jnp.allclose(attns[0], ref_attns[0], atol=1e-2, rtol=1e-2), "attention mismatch"

    print("KERNEL_OK")
</pallas_src>

<mosaic_0001>
module attributes {stable_mosaic.version = 11 : i64} {
  func.func @decoder_kernel(%arg0: i32, %arg1: memref<128x33xf32, #tpu.memory_space<vmem>>, %arg2: memref<33x64xf32, #tpu.memory_space<vmem>>, %arg3: memref<128x64xf32, #tpu.memory_space<vmem>>, %arg4: memref<1x64x128xf32, #tpu.memory_space<vmem>>, %arg5: memref<1x64x128xf32, #tpu.memory_space<vmem>>, %arg6: memref<1x64x128xf32, #tpu.memory_space<vmem>>, %arg7: memref<1x128x64xf32, #tpu.memory_space<vmem>>, %arg8: memref<1x64x512xf32, #tpu.memory_space<vmem>>, %arg9: memref<1x512x64xf32, #tpu.memory_space<vmem>>, %arg10: memref<128x64xf32, #tpu.memory_space<vmem>>, %arg11: memref<2x8x16x16xf32, #tpu.memory_space<vmem>>) attributes {dimension_semantics = [#tpu.dimension_semantics<parallel>], iteration_bounds = array<i64: 2>, scalar_prefetch = 0 : i64, scratch_operands = 0 : i64, tpu.core_type = #tpu.core_type<tc>, window_params = [{transform_indices = @transform_0, window_bounds = array<i64: 128, 33>}, {pipeline_mode = #tpu.pipeline_mode<synchronous>, transform_indices = @transform_1, window_bounds = array<i64: 33, 64>}, {pipeline_mode = #tpu.pipeline_mode<synchronous>, transform_indices = @transform_2, window_bounds = array<i64: 128, 64>}, {pipeline_mode = #tpu.pipeline_mode<synchronous>, transform_indices = @transform_3, window_bounds = array<i64: 1, 64, 128>}, {pipeline_mode = #tpu.pipeline_mode<synchronous>, transform_indices = @transform_4, window_bounds = array<i64: 1, 64, 128>}, {pipeline_mode = #tpu.pipeline_mode<synchronous>, transform_indices = @transform_5, window_bounds = array<i64: 1, 64, 128>}, {pipeline_mode = #tpu.pipeline_mode<synchronous>, transform_indices = @transform_6, window_bounds = array<i64: 1, 128, 64>}, {pipeline_mode = #tpu.pipeline_mode<synchronous>, transform_indices = @transform_7, window_bounds = array<i64: 1, 64, 512>}, {pipeline_mode = #tpu.pipeline_mode<synchronous>, transform_indices = @transform_8, window_bounds = array<i64: 1, 512, 64>}, {transform_indices = @transform_9, window_bounds = array<i64: 128, 64>}, {transform_indices = @transform_10, window_bounds = array<i64: 2, 8, 16, 16>}]} {
    %c0 = arith.constant 0 : index
    %c0_0 = arith.constant 0 : index
    %0 = vector.load %arg1[%c0, %c0_0] : memref<128x33xf32, #tpu.memory_space<vmem>>, vector<128x33xf32>
    %c0_1 = arith.constant 0 : index
    %c0_2 = arith.constant 0 : index
    %1 = vector.load %arg2[%c0_1, %c0_2] : memref<33x64xf32, #tpu.memory_space<vmem>>, vector<33x64xf32>
    %cst = arith.constant dense<0.000000e+00> : vector<128x64xf32>
    %2 = tpu.matmul %0, %1, %cst {dimension_numbers = #tpu.dot_dimension_numbers<[1], [0], [0], [1], [0, 0, 1, 1], [], []>} : vector<128x33xf32>, vector<33x64xf32>, vector<128x64xf32> -> vector<128x64xf32>
    %c0_3 = arith.constant 0 : index
    %c0_4 = arith.constant 0 : index
    %3 = vector.load %arg3[%c0_3, %c0_4] : memref<128x64xf32, #tpu.memory_space<vmem>>, vector<128x64xf32>
    %4 = arith.addf %2, %3 : vector<128x64xf32>
    %5 = tpu.iota {dimensions = array<i32: 1>} : vector<16x16xi32>
    %c15_i32 = arith.constant 15 : i32
    %6 = vector.broadcast %c15_i32 : i32 to vector<16x16xi32>
    %7 = arith.cmpi sge, %5, %6 : vector<16x16xi32>
    %cst_5 = arith.constant -1.000000e+09 : f32
    %cst_6 = arith.constant 0.000000e+00 : f32
    %8 = vector.broadcast %cst_5 : f32 to vector<16x16xf32>
    %9 = vector.broadcast %cst_6 : f32 to vector<16x16xf32>
    %10 = arith.select %7, %8, %9 : vector<16x16xi1>, vector<16x16xf32>
    %c0_7 = arith.constant 0 : index
    %c0_8 = arith.constant 0 : index
    %c0_9 = arith.constant 0 : index
    %11 = vector.load %arg4[%c0_7, %c0_8, %c0_9] : memref<1x64x128xf32, #tpu.memory_space<vmem>>, vector<1x64x128xf32>
    %12 = vector.shape_cast %11 : vector<1x64x128xf32> to vector<64x128xf32>
    %cst_10 = arith.constant dense<0.000000e+00> : vector<128x128xf32>
    %13 = tpu.matmul %4, %12, %cst_10 {dimension_numbers = #tpu.dot_dimension_numbers<[1], [0], [0], [1], [0, 0, 1, 1], [], []>} : vector<128x64xf32>, vector<64x128xf32>, vector<128x128xf32> -> vector<128x128xf32>
    %c0_11 = arith.constant 0 : index
    %c0_12 = arith.constant 0 : index
    %c0_13 = arith.constant 0 : index
    %14 = vector.load %arg5[%c0_11, %c0_12, %c0_13] : memref<1x64x128xf32, #tpu.memory_space<vmem>>, vector<1x64x128xf32>
    %15 = vector.shape_cast %14 : vector<1x64x128xf32> to vector<64x128xf32>
    %cst_14 = arith.constant dense<0.000000e+00> : vector<128x128xf32>
    %16 = tpu.matmul %4, %15, %cst_14 {dimension_numbers = #tpu.dot_dimension_numbers<[1], [0], [0], [1], [0, 0, 1, 1], [], []>} : vector<128x64xf32>, vector<64x128xf32>, vector<128x128xf32> -> vector<128x128xf32>
    %c0_15 = arith.constant 0 : index
    %c0_16 = arith.constant 0 : index
    %c0_17 = arith.constant 0 : index
    %17 = vector.load %arg6[%c0_15, %c0_16, %c0_17] : memref<1x64x128xf32, #tpu.memory_space<vmem>>, vector<1x64x128xf32>
    %18 = vector.shape_cast %17 : vector<1x64x128xf32> to vector<64x128xf32>
    %cst_18 = arith.constant dense<0.000000e+00> : vector<128x128xf32>
    %19 = tpu.matmul %4, %18, %cst_18 {dimension_numbers = #tpu.dot_dimension_numbers<[1], [0], [0], [1], [0, 0, 1, 1], [], []>} : vector<128x64xf32>, vector<64x128xf32>, vector<128x128xf32> -> vector<128x128xf32>
    %20 = vector.shape_cast %13 : vector<128x128xf32> to vector<8x16x128xf32>
    %21 = vector.shape_cast %16 : vector<128x128xf32> to vector<8x16x128xf32>
    %22 = vector.shape_cast %19 : vector<128x128xf32> to vector<8x16x128xf32>
    %23 = vector.extract_strided_slice %20 {offsets = [0, 0, 0], sizes = [8, 16, 64], strides = [1, 1, 1]} : vector<8x16x128xf32> to vector<8x16x64xf32>
    %24 = vector.extract_strided_slice %21 {offsets = [0, 0, 0], sizes = [8, 16, 64], strides = [1, 1, 1]} : vector<8x16x128xf32> to vector<8x16x64xf32>
    %25 = vector.extract_strided_slice %22 {offsets = [0, 0, 0], sizes = [8, 16, 64], strides = [1, 1, 1]} : vector<8x16x128xf32> to vector<8x16x64xf32>
    "tpu.trace_start"() <{level = 10 : i32, message = "bqd,bkd->bqk"}> : () -> ()
    %cst_19 = arith.constant dense<0.000000e+00> : vector<8x16x16xf32>
    %26 = tpu.matmul %23, %24, %cst_19 {dimension_numbers = #tpu.dot_dimension_numbers<[2], [2], [1], [1], [0, 0, 0, 1, 1, 1], [0], [0]>} : vector<8x16x64xf32>, vector<8x16x64xf32>, vector<8x16x16xf32> -> vector<8x16x16xf32>
    "tpu.trace_stop"() : () -> ()
    %cst_20 = arith.constant 1.250000e-01 : f32
    %27 = vector.broadcast %cst_20 : f32 to vector<8x16x16xf32>
    %28 = arith.mulf %26, %27 : vector<8x16x16xf32>
    %29 = vector.shape_cast %10 : vector<16x16xf32> to vector<1x16x16xf32>
    %30 = vector.broadcast %29 : vector<1x16x16xf32> to vector<8x16x16xf32>
    %31 = arith.addf %28, %30 : vector<8x16x16xf32>
    %cst_21 = arith.constant dense<0xFF800000> : vector<8x16xf32>
    %32 = vector.multi_reduction <maximumf>, %31, %cst_21 [2] : vector<8x16x16xf32> to vector<8x16xf32>
    %33 = vector.shape_cast %32 : vector<8x16xf32> to vector<8x16x1xf32>
    %34 = vector.broadcast %33 : vector<8x16x1xf32> to vector<8x16x16xf32>
    %35 = arith.subf %31, %34 : vector<8x16x16xf32>
    %36 = math.exp %35 : vector<8x16x16xf32>
    %cst_22 = arith.constant dense<0.000000e+00> : vector<8x16xf32>
    %37 = vector.multi_reduction <add>, %36, %cst_22 [2] : vector<8x16x16xf32> to vector<8x16xf32>
    %38 = vector.shape_cast %37 : vector<8x16xf32> to vector<8x16x1xf32>
    %39 = tpu.reciprocal %38 {approx = true} : vector<8x16x1xf32> -> vector<8x16x1xf32>
    %40 = vector.broadcast %39 : vector<8x16x1xf32> to vector<8x16x16xf32>
    %41 = arith.mulf %36, %40 : vector<8x16x16xf32>
    %c0_23 = arith.constant 0 : index
    %c0_24 = arith.constant 0 : index
    %c0_25 = arith.constant 0 : index
    %c0_26 = arith.constant 0 : index
    %42 = vector.load %arg11[%c0_23, %c0_24, %c0_25, %c0_26] : memref<2x8x16x16xf32, #tpu.memory_space<vmem>>, vector<1x8x16x16xf32>
    %43 = vector.shape_cast %42 : vector<1x8x16x16xf32> to vector<8x16x16xf32>
    %44 = vector.shape_cast %41 : vector<8x16x16xf32> to vector<1x8x16x16xf32>
    tpu.vector_store %arg11[%c0_23, %c0_24, %c0_25, %c0_26], %44 {strides = array<i32>} : memref<2x8x16x16xf32, #tpu.memory_space<vmem>>, vector<1x8x16x16xf32>,
    "tpu.trace_start"() <{level = 10 : i32, message = "bqk,bkd->bqd"}> : () -> ()
    %cst_27 = arith.constant dense<0.000000e+00> : vector<8x16x64xf32>
    %45 = tpu.matmul %41, %25, %cst_27 {dimension_numbers = #tpu.dot_dimension_numbers<[2], [1], [1], [2], [0, 0, 0, 1, 1, 2], [0], [0]>} : vector<8x16x16xf32>, vector<8x16x64xf32>, vector<8x16x64xf32> -> vector<8x16x64xf32>
    "tpu.trace_stop"() : () -> ()
    %46 = vector.extract_strided_slice %20 {offsets = [0, 0, 64], sizes = [8, 16, 64], strides = [1, 1, 1]} : vector<8x16x128xf32> to vector<8x16x64xf32>
    %47 = vector.extract_strided_slice %21 {offsets = [0, 0, 64], sizes = [8, 16, 64], strides = [1, 1, 1]} : vector<8x16x128xf32> to vector<8x16x64xf32>
    %48 = vector.extract_strided_slice %22 {offsets = [0, 0, 64], sizes = [8, 16, 64], strides = [1, 1, 1]} : vector<8x16x128xf32> to vector<8x16x64xf32>
    "tpu.trace_start"() <{level = 10 : i32, message = "bqd,bkd->bqk"}> : () -> ()
    %cst_28 = arith.constant dense<0.000000e+00> : vector<8x16x16xf32>
    %49 = tpu.matmul %46, %47, %cst_28 {dimension_numbers = #tpu.dot_dimension_numbers<[2], [2], [1], [1], [0, 0, 0, 1, 1, 1], [0], [0]>} : vector<8x16x64xf32>, vector<8x16x64xf32>, vector<8x16x16xf32> -> vector<8x16x16xf32>
    "tpu.trace_stop"() : () -> ()
    %cst_29 = arith.constant 1.250000e-01 : f32
    %50 = vector.broadcast %cst_29 : f32 to vector<8x16x16xf32>
    %51 = arith.mulf %49, %50 : vector<8x16x16xf32>
    %52 = vector.shape_cast %10 : vector<16x16xf32> to vector<1x16x16xf32>
    %53 = vector.broadcast %52 : vector<1x16x16xf32> to vector<8x16x16xf32>
    %54 = arith.addf %51, %53 : vector<8x16x16xf32>
    %cst_30 = arith.constant dense<0xFF800000> : vector<8x16xf32>
    %55 = vector.multi_reduction <maximumf>, %54, %cst_30 [2] : vector<8x16x16xf32> to vector<8x16xf32>
    %56 = vector.shape_cast %55 : vector<8x16xf32> to vector<8x16x1xf32>
    %57 = vector.broadcast %56 : vector<8x16x1xf32> to vector<8x16x16xf32>
    %58 = arith.subf %54, %57 : vector<8x16x16xf32>
    %59 = math.exp %58 : vector<8x16x16xf32>
    %cst_31 = arith.constant dense<0.000000e+00> : vector<8x16xf32>
    %60 = vector.multi_reduction <add>, %59, %cst_31 [2] : vector<8x16x16xf32> to vector<8x16xf32>
    %61 = vector.shape_cast %60 : vector<8x16xf32> to vector<8x16x1xf32>
    %62 = tpu.reciprocal %61 {approx = true} : vector<8x16x1xf32> -> vector<8x16x1xf32>
    %63 = vector.broadcast %62 : vector<8x16x1xf32> to vector<8x16x16xf32>
    %64 = arith.mulf %59, %63 : vector<8x16x16xf32>
    %c1 = arith.constant 1 : index
    %c0_32 = arith.constant 0 : index
    %c0_33 = arith.constant 0 : index
    %c0_34 = arith.constant 0 : index
    %65 = vector.load %arg11[%c1, %c0_32, %c0_33, %c0_34] : memref<2x8x16x16xf32, #tpu.memory_space<vmem>>, vector<1x8x16x16xf32>
    %66 = vector.shape_cast %65 : vector<1x8x16x16xf32> to vector<8x16x16xf32>
    %67 = vector.shape_cast %64 : vector<8x16x16xf32> to vector<1x8x16x16xf32>
    tpu.vector_store %arg11[%c1, %c0_32, %c0_33, %c0_34], %67 {strides = array<i32>} : memref<2x8x16x16xf32, #tpu.memory_space<vmem>>, vector<1x8x16x16xf32>,
    "tpu.trace_start"() <{level = 10 : i32, message = "bqk,bkd->bqd"}> : () -> ()
    %cst_35 = arith.constant dense<0.000000e+00> : vector<8x16x64xf32>
    %68 = tpu.matmul %64, %48, %cst_35 {dimension_numbers = #tpu.dot_dimension_numbers<[2], [1], [1], [2], [0, 0, 0, 1, 1, 2], [0], [0]>} : vector<8x16x16xf32>, vector<8x16x64xf32>, vector<8x16x64xf32> -> vector<8x16x64xf32>
    "tpu.trace_stop"() : () -> ()
    %69 = tpu.concatenate %45, %68 in 2 : vector<8x16x64xf32>, vector<8x16x64xf32> -> vector<8x16x128xf32>
    %70 = vector.shape_cast %69 : vector<8x16x128xf32> to vector<128x128xf32>
    %c0_36 = arith.constant 0 : index
    %c0_37 = arith.constant 0 : index
    %c0_38 = arith.constant 0 : index
    %71 = vector.load %arg7[%c0_36, %c0_37, %c0_38] : memref<1x128x64xf32, #tpu.memory_space<vmem>>, vector<1x128x64xf32>
    %72 = vector.shape_cast %71 : vector<1x128x64xf32> to vector<128x64xf32>
    %cst_39 = arith.constant dense<0.000000e+00> : vector<128x64xf32>
    %73 = tpu.matmul %70, %72, %cst_39 {dimension_numbers = #tpu.dot_dimension_numbers<[1], [0], [0], [1], [0, 0, 1, 1], [], []>} : vector<128x128xf32>, vector<128x64xf32>, vector<128x64xf32> -> vector<128x64xf32>
    %74 = arith.addf %73, %4 : vector<128x64xf32>
    %cst_40 = arith.constant dense<0.000000e+00> : vector<128xf32>
    %75 = vector.multi_reduction <add>, %74, %cst_40 [1] : vector<128x64xf32> to vector<128xf32>
    %76 = vector.shape_cast %75 : vector<128xf32> to vector<128x1xf32>
    %cst_41 = arith.constant 6.400000e+01 : f32
    %77 = vector.broadcast %cst_41 : f32 to vector<128x1xf32>
    %78 = arith.divf %76, %77 : vector<128x1xf32>
    %79 = vector.broadcast %78 : vector<128x1xf32> to vector<128x64xf32>
    %80 = arith.subf %74, %79 : vector<128x64xf32>
    %81 = arith.mulf %80, %80 : vector<128x64xf32>
    %cst_42 = arith.constant dense<0.000000e+00> : vector<128xf32>
    %82 = vector.multi_reduction <add>, %81, %cst_42 [1] : vector<128x64xf32> to vector<128xf32>
    %83 = vector.shape_cast %82 : vector<128xf32> to vector<128x1xf32>
    %cst_43 = arith.constant 6.400000e+01 : f32
    %84 = vector.broadcast %cst_43 : f32 to vector<128x1xf32>
    %85 = arith.divf %83, %84 : vector<128x1xf32>
    %86 = vector.broadcast %78 : vector<128x1xf32> to vector<128x64xf32>
    %87 = arith.subf %74, %86 : vector<128x64xf32>
    %cst_44 = arith.constant 9.99999974E-6 : f32
    %88 = vector.broadcast %cst_44 : f32 to vector<128x1xf32>
    %89 = arith.addf %85, %88 : vector<128x1xf32>
    %90 = math.rsqrt %89 : vector<128x1xf32>
    %91 = vector.broadcast %90 : vector<128x1xf32> to vector<128x64xf32>
    %92 = arith.mulf %87, %91 : vector<128x64xf32>
    %c0_45 = arith.constant 0 : index
    %c0_46 = arith.constant 0 : index
    %c0_47 = arith.constant 0 : index
    %93 = vector.load %arg8[%c0_45, %c0_46, %c0_47] : memref<1x64x512xf32, #tpu.memory_space<vmem>>, vector<1x64x512xf32>
    %94 = vector.shape_cast %93 : vector<1x64x512xf32> to vector<64x512xf32>
    %cst_48 = arith.constant dense<0.000000e+00> : vector<128x512xf32>
    %95 = tpu.matmul %92, %94, %cst_48 {dimension_numbers = #tpu.dot_dimension_numbers<[1], [0], [0], [1], [0, 0, 1, 1], [], []>} : vector<128x64xf32>, vector<64x512xf32>, vector<128x512xf32> -> vector<128x512xf32>
    %cst_49 = arith.constant 0.000000e+00 : f32
    %96 = vector.broadcast %cst_49 : f32 to vector<128x512xf32>
    %97 = arith.maximumf %95, %96 : vector<128x512xf32>
    %c0_50 = arith.constant 0 : index
    %c0_51 = arith.constant 0 : index
    %c0_52 = arith.constant 0 : index
    %98 = vector.load %arg9[%c0_50, %c0_51, %c0_52] : memref<1x512x64xf32, #tpu.memory_space<vmem>>, vector<1x512x64xf32>
    %99 = vector.shape_cast %98 : vector<1x512x64xf32> to vector<512x64xf32>
    %cst_53 = arith.constant dense<0.000000e+00> : vector<128x64xf32>
    %100 = tpu.matmul %97, %99, %cst_53 {dimension_numbers = #tpu.dot_dimension_numbers<[1], [0], [0], [1], [0, 0, 1, 1], [], []>} : vector<128x512xf32>, vector<512x64xf32>, vector<128x64xf32> -> vector<128x64xf32>
    %101 = arith.addf %100, %92 : vector<128x64xf32>
    %cst_54 = arith.constant dense<0.000000e+00> : vector<128xf32>
    %102 = vector.multi_reduction <add>, %101, %cst_54 [1] : vector<128x64xf32> to vector<128xf32>
    %103 = vector.shape_cast %102 : vector<128xf32> to vector<128x1xf32>
    %cst_55 = arith.constant 6.400000e+01 : f32
    %104 = vector.broadcast %cst_55 : f32 to vector<128x1xf32>
    %105 = arith.divf %103, %104 : vector<128x1xf32>
    %106 = vector.broadcast %105 : vector<128x1xf32> to vector<128x64xf32>
    %107 = arith.subf %101, %106 : vector<128x64xf32>
    %108 = arith.mulf %107, %107 : vector<128x64xf32>
    %cst_56 = arith.constant dense<0.000000e+00> : vector<128xf32>
    %109 = vector.multi_reduction <add>, %108, %cst_56 [1] : vector<128x64xf32> to vector<128xf32>
    %110 = vector.shape_cast %109 : vector<128xf32> to vector<128x1xf32>
    %cst_57 = arith.constant 6.400000e+01 : f32
    %111 = vector.broadcast %cst_57 : f32 to vector<128x1xf32>
    %112 = arith.divf %110, %111 : vector<128x1xf32>
    %113 = vector.broadcast %105 : vector<128x1xf32> to vector<128x64xf32>
    %114 = arith.subf %101, %113 : vector<128x64xf32>
    %cst_58 = arith.constant 9.99999974E-6 : f32
    %115 = vector.broadcast %cst_58 : f32 to vector<128x1xf32>
    %116 = arith.addf %112, %115 : vector<128x1xf32>
    %117 = math.rsqrt %116 : vector<128x1xf32>
    %118 = vector.broadcast %117 : vector<128x1xf32> to vector<128x64xf32>
    %119 = arith.mulf %114, %118 : vector<128x64xf32>
    %c0_59 = arith.constant 0 : index
    %c0_60 = arith.constant 0 : index
    %120 = vector.load %arg10[%c0_59, %c0_60] : memref<128x64xf32, #tpu.memory_space<vmem>>, vector<128x64xf32>
    tpu.vector_store %arg10[%c0_59, %c0_60], %119 {strides = array<i32>} : memref<128x64xf32, #tpu.memory_space<vmem>>, vector<128x64xf32>,
    return
  }
  func.func @transform_0(%arg0: i32) -> (i32, i32) {
    %c0_i32 = arith.constant 0 : i32
    %c0_i32_0 = arith.constant 0 : i32
    return %arg0, %c0_i32 : i32, i32
  }
  func.func @transform_1(%arg0: i32) -> (i32, i32) {
    %c0_i32 = arith.constant 0 : i32
    %c0_i32_0 = arith.constant 0 : i32
    %c0_i32_1 = arith.constant 0 : i32
    return %c0_i32, %c0_i32_0 : i32, i32
  }
  func.func @transform_2(%arg0: i32) -> (i32, i32) {
    %c0_i32 = arith.constant 0 : i32
    %c0_i32_0 = arith.constant 0 : i32
    %c0_i32_1 = arith.constant 0 : i32
    return %c0_i32, %c0_i32_0 : i32, i32
  }
  func.func @transform_3(%arg0: i32) -> (i32, i32, i32) {
    %c0_i32 = arith.constant 0 : i32
    %c0_i32_0 = arith.constant 0 : i32
    %c0_i32_1 = arith.constant 0 : i32
    %c0_i32_2 = arith.constant 0 : i32
    return %c0_i32, %c0_i32_0, %c0_i32_1 : i32, i32, i32
  }
  func.func @transform_4(%arg0: i32) -> (i32, i32, i32) {
    %c0_i32 = arith.constant 0 : i32
    %c0_i32_0 = arith.constant 0 : i32
    %c0_i32_1 = arith.constant 0 : i32
    %c0_i32_2 = arith.constant 0 : i32
    return %c0_i32, %c0_i32_0, %c0_i32_1 : i32, i32, i32
  }
  func.func @transform_5(%arg0: i32) -> (i32, i32, i32) {
    %c0_i32 = arith.constant 0 : i32
    %c0_i32_0 = arith.constant 0 : i32
    %c0_i32_1 = arith.constant 0 : i32
    %c0_i32_2 = arith.constant 0 : i32
    return %c0_i32, %c0_i32_0, %c0_i32_1 : i32, i32, i32
  }
  func.func @transform_6(%arg0: i32) -> (i32, i32, i32) {
    %c0_i32 = arith.constant 0 : i32
    %c0_i32_0 = arith.constant 0 : i32
    %c0_i32_1 = arith.constant 0 : i32
    %c0_i32_2 = arith.constant 0 : i32
    return %c0_i32, %c0_i32_0, %c0_i32_1 : i32, i32, i32
  }
  func.func @transform_7(%arg0: i32) -> (i32, i32, i32) {
    %c0_i32 = arith.constant 0 : i32
    %c0_i32_0 = arith.constant 0 : i32
    %c0_i32_1 = arith.constant 0 : i32
    %c0_i32_2 = arith.constant 0 : i32
    return %c0_i32, %c0_i32_0, %c0_i32_1 : i32, i32, i32
  }
  func.func @transform_8(%arg0: i32) -> (i32, i32, i32) {
    %c0_i32 = arith.constant 0 : i32
    %c0_i32_0 = arith.constant 0 : i32
    %c0_i32_1 = arith.constant 0 : i32
    %c0_i32_2 = arith.constant 0 : i32
    return %c0_i32, %c0_i32_0, %c0_i32_1 : i32, i32, i32
  }
  func.func @transform_9(%arg0: i32) -> (i32, i32) {
    %c0_i32 = arith.constant 0 : i32
    %c0_i32_0 = arith.constant 0 : i32
    return %arg0, %c0_i32 : i32, i32
  }
  func.func @transform_10(%arg0: i32) -> (i32, i32, i32, i32) {
    %c0_i32 = arith.constant 0 : i32
    %c0_i32_0 = arith.constant 0 : i32
    %c0_i32_1 = arith.constant 0 : i32
    %c0_i32_2 = arith.constant 0 : i32
    return %c0_i32, %arg0, %c0_i32_0, %c0_i32_1 : i32, i32, i32, i32
  }
}

</mosaic_0001>

<llo_original>
// kernel: tpu_custom_call.1
$region0: #{tpu_custom_call.1}
  #allocation0 [shape = 'u32[]', space=smem, size = 0x4, offset = 0x4, fixed_abs, tag = 'smem constant byte address 0x4 - core index']
  #allocation1 [shape = 'u32[144,128]{1,0:T(1,128)}', space=vmem, size = 0x12000, scoped, tag = 'internal scratch']
  #allocation4 [shape = 's32[]', space=sflag, size = 0x4, offset = 0, fixed_abs, tag = 'sflag constant byte address 0x0 - dummy sync flag']
  %s0 = inlined_call_operand.vmem [shape: f32[256,33], index: 0, kind: input, shape index: {}]
  %s1 = inlined_call_operand.vmem [shape: f32[33,64], index: 1, kind: input, shape index: {}]
  %s2 = inlined_call_operand.vmem [shape: f32[128,64], index: 2, kind: input, shape index: {}]
  %s3 = inlined_call_operand.vmem [shape: f32[1,64,128], index: 3, kind: input, shape index: {}]
  %s4 = inlined_call_operand.vmem [shape: f32[1,64,128], index: 4, kind: input, shape index: {}]
  %s5 = inlined_call_operand.vmem [shape: f32[1,64,128], index: 5, kind: input, shape index: {}]
  %s6 = inlined_call_operand.vmem [shape: f32[1,128,64], index: 6, kind: input, shape index: {}]
  %s7 = inlined_call_operand.vmem [shape: f32[1,64,512], index: 7, kind: input, shape index: {}]
  %s8 = inlined_call_operand.vmem [shape: f32[1,512,64], index: 8, kind: input, shape index: {}]
  %s9 = inlined_call_operand.vmem [shape: f32[256,64], index: 9, kind: output, shape index: {0}]
  %s10 = inlined_call_operand.hbm [shape: f32[2,16,16,16], index: 10, kind: output, shape index: {1}]
  %11 = xla_tuple %s9, %s10
  %s12 = sld [smem:[#allocation0]]
  $region77: #{tpu_custom_call.1} parent=0
    _
  %s14 = ssub.s32 1, %s12
  %s15 = scalar_select 0, %s14, %s12
  $region1: #{tpu_custom_call.1} parent=0
    #allocation2 [shape = 'u8[262144]{0}', space=vmem, size = 0x40000, scoped, tag = 'output window, operand 1']
    #allocation3 [shape = 's32[2]{0}', space=sflag, size = 0x8, scoped, tag = 'scoped memory for tpu_custom_call.1']
    %16 = vsyncpa [#allocation3], 0
    %s17 = scalar_lea.sflag [#allocation3], 1
    %18 = vsyncpa %s17, 0
    loop: start=0, step=1, limit=4
    $region2: #{tpu_custom_call.1} parent=1 // loop_pre_header
      _
    $region3: #{tpu_custom_call.1} parent=1 // loop_header
      %s20 = sphi 0, %s24
      %p21 = scmp.ge.s32.totalorder %s20, 4
      %s30 = sphi 0, %s32
      %s33 = sphi 0, %s30
      %s34 = sphi 0, %s33
      %s50 = sphi 0, %s34
      %s54 = sphi 0, %s54
      %s56 = sphi 0, %s54
      %s57 = sphi 0, %s56
      %s71 = sphi 0, %s57
      %s75 = sphi 0, %s75
      %s77 = sphi 0, %s75
      %s78 = sphi 0, %s77
      %s92 = sphi 0, %s78
      %s96 = sphi 0, %s96
      %s98 = sphi 0, %s96
      %s99 = sphi 0, %s98
      %s113 = sphi 0, %s99
      %s117 = sphi 0, %s117
      %s119 = sphi 0, %s117
      %s120 = sphi 0, %s119
      %s134 = sphi 0, %s120
      %s138 = sphi 0, %s138
      %s140 = sphi 0, %s138
      %s141 = sphi 0, %s140
      %s155 = sphi 0, %s141
      %s159 = sphi 0, %s159
      %s161 = sphi 0, %s159
      %s162 = sphi 0, %s161
      %s176 = sphi 0, %s162
      %s180 = sphi 0, %s180
      %s182 = sphi 0, %s180
      %s183 = sphi 0, %s182
      %s197 = sphi 0, %s183
      %s201 = sphi 0, %s201
      %s203 = sphi 0, %s201
      %s204 = sphi 0, %s203
      %s218 = sphi 0, %s204
      %s224 = sphi 0, %s226
      %s227 = sphi 0, %s224
      %s228 = sphi 0, %s227
      %s244 = sphi 0, %s228
      %s250 = sphi 0, %s252
      %s253 = sphi 0, %s250
      %s254 = sphi 0, %s253
      %s270 = sphi 0, %s254
    $region4: #{tpu_custom_call.1} parent=1 // loop_header_branch
      %23 = sbr.rel (%p21) target = $region8
    $region5: #{tpu_custom_call.1} parent=1 // loop_body
      %s25 = ssub.s32 %s20, 1
      %s26 = ssub.s32 %s20, 2
      %s27 = sadd.s32 %s20, 1
      %s28 = ssub.s32 %s20, %s27
      %p29 = scmp.eq.s32.totalorder %s28, 0
      %s31 = sadd.s32 %s30, 1
      %s32 = scalar_select %p29, %s30, %s31
      %p35 = pneg %p29
      %p36 = scmp.eq.s32.totalorder %s20, 1
      %p37 = por %p35, %p36
      %p38 = scmp.ne.s32.totalorder %s30, %s33
      %p39 = scmp.eq.s32.totalorder %s20, 0
      %p40 = por %p38, %p39
      %p41 = scmp.ne.s32.totalorder %s30, %s33
      %p42 = scmp.eq.s32.totalorder %s25, 1
      %p43 = por %p41, %p42
      %p44 = scmp.ne.s32.totalorder %s33, %s34
      %p45 = scmp.eq.s32.totalorder %s25, 0
      %p46 = por %p44, %p45
      %p47 = scmp.ne.s32.totalorder %s33, %s34
      %p48 = scmp.eq.s32.totalorder %s26, 1
      %p49 = por %p47, %p48
      %p51 = scmp.ne.s32.totalorder %s34, %s50
      %p52 = scmp.eq.s32.totalorder %s26, 0
      %p53 = por %p51, %p52
      %s55 = sadd.s32 %s54, 1
      %p58 = scmp.eq.s32.totalorder %s20, 1
      %p59 = scmp.ne.s32.totalorder %s54, %s56
      %p60 = scmp.eq.s32.totalorder %s20, 0
      %p61 = por %p59, %p60
      %p62 = scmp.ne.s32.totalorder %s54, %s56
      %p63 = scmp.eq.s32.totalorder %s25, 1
      %p64 = por %p62, %p63
      %p65 = scmp.ne.s32.totalorder %s56, %s57
      %p66 = scmp.eq.s32.totalorder %s25, 0
      %p67 = por %p65, %p66
      %p68 = scmp.ne.s32.totalorder %s56, %s57
      %p69 = scmp.eq.s32.totalorder %s26, 1
      %p70 = por %p68, %p69
      %p72 = scmp.ne.s32.totalorder %s57, %s71
      %p73 = scmp.eq.s32.totalorder %s26, 0
      %p74 = por %p72, %p73
      %s76 = sadd.s32 %s75, 1
      %p79 = scmp.eq.s32.totalorder %s20, 1
      %p80 = scmp.ne.s32.totalorder %s75, %s77
      %p81 = scmp.eq.s32.totalorder %s20, 0
      %p82 = por %p80, %p81
      %p83 = scmp.ne.s32.totalorder %s75, %s77
      %p84 = scmp.eq.s32.totalorder %s25, 1
      %p85 = por %p83, %p84
      %p86 = scmp.ne.s32.totalorder %s77, %s78
      %p87 = scmp.eq.s32.totalorder %s25, 0
      %p88 = por %p86, %p87
      %p89 = scmp.ne.s32.totalorder %s77, %s78
      %p90 = scmp.eq.s32.totalorder %s26, 1
      %p91 = por %p89, %p90
      %p93 = scmp.ne.s32.totalorder %s78, %s92
      %p94 = scmp.eq.s32.totalorder %s26, 0
      %p95 = por %p93, %p94
      %s97 = sadd.s32 %s96, 1
      %p100 = scmp.eq.s32.totalorder %s20, 1
      %p101 = scmp.ne.s32.totalorder %s96, %s98
      %p102 = scmp.eq.s32.totalorder %s20, 0
      %p103 = por %p101, %p102
      %p104 = scmp.ne.s32.totalorder %s96, %s98
      %p105 = scmp.eq.s32.totalorder %s25, 1
      %p106 = por %p104, %p105
      %p107 = scmp.ne.s32.totalorder %s98, %s99
      %p108 = scmp.eq.s32.totalorder %s25, 0
      %p109 = por %p107, %p108
      %p110 = scmp.ne.s32.totalorder %s98, %s99
      %p111 = scmp.eq.s32.totalorder %s26, 1
      %p112 = por %p110, %p111
      %p114 = scmp.ne.s32.totalorder %s99, %s113
      %p115 = scmp.eq.s32.totalorder %s26, 0
      %p116 = por %p114, %p115
      %s118 = sadd.s32 %s117, 1
      %p121 = scmp.eq.s32.totalorder %s20, 1
      %p122 = scmp.ne.s32.totalorder %s117, %s119
      %p123 = scmp.eq.s32.totalorder %s20, 0
      %p124 = por %p122, %p123
      %p125 = scmp.ne.s32.totalorder %s117, %s119
      %p126 = scmp.eq.s32.totalorder %s25, 1
      %p127 = por %p125, %p126
      %p128 = scmp.ne.s32.totalorder %s119, %s120
      %p129 = scmp.eq.s32.totalorder %s25, 0
      %p130 = por %p128, %p129
      %p131 = scmp.ne.s32.totalorder %s119, %s120
      %p132 = scmp.eq.s32.totalorder %s26, 1
      %p133 = por %p131, %p132
      %p135 = scmp.ne.s32.totalorder %s120, %s134
      %p136 = scmp.eq.s32.totalorder %s26, 0
      %p137 = por %p135, %p136
      %s139 = sadd.s32 %s138, 1
      %p142 = scmp.eq.s32.totalorder %s20, 1
      %p143 = scmp.ne.s32.totalorder %s138, %s140
      %p144 = scmp.eq.s32.totalorder %s20, 0
      %p145 = por %p143, %p144
      %p146 = scmp.ne.s32.totalorder %s138, %s140
      %p147 = scmp.eq.s32.totalorder %s25, 1
      %p148 = por %p146, %p147
      %p149 = scmp.ne.s32.totalorder %s140, %s141
      %p150 = scmp.eq.s32.totalorder %s25, 0
      %p151 = por %p149, %p150
      %p152 = scmp.ne.s32.totalorder %s140, %s141
      %p153 = scmp.eq.s32.totalorder %s26, 1
      %p154 = por %p152, %p153
      %p156 = scmp.ne.s32.totalorder %s141, %s155
      %p157 = scmp.eq.s32.totalorder %s26, 0
      %p158 = por %p156, %p157
      %s160 = sadd.s32 %s159, 1
      %p163 = scmp.eq.s32.totalorder %s20, 1
      %p164 = scmp.ne.s32.totalorder %s159, %s161
      %p165 = scmp.eq.s32.totalorder %s20, 0
      %p166 = por %p164, %p165
      %p167 = scmp.ne.s32.totalorder %s159, %s161
      %p168 = scmp.eq.s32.totalorder %s25, 1
      %p169 = por %p167, %p168
      %p170 = scmp.ne.s32.totalorder %s161, %s162
      %p171 = scmp.eq.s32.totalorder %s25, 0
      %p172 = por %p170, %p171
      %p173 = scmp.ne.s32.totalorder %s161, %s162
      %p174 = scmp.eq.s32.totalorder %s26, 1
      %p175 = por %p173, %p174
      %p177 = scmp.ne.s32.totalorder %s162, %s176
      %p178 = scmp.eq.s32.totalorder %s26, 0
      %p179 = por %p177, %p178
      %s181 = sadd.s32 %s180, 1
      %p184 = scmp.eq.s32.totalorder %s20, 1
      %p185 = scmp.ne.s32.totalorder %s180, %s182
      %p186 = scmp.eq.s32.totalorder %s20, 0
      %p187 = por %p185, %p186
      %p188 = scmp.ne.s32.totalorder %s180, %s182
      %p189 = scmp.eq.s32.totalorder %s25, 1
      %p190 = por %p188, %p189
      %p191 = scmp.ne.s32.totalorder %s182, %s183
      %p192 = scmp.eq.s32.totalorder %s25, 0
      %p193 = por %p191, %p192
      %p194 = scmp.ne.s32.totalorder %s182, %s183
      %p195 = scmp.eq.s32.totalorder %s26, 1
      %p196 = por %p194, %p195
      %p198 = scmp.ne.s32.totalorder %s183, %s197
      %p199 = scmp.eq.s32.totalorder %s26, 0
      %p200 = por %p198, %p199
      %s202 = sadd.s32 %s201, 1
      %p205 = scmp.eq.s32.totalorder %s20, 1
      %p206 = scmp.ne.s32.totalorder %s201, %s203
      %p207 = scmp.eq.s32.totalorder %s20, 0
      %p208 = por %p206, %p207
      %p209 = scmp.ne.s32.totalorder %s201, %s203
      %p210 = scmp.eq.s32.totalorder %s25, 1
      %p211 = por %p209, %p210
      %p212 = scmp.ne.s32.totalorder %s203, %s204
      %p213 = scmp.eq.s32.totalorder %s25, 0
      %p214 = por %p212, %p213
      %p215 = scmp.ne.s32.totalorder %s203, %s204
      %p216 = scmp.eq.s32.totalorder %s26, 1
      %p217 = por %p215, %p216
      %p219 = scmp.ne.s32.totalorder %s204, %s218
      %p220 = scmp.eq.s32.totalorder %s26, 0
      %p221 = por %p219, %p220
      %s222 = ssub.s32 %s20, %s27
      %p223 = scmp.eq.s32.totalorder %s222, 0
      %s225 = sadd.s32 %s224, 1
      %s226 = scalar_select %p223, %s224, %s225
      %p229 = pneg %p223
      %p230 = scmp.eq.s32.totalorder %s20, 1
      %p231 = por %p229, %p230
      %p232 = scmp.ne.s32.totalorder %s224, %s227
      %p233 = scmp.eq.s32.totalorder %s20, 0
      %p234 = por %p232, %p233
      %p235 = scmp.ne.s32.totalorder %s224, %s227
      %p236 = scmp.eq.s32.totalorder %s25, 1
      %p237 = por %p235, %p236
      %p238 = scmp.ne.s32.totalorder %s227, %s228
      %p239 = scmp.eq.s32.totalorder %s25, 0
      %p240 = por %p238, %p239
      %p241 = scmp.ne.s32.totalorder %s227, %s228
      %p242 = scmp.eq.s32.totalorder %s26, 1
      %p243 = por %p241, %p242
      %p245 = scmp.ne.s32.totalorder %s228, %s244
      %p246 = scmp.eq.s32.totalorder %s26, 0
      %p247 = por %p245, %p246
      %s248 = ssub.s32 %s20, %s27
      %p249 = scmp.eq.s32.totalorder %s248, 0
      %s251 = sadd.s32 %s250, 1
      %s252 = scalar_select %p249, %s250, %s251
      %p255 = pneg %p249
      %p256 = scmp.eq.s32.totalorder %s20, 1
      %p257 = por %p255, %p256
      %p258 = scmp.ne.s32.totalorder %s250, %s253
      %p259 = scmp.eq.s32.totalorder %s20, 0
      %p260 = por %p258, %p259
      %p261 = scmp.ne.s32.totalorder %s250, %s253
      %p262 = scmp.eq.s32.totalorder %s25, 1
      %p263 = por %p261, %p262
      %p264 = scmp.ne.s32.totalorder %s253, %s254
      %p265 = scmp.eq.s32.totalorder %s25, 0
      %p266 = por %p264, %p265
      %p267 = scmp.ne.s32.totalorder %s253, %s254
      %p268 = scmp.eq.s32.totalorder %s26, 1
      %p269 = por %p267, %p268
      %p271 = scmp.ne.s32.totalorder %s254, %s270
      %p272 = scmp.eq.s32.totalorder %s26, 0
      %p273 = por %p271, %p272
      %p274 = scmp.le.s32.totalorder 1, %s20
      %p275 = scmp.lt.s32.totalorder %s20, 3
      %p276 = pnand %p274, %p275
      %p277 = pneg %p276
      // Predicated region
      $region9: #{tpu_custom_call.1} parent=5 // pred_check
        _
      $region10: #{tpu_custom_call.1} parent=5 // pred_check_branch
        %279 = sbr.rel (%p276) target = $region12
      $region11: #{tpu_custom_call.1} parent=5 // pred_region
        %s280 = ssub.s32 %s20, 1
        // Predicated region
        $region13: #{tpu_custom_call.1} parent=11 // pred_check
          %p281 = pneg %p67
        $region14: #{tpu_custom_call.1} parent=11 // pred_check_branch
          %283 = sbr.rel (%p281) target = $region16
        $region15: #{tpu_custom_call.1} parent=11 // pred_region
          _
        $region16: #{tpu_custom_call.1} parent=11 // pred_fallthru
          _
        // Predicated region
        $region17: #{tpu_custom_call.1} parent=11 // pred_check
          %p284 = pneg %p88
        $region18: #{tpu_custom_call.1} parent=11 // pred_check_branch
          %286 = sbr.rel (%p284) target = $region20
        $region19: #{tpu_custom_call.1} parent=11 // pred_region
          _
        $region20: #{tpu_custom_call.1} parent=11 // pred_fallthru
          _
        // Predicated region
        $region21: #{tpu_custom_call.1} parent=11 // pred_check
          %p287 = pneg %p109
        $region22: #{tpu_custom_call.1} parent=11 // pred_check_branch
          %289 = sbr.rel (%p287) target = $region24
        $region23: #{tpu_custom_call.1} parent=11 // pred_region
          _
        $region24: #{tpu_custom_call.1} parent=11 // pred_fallthru
          _
        // Predicated region
        $region25: #{tpu_custom_call.1} parent=11 // pred_check
          %p290 = pneg %p130
        $region26: #{tpu_custom_call.1} parent=11 // pred_check_branch
          %292 = sbr.rel (%p290) target = $region28
        $region27: #{tpu_custom_call.1} parent=11 // pred_region
          _
        $region28: #{tpu_custom_call.1} parent=11 // pred_fallthru
          _
        // Predicated region
        $region29: #{tpu_custom_call.1} parent=11 // pred_check
          %p293 = pneg %p151
        $region30: #{tpu_custom_call.1} parent=11 // pred_check_branch
          %295 = sbr.rel (%p293) target = $region32
        $region31: #{tpu_custom_call.1} parent=11 // pred_region
          _
        $region32: #{tpu_custom_call.1} parent=11 // pred_fallthru
          _
        // Predicated region
        $region33: #{tpu_custom_call.1} parent=11 // pred_check
          %p296 = pneg %p172
        $region34: #{tpu_custom_call.1} parent=11 // pred_check_branch
          %298 = sbr.rel (%p296) target = $region36
        $region35: #{tpu_custom_call.1} parent=11 // pred_region
          _
        $region36: #{tpu_custom_call.1} parent=11 // pred_fallthru
          _
        // Predicated region
        $region37: #{tpu_custom_call.1} parent=11 // pred_check
          %p299 = pneg %p193
        $region38: #{tpu_custom_call.1} parent=11 // pred_check_branch
          %301 = sbr.rel (%p299) target = $region40
        $region39: #{tpu_custom_call.1} parent=11 // pred_region
          _
        $region40: #{tpu_custom_call.1} parent=11 // pred_fallthru
          _
        // Predicated region
        $region41: #{tpu_custom_call.1} parent=11 // pred_check
          %p302 = pneg %p214
        $region42: #{tpu_custom_call.1} parent=11 // pred_check_branch
          %304 = sbr.rel (%p302) target = $region44
        $region43: #{tpu_custom_call.1} parent=11 // pred_region
          _
        $region44: #{tpu_custom_call.1} parent=11 // pred_fallthru
          _
      $region12: #{tpu_custom_call.1} parent=5 // pred_fallthru
        _
      %p305 = scmp.lt.s32.totalorder %s20, 2
      // Predicated region
      $region45: #{tpu_custom_call.1} parent=5 // pred_check
        %p306 = pneg %p305
      $region46: #{tpu_custom_call.1} parent=5 // pred_check_branch
        %308 = sbr.rel (%p306) target = $region48
      $region47: #{tpu_custom_call.1} parent=5 // pred_region
        // Predicated region
        $region49: #{tpu_custom_call.1} parent=47 // pred_check
          %p309 = pneg %p40
        $region50: #{tpu_custom_call.1} parent=47 // pred_check_branch
          %311 = sbr.rel (%p309) target = $region52
        $region51: #{tpu_custom_call.1} parent=47 // pred_region
          %s312 = smul.u32 16, %s20
          %p313 = scmp.lt.s32.totalorder %s312, 31
          %s314 = scalar_select %p313, %s312, 31
          %s315 = smul.addr %s314, 8
          %s316 = scalar_lea.vmem %s0, %s315
          %s317 = smul.u32 16, %s20
        $region52: #{tpu_custom_call.1} parent=47 // pred_fallthru
          _
      $region48: #{tpu_custom_call.1} parent=5 // pred_fallthru
        _
      %p318 = scmp.le.s32.totalorder 1, %s20
      %p319 = scmp.lt.s32.totalorder %s20, 3
      %p320 = pnand %p318, %p319
      %p321 = pneg %p320
      // Predicated region
      $region53: #{tpu_custom_call.1} parent=5 // pred_check
        _
      $region54: #{tpu_custom_call.1} parent=5 // pred_check_branch
        %323 = sbr.rel (%p320) target = $region56
      $region55: #{tpu_custom_call.1} parent=5 // pred_region
        %s324 = ssub.s32 %s20, 1
        %s325 = smul.u32 16, %s25
        %p326 = scmp.lt.s32.totalorder %s325, 31
        %s327 = scalar_select %p326, %s325, 31
        %s328 = smul.addr %s327, 8
        %s329 = scalar_lea.vmem %s0, %s328
        %p330 = pneg %p46
        %p331 = pneg %p43
        %p332 = pneg %p67
        %p333 = pneg %p64
        %p334 = pneg %p88
        %p335 = pneg %p85
        %p336 = pneg %p109
        %p337 = pneg %p106
        %p338 = pneg %p130
        %p339 = pneg %p127
        %p340 = pneg %p151
        %p341 = pneg %p148
        %p342 = pneg %p172
        %p343 = pneg %p169
        %p344 = pneg %p193
        %p345 = pneg %p190
        %p346 = pneg %p214
        %p347 = pneg %p211
        %p348 = pneg %p240
        %p349 = pneg %p237
        %s350 = smul.u32 16, %s25
        %p351 = scmp.lt.s32.totalorder %s350, 31
        %s352 = scalar_select %p351, %s350, 31
        %s353 = smul.addr %s352, 8
        %s354 = scalar_lea.vmem %s9, %s353
        %p355 = pneg %p266
        %p356 = pneg %p263
        %s357 = sand.u32 %s253, 1
        %s358 = scalar_lea.sflag [#allocation3], %s357
        %s359 = sand.u32 %s253, 1
        %s360 = smul.addr %s359, 256
        %s361 = scalar_lea.vmem [#allocation2], %s360
        %s362 = smul.u32 16, %s25
        %p363 = scmp.lt.s32.totalorder %s362, 31
        %s364 = scalar_select %p363, %s362, 31
        %s365 = smul.addr %s364, 8
        %s366 = scalar_lea.vmem %s0, %s365
        %s367 = smul.u32 16, %s25
        %s368 = smul.u32 16, %s25
        %p369 = scmp.lt.s32.totalorder %s368, 31
        %s370 = scalar_select %p369, %s368, 31
        %s371 = smul.addr %s370, 8
        %s372 = scalar_lea.vmem %s9, %s371
        %s373 = smul.u32 16, %s25
        %s374 = smul.u32 8, %s25
        %v375 = vld [vmem:[%s366] sm:$0xff]
        %v376 = vld [vmem:[%s366 + $0x8] sm:$0xff]
        %v377 = vld [vmem:[%s366 + $0x10] sm:$0xff]
        %v378 = vld [vmem:[%s366 + $0x18] sm:$0xff]
        %v379 = vld [vmem:[%s366 + $0x20] sm:$0xff]
        %v380 = vld [vmem:[%s366 + $0x28] sm:$0xff]
        %v381 = vld [vmem:[%s366 + $0x30] sm:$0xff]
        %v382 = vld [vmem:[%s366 + $0x38] sm:$0xff]
        %v383 = vld [vmem:[%s366 + $0x40] sm:$0xff]
        %v384 = vld [vmem:[%s366 + $0x48] sm:$0xff]
        %v385 = vld [vmem:[%s366 + $0x50] sm:$0xff]
        %v386 = vld [vmem:[%s366 + $0x58] sm:$0xff]
        %v387 = vld [vmem:[%s366 + $0x60] sm:$0xff]
        %v388 = vld [vmem:[%s366 + $0x68] sm:$0xff]
        %v389 = vld [vmem:[%s366 + $0x70] sm:$0xff]
        %v390 = vld [vmem:[%s366 + $0x78] sm:$0xff]
        %v391 = vld [vmem:[%s1] sm:$0xff]
        %v392 = vld [vmem:[%s1 + $0x8] sm:$0xff]
        %v393 = vld [vmem:[%s1 + $0x10] sm:$0xff]
        %v394 = vld [vmem:[%s1 + $0x18] sm:$0xff]
        %v395 = vld [vmem:[%s1 + $0x20] sm:$0x1]
        %v396 = vld [vmem:[%s2] sm:$0xff]
        %v397 = vld [vmem:[%s2 + $0x8] sm:$0xff]
        %v398 = vld [vmem:[%s2 + $0x10] sm:$0xff]
        %v399 = vld [vmem:[%s2 + $0x18] sm:$0xff]
        %v400 = vld [vmem:[%s2 + $0x20] sm:$0xff]
        %v401 = vld [vmem:[%s2 + $0x28] sm:$0xff]
        %v402 = vld [vmem:[%s2 + $0x30] sm:$0xff]
        %v403 = vld [vmem:[%s2 + $0x38] sm:$0xff]
        %v404 = vld [vmem:[%s2 + $0x40] sm:$0xff]
        %v405 = vld [vmem:[%s2 + $0x48] sm:$0xff]
        %v406 = vld [vmem:[%s2 + $0x50] sm:$0xff]
        %v407 = vld [vmem:[%s2 + $0x58] sm:$0xff]
        %v408 = vld [vmem:[%s2 + $0x60] sm:$0xff]
        %v409 = vld [vmem:[%s2 + $0x68] sm:$0xff]
        %v410 = vld [vmem:[%s2 + $0x70] sm:$0xff]
        %v411 = vld [vmem:[%s2 + $0x78] sm:$0xff]
        %vm412 = vcmask 269312
        %v414 = vsel %vm412, %v375, 0
        %v417 = vsel %vm412, %v376, 0
        %v420 = vsel %vm412, %v377, 0
        %v423 = vsel %vm412, %v378, 0
        %v426 = vsel %vm412, %v379, 0
        %v429 = vsel %vm412, %v380, 0
        %v432 = vsel %vm412, %v381, 0
        %v435 = vsel %vm412, %v382, 0
        %v438 = vsel %vm412, %v383, 0
        %v441 = vsel %vm412, %v384, 0
        %v444 = vsel %vm412, %v385, 0
        %v447 = vsel %vm412, %v386, 0
        %v450 = vsel %vm412, %v387, 0
        %v453 = vsel %vm412, %v388, 0
        %v456 = vsel %vm412, %v389, 0
        %v459 = vsel %vm412, %v390, 0
        %vm461 = vcmask 1040384
        %v463 = vsel %vm461, %v395, 0
        %465 = vmatprep.subr.mxu0 0.0
        %466 = vmatpush1.msra.mxu0 %v391
        %467 = vmatprep.subr.mxu0 0.0
        %468 = vmatpush1.msra.mxu0 %v392
        %469 = vmatprep.subr.mxu0 0.0
        %470 = vmatpush1.msra.mxu0 %v393
        %471 = vmatprep.subr.mxu0 0.0
        %472 = vmatpush1.msra.mxu0 %v394
        %473 = vmatprep.subr.mxu0 0.0
        %474 = vmatpush1.msra.mxu0 %v463
        %475 = vmatprep.subr.mxu0 0.0
        %476 = vmatpush1.msra.mxu0 0.0
        %477 = vmatprep.subr.mxu0 0.0
        %478 = vmatpush1.msra.mxu0 0.0
        %479 = vmatprep.subr.mxu0 0.0
        %480 = vmatpush1.msra.mxu0 0.0
        %481 = vmatprep.subr.mxu0 0.0
        %482 = vmatpush1.msra.mxu0 0.0
        %483 = vmatprep.subr.mxu0 0.0
        %484 = vmatpush1.msra.mxu0 0.0
        %485 = vmatprep.subr.mxu0 0.0
        %486 = vmatpush1.msra.mxu0 0.0
        %487 = vmatprep.subr.mxu0 0.0
        %488 = vmatpush1.msra.mxu0 0.0
        %489 = vmatprep.subr.mxu0 0.0
        %490 = vmatpush1.msra.mxu0 0.0
        %491 = vmatprep.subr.mxu0 0.0
        %492 = vmatpush1.msra.mxu0 0.0
        %493 = vmatprep.subr.mxu0 0.0
        %494 = vmatpush1.msra.mxu0 0.0
        %495 = vmatprep.subr.mxu0 0.0
        %496 = vmatpush1.msra.mxu0 0.0
        %497 = vmatprep.subr.mxu0 0.0
        %498 = vmatpush1.msra.mxu0 0.0
        %499 = vmatprep.subr.mxu0 0.0
        %500 = vmatpush1.msra.mxu0 0.0
        %501 = vmatprep.subr.mxu0 0.0
        %502 = vmatpush1.msra.mxu0 0.0
        %503 = vmatprep.subr.mxu0 0.0
        %504 = vmatpush1.msra.mxu0 0.0
        %505 = vmatprep.subr.mxu0 0.0
        %506 = vmatpush1.msra.mxu0 0.0
        %507 = vmatprep.subr.mxu0 0.0
        %508 = vmatpush1.msra.mxu0 0.0
        %509 = vmatprep.subr.mxu0 0.0
        %510 = vmatpush1.msra.mxu0 0.0
        %511 = vmatprep.subr.mxu0 0.0
        %512 = vmatpush1.msra.mxu0 0.0
        %513 = vmatprep.subr.mxu0 0.0
        %514 = vmatpush1.msra.mxu0 0.0
        %515 = vmatprep.subr.mxu0 0.0
        %516 = vmatpush1.msra.mxu0 0.0
        %517 = vmatprep.subr.mxu0 0.0
        %518 = vmatpush1.msra.mxu0 0.0
        %519 = vmatprep.subr.mxu0 0.0
        %520 = vmatpush1.msra.mxu0 0.0
        %521 = vmatprep.subr.mxu0 0.0
        %522 = vmatpush1.msra.mxu0 0.0
        %523 = vmatprep.subr.mxu0 0.0
        %524 = vmatpush1.msra.mxu0 0.0
        %525 = vmatprep.subr.mxu0 0.0
        %526 = vmatpush1.msra.mxu0 0.0
        %527 = vmatprep.subr.mxu0 0.0
        %528 = vmatpush1.msra.mxu0 0.0
        %529 = vmatprep.mubr.f32.mxu0 0.0
        %530 = vmatmul.mubr.f32.gmra.mrb[0].mxu0 %v414
        %v531 = vpop.f32.mrb[0].mxu0
        %v532 = vadd.f32 %v396, %v531
        %v533 = vpop.f32.mrb[0].mxu0
        %534 = vmatprep.mubr.f32.mxu0 0.0
        %535 = vmatmul.mubr.f32.gmra.mrb[0].mxu0 %v417
        %v536 = vpop.f32.mrb[0].mxu0
        %v537 = vadd.f32 %v397, %v536
        %v538 = vpop.f32.mrb[0].mxu0
        %539 = vmatprep.mubr.f32.mxu0 0.0
        %540 = vmatmul.mubr.f32.gmra.mrb[0].mxu0 %v420
        %v541 = vpop.f32.mrb[0].mxu0
        %v542 = vadd.f32 %v398, %v541
        %v543 = vpop.f32.mrb[0].mxu0
        %544 = vmatprep.mubr.f32.mxu0 0.0
        %545 = vmatmul.mubr.f32.gmra.mrb[0].mxu0 %v423
        %v546 = vpop.f32.mrb[0].mxu0
        %v547 = vadd.f32 %v399, %v546
        %v548 = vpop.f32.mrb[0].mxu0
        %549 = vmatprep.mubr.f32.mxu0 0.0
        %550 = vmatmul.mubr.f32.gmra.mrb[0].mxu0 %v426
        %v551 = vpop.f32.mrb[0].mxu0
        %v552 = vadd.f32 %v400, %v551
        %v553 = vpop.f32.mrb[0].mxu0
        %554 = vmatprep.mubr.f32.mxu0 0.0
        %555 = vmatmul.mubr.f32.gmra.mrb[0].mxu0 %v429
        %v556 = vpop.f32.mrb[0].mxu0
        %v557 = vadd.f32 %v401, %v556
        %v558 = vpop.f32.mrb[0].mxu0
        %559 = vmatprep.mubr.f32.mxu0 0.0
        %560 = vmatmul.mubr.f32.gmra.mrb[0].mxu0 %v432
        %v561 = vpop.f32.mrb[0].mxu0
        %v562 = vadd.f32 %v402, %v561
        %v563 = vpop.f32.mrb[0].mxu0
        %564 = vmatprep.mubr.f32.mxu0 0.0
        %565 = vmatmul.mubr.f32.gmra.mrb[0].mxu0 %v435
        %v566 = vpop.f32.mrb[0].mxu0
        %v567 = vadd.f32 %v403, %v566
        %v568 = vpop.f32.mrb[0].mxu0
        %569 = vmatprep.mubr.f32.mxu0 0.0
        %570 = vmatmul.mubr.f32.gmra.mrb[0].mxu0 %v438
        %v571 = vpop.f32.mrb[0].mxu0
        %v572 = vadd.f32 %v404, %v571
        %v573 = vpop.f32.mrb[0].mxu0
        %574 = vmatprep.mubr.f32.mxu0 0.0
        %575 = vmatmul.mubr.f32.gmra.mrb[0].mxu0 %v441
        %v576 = vpop.f32.mrb[0].mxu0
        %v577 = vadd.f32 %v405, %v576
        %v578 = vpop.f32.mrb[0].mxu0
        %579 = vmatprep.mubr.f32.mxu0 0.0
        %580 = vmatmul.mubr.f32.gmra.mrb[0].mxu0 %v444
        %v581 = vpop.f32.mrb[0].mxu0
        %v582 = vadd.f32 %v406, %v581
        %v583 = vpop.f32.mrb[0].mxu0
        %584 = vmatprep.mubr.f32.mxu0 0.0
        %585 = vmatmul.mubr.f32.gmra.mrb[0].mxu0 %v447
        %v586 = vpop.f32.mrb[0].mxu0
        %v587 = vadd.f32 %v407, %v586
        %v588 = vpop.f32.mrb[0].mxu0
        %589 = vmatprep.mubr.f32.mxu0 0.0
        %590 = vmatmul.mubr.f32.gmra.mrb[0].mxu0 %v450
        %v591 = vpop.f32.mrb[0].mxu0
        %v592 = vadd.f32 %v408, %v591
        %v593 = vpop.f32.mrb[0].mxu0
        %594 = vmatprep.mubr.f32.mxu0 0.0
        %595 = vmatmul.mubr.f32.gmra.mrb[0].mxu0 %v453
        %v596 = vpop.f32.mrb[0].mxu0
        %v597 = vadd.f32 %v409, %v596
        %v598 = vpop.f32.mrb[0].mxu0
        %599 = vmatprep.mubr.f32.mxu0 0.0
        %600 = vmatmul.mubr.f32.gmra.mrb[0].mxu0 %v456
        %v601 = vpop.f32.mrb[0].mxu0
        %v602 = vadd.f32 %v410, %v601
        %v603 = vpop.f32.mrb[0].mxu0
        %604 = vmatprep.mubr.f32.mxu0 0.0
        %605 = vmatmul.mubr.f32.gmra.mrb[0].mxu0 %v459
        %v606 = vpop.f32.mrb[0].mxu0
        %v607 = vadd.f32 %v411, %v606
        %v608 = vpop.f32.mrb[0].mxu0
        %609 = vdwg.mxu0
        %v610 = vlaneseq
        %v611 = vand.u32 %v610, 127
        %vm612 = vcmp.ge.s32.totalorder %v611, 15
        %v613 = vsel %vm612, -1e+09, 0.0
        %v614 = vld [vmem:[%s3] sm:$0xff]
        %v615 = vld [vmem:[%s3 + $0x8] sm:$0xff]
        %v616 = vld [vmem:[%s3 + $0x10] sm:$0xff]
        %v617 = vld [vmem:[%s3 + $0x18] sm:$0xff]
        %v618 = vld [vmem:[%s3 + $0x20] sm:$0xff]
        %v619 = vld [vmem:[%s3 + $0x28] sm:$0xff]
        %v620 = vld [vmem:[%s3 + $0x30] sm:$0xff]
        %v621 = vld [vmem:[%s3 + $0x38] sm:$0xff]
        %vm622 = vcmask 523264
        %v624 = vsel %vm622, %v532, 0
        %v627 = vsel %vm622, %v537, 0
        %v630 = vsel %vm622, %v542, 0
        %v633 = vsel %vm622, %v547, 0
        %v636 = vsel %vm622, %v552, 0
        %v639 = vsel %vm622, %v557, 0
        %v642 = vsel %vm622, %v562, 0
        %v645 = vsel %vm622, %v567, 0
        %v648 = vsel %vm622, %v572, 0
        %v651 = vsel %vm622, %v577, 0
        %v654 = vsel %vm622, %v582, 0
        %v657 = vsel %vm622, %v587, 0
        %v660 = vsel %vm622, %v592, 0
        %v663 = vsel %vm622, %v597, 0
        %v666 = vsel %vm622, %v602, 0
        %v669 = vsel %vm622, %v607, 0
        %671 = vmatprep.subr.mxu0 0.0
        %672 = vmatpush1.msra.mxu0 %v614
        %673 = vmatprep.subr.mxu0 0.0
        %674 = vmatpush1.msra.mxu0 %v615
        %675 = vmatprep.subr.mxu0 0.0
        %676 = vmatpush1.msra.mxu0 %v616
        %677 = vmatprep.subr.mxu0 0.0
        %678 = vmatpush1.msra.mxu0 %v617
        %679 = vmatprep.subr.mxu0 0.0
        %680 = vmatpush1.msra.mxu0 %v618
        %681 = vmatprep.subr.mxu0 0.0
        %682 = vmatpush1.msra.mxu0 %v619
        %683 = vmatprep.subr.mxu0 0.0
        %684 = vmatpush1.msra.mxu0 %v620
        %685 = vmatprep.subr.mxu0 0.0
        %686 = vmatpush1.msra.mxu0 %v621
        %687 = vmatprep.subr.mxu0 0.0
        %688 = vmatpush1.msra.mxu0 0.0
        %689 = vmatprep.subr.mxu0 0.0
        %690 = vmatpush1.msra.mxu0 0.0
        %691 = vmatprep.subr.mxu0 0.0
        %692 = vmatpush1.msra.mxu0 0.0
        %693 = vmatprep.subr.mxu0 0.0
        %694 = vmatpush1.msra.mxu0 0.0
        %695 = vmatprep.subr.mxu0 0.0
        %696 = vmatpush1.msra.mxu0 0.0
        %697 = vmatprep.subr.mxu0 0.0
        %698 = vmatpush1.msra.mxu0 0.0
        %699 = vmatprep.subr.mxu0 0.0
        %700 = vmatpush1.msra.mxu0 0.0
        %701 = vmatprep.subr.mxu0 0.0
        %702 = vmatpush1.msra.mxu0 0.0
        %703 = vmatprep.subr.mxu0 0.0
        %704 = vmatpush1.msra.mxu0 0.0
        %705 = vmatprep.subr.mxu0 0.0
        %706 = vmatpush1.msra.mxu0 0.0
        %707 = vmatprep.subr.mxu0 0.0
        %708 = vmatpush1.msra.mxu0 0.0
        %709 = vmatprep.subr.mxu0 0.0
        %710 = vmatpush1.msra.mxu0 0.0
        %711 = vmatprep.subr.mxu0 0.0
        %712 = vmatpush1.msra.mxu0 0.0
        %713 = vmatprep.subr.mxu0 0.0
        %714 = vmatpush1.msra.mxu0 0.0
        %715 = vmatprep.subr.mxu0 0.0
        %716 = vmatpush1.msra.mxu0 0.0
        %717 = vmatprep.subr.mxu0 0.0
        %718 = vmatpush1.msra.mxu0 0.0
        %719 = vmatprep.subr.mxu0 0.0
        %720 = vmatpush1.msra.mxu0 0.0
        %721 = vmatprep.subr.mxu0 0.0
        %722 = vmatpush1.msra.mxu0 0.0
        %723 = vmatprep.subr.mxu0 0.0
        %724 = vmatpush1.msra.mxu0 0.0
        %725 = vmatprep.subr.mxu0 0.0
        %726 = vmatpush1.msra.mxu0 0.0
        %727 = vmatprep.subr.mxu0 0.0
        %728 = vmatpush1.msra.mxu0 0.0
        %729 = vmatprep.subr.mxu0 0.0
        %730 = vmatpush1.msra.mxu0 0.0
        %731 = vmatprep.subr.mxu0 0.0
        %732 = vmatpush1.msra.mxu0 0.0
        %733 = vmatprep.subr.mxu0 0.0
        %734 = vmatpush1.msra.mxu0 0.0
        %735 = vmatprep.mubr.f32.mxu0 0.0
        %736 = vmatmul.mubr.f32.gmra.mrb[0].mxu0 %v624
        %v737 = vpop.f32.mrb[0].mxu0
        %v738 = vadd.f32 0.0, %v737
        %v739 = vpop.f32.mrb[0].mxu0
        %740 = vmatprep.mubr.f32.mxu0 0.0
        %741 = vmatmul.mubr.f32.gmra.mrb[0].mxu0 %v627
        %v742 = vpop.f32.mrb[0].mxu0
        %v743 = vadd.f32 0.0, %v742
        %v744 = vpop.f32.mrb[0].mxu0
        %745 = vmatprep.mubr.f32.mxu0 0.0
        %746 = vmatmul.mubr.f32.gmra.mrb[0].mxu0 %v630
        %v747 = vpop.f32.mrb[0].mxu0
        %v748 = vadd.f32 0.0, %v747
        %v749 = vpop.f32.mrb[0].mxu0
        %750 = vmatprep.mubr.f32.mxu0 0.0
        %751 = vmatmul.mubr.f32.gmra.mrb[0].mxu0 %v633
        %v752 = vpop.f32.mrb[0].mxu0
        %v753 = vadd.f32 0.0, %v752
        %v754 = vpop.f32.mrb[0].mxu0
        %755 = vmatprep.mubr.f32.mxu0 0.0
        %756 = vmatmul.mubr.f32.gmra.mrb[0].mxu0 %v636
        %v757 = vpop.f32.mrb[0].mxu0
        %v758 = vadd.f32 0.0, %v757
        %v759 = vpop.f32.mrb[0].mxu0
        %760 = vmatprep.mubr.f32.mxu0 0.0
        %761 = vmatmul.mubr.f32.gmra.mrb[0].mxu0 %v639
        %v762 = vpop.f32.mrb[0].mxu0
        %v763 = vadd.f32 0.0, %v762
        %v764 = vpop.f32.mrb[0].mxu0
        %765 = vmatprep.mubr.f32.mxu0 0.0
        %766 = vmatmul.mubr.f32.gmra.mrb[0].mxu0 %v642
        %v767 = vpop.f32.mrb[0].mxu0
        %v768 = vadd.f32 0.0, %v767
        %v769 = vpop.f32.mrb[0].mxu0
        %770 = vmatprep.mubr.f32.mxu0 0.0
        %771 = vmatmul.mubr.f32.gmra.mrb[0].mxu0 %v645
        %v772 = vpop.f32.mrb[0].mxu0
        %v773 = vadd.f32 0.0, %v772
        %v774 = vpop.f32.mrb[0].mxu0
        %775 = vmatprep.mubr.f32.mxu0 0.0
        %776 = vmatmul.mubr.f32.gmra.mrb[0].mxu0 %v648
        %v777 = vpop.f32.mrb[0].mxu0
        %v778 = vadd.f32 0.0, %v777
        %v779 = vpop.f32.mrb[0].mxu0
        %780 = vmatprep.mubr.f32.mxu0 0.0
        %781 = vmatmul.mubr.f32.gmra.mrb[0].mxu0 %v651
        %v782 = vpop.f32.mrb[0].mxu0
        %v783 = vadd.f32 0.0, %v782
        %v784 = vpop.f32.mrb[0].mxu0
        %785 = vmatprep.mubr.f32.mxu0 0.0
        %786 = vmatmul.mubr.f32.gmra.mrb[0].mxu0 %v654
        %v787 = vpop.f32.mrb[0].mxu0
        %v788 = vadd.f32 0.0, %v787
        %v789 = vpop.f32.mrb[0].mxu0
        %790 = vmatprep.mubr.f32.mxu0 0.0
        %791 = vmatmul.mubr.f32.gmra.mrb[0].mxu0 %v657
        %v792 = vpop.f32.mrb[0].mxu0
        %v793 = vadd.f32 0.0, %v792
        %v794 = vpop.f32.mrb[0].mxu0
        %795 = vmatprep.mubr.f32.mxu0 0.0
        %796 = vmatmul.mubr.f32.gmra.mrb[0].mxu0 %v660
        %v797 = vpop.f32.mrb[0].mxu0
        %v798 = vadd.f32 0.0, %v797
        %v799 = vpop.f32.mrb[0].mxu0
        %800 = vmatprep.mubr.f32.mxu0 0.0
        %801 = vmatmul.mubr.f32.gmra.mrb[0].mxu0 %v663
        %v802 = vpop.f32.mrb[0].mxu0
        %v803 = vadd.f32 0.0, %v802
        %v804 = vpop.f32.mrb[0].mxu0
        %805 = vmatprep.mubr.f32.mxu0 0.0
        %806 = vmatmul.mubr.f32.gmra.mrb[0].mxu0 %v666
        %v807 = vpop.f32.mrb[0].mxu0
        %v808 = vadd.f32 0.0, %v807
        %v809 = vpop.f32.mrb[0].mxu0
        %810 = vmatprep.mubr.f32.mxu0 0.0
        %811 = vmatmul.mubr.f32.gmra.mrb[0].mxu0 %v669
        %v812 = vpop.f32.mrb[0].mxu0
        %v813 = vadd.f32 0.0, %v812
        %v814 = vpop.f32.mrb[0].mxu0
        %815 = vdwg.mxu0
        %v816 = vld [vmem:[%s4] sm:$0xff]
        %v817 = vld [vmem:[%s4 + $0x8] sm:$0xff]
        %v818 = vld [vmem:[%s4 + $0x10] sm:$0xff]
        %v819 = vld [vmem:[%s4 + $0x18] sm:$0xff]
        %v820 = vld [vmem:[%s4 + $0x20] sm:$0xff]
        %v821 = vld [vmem:[%s4 + $0x28] sm:$0xff]
        %v822 = vld [vmem:[%s4 + $0x30] sm:$0xff]
        %v823 = vld [vmem:[%s4 + $0x38] sm:$0xff]
        %824 = vmatprep.subr.mxu0 0.0
        %825 = vmatpush1.msra.mxu0 %v816
        %826 = vmatprep.subr.mxu0 0.0
        %827 = vmatpush1.msra.mxu0 %v817
        %828 = vmatprep.subr.mxu0 0.0
        %829 = vmatpush1.msra.mxu0 %v818
        %830 = vmatprep.subr.mxu0 0.0
        %831 = vmatpush1.msra.mxu0 %v819
        %832 = vmatprep.subr.mxu0 0.0
        %833 = vmatpush1.msra.mxu0 %v820
        %834 = vmatprep.subr.mxu0 0.0
        %835 = vmatpush1.msra.mxu0 %v821
        %836 = vmatprep.subr.mxu0 0.0
        %837 = vmatpush1.msra.mxu0 %v822
        %838 = vmatprep.subr.mxu0 0.0
        %839 = vmatpush1.msra.mxu0 %v823
        %840 = vmatprep.subr.mxu0 0.0
        %841 = vmatpush1.msra.mxu0 0.0
        %842 = vmatprep.subr.mxu0 0.0
        %843 = vmatpush1.msra.mxu0 0.0
        %844 = vmatprep.subr.mxu0 0.0
        %845 = vmatpush1.msra.mxu0 0.0
        %846 = vmatprep.subr.mxu0 0.0
        %847 = vmatpush1.msra.mxu0 0.0
        %848 = vmatprep.subr.mxu0 0.0
        %849 = vmatpush1.msra.mxu0 0.0
        %850 = vmatprep.subr.mxu0 0.0
        %851 = vmatpush1.msra.mxu0 0.0
        %852 = vmatprep.subr.mxu0 0.0
        %853 = vmatpush1.msra.mxu0 0.0
        %854 = vmatprep.subr.mxu0 0.0
        %855 = vmatpush1.msra.mxu0 0.0
        %856 = vmatprep.subr.mxu0 0.0
        %857 = vmatpush1.msra.mxu0 0.0
        %858 = vmatprep.subr.mxu0 0.0
        %859 = vmatpush1.msra.mxu0 0.0
        %860 = vmatprep.subr.mxu0 0.0
        %861 = vmatpush1.msra.mxu0 0.0
        %862 = vmatprep.subr.mxu0 0.0
        %863 = vmatpush1.msra.mxu0 0.0
        %864 = vmatprep.subr.mxu0 0.0
        %865 = vmatpush1.msra.mxu0 0.0
        %866 = vmatprep.subr.mxu0 0.0
        %867 = vmatpush1.msra.mxu0 0.0
        %868 = vmatprep.subr.mxu0 0.0
        %869 = vmatpush1.msra.mxu0 0.0
        %870 = vmatprep.subr.mxu0 0.0
        %871 = vmatpush1.msra.mxu0 0.0
        %872 = vmatprep.subr.mxu0 0.0
        %873 = vmatpush1.msra.mxu0 0.0
        %874 = vmatprep.subr.mxu0 0.0
        %875 = vmatpush1.msra.mxu0 0.0
        %876 = vmatprep.subr.mxu0 0.0
        %877 = vmatpush1.msra.mxu0 0.0
        %878 = vmatprep.subr.mxu0 0.0
        %879 = vmatpush1.msra.mxu0 0.0
        %880 = vmatprep.subr.mxu0 0.0
        %881 = vmatpush1.msra.mxu0 0.0
        %882 = vmatprep.subr.mxu0 0.0
        %883 = vmatpush1.msra.mxu0 0.0
        %884 = vmatprep.subr.mxu0 0.0
        %885 = vmatpush1.msra.mxu0 0.0
        %886 = vmatprep.subr.mxu0 0.0
        %887 = vmatpush1.msra.mxu0 0.0
        %888 = vmatprep.mubr.f32.mxu0 0.0
        %889 = vmatmul.mubr.f32.gmra.mrb[0].mxu0 %v624
        %v890 = vpop.f32.mrb[0].mxu0
        %v891 = vadd.f32 0.0, %v890
        %v892 = vpop.f32.mrb[0].mxu0
        %893 = vmatprep.mubr.f32.mxu0 0.0
        %894 = vmatmul.mubr.f32.gmra.mrb[0].mxu0 %v627
        %v895 = vpop.f32.mrb[0].mxu0
        %v896 = vadd.f32 0.0, %v895
        %v897 = vpop.f32.mrb[0].mxu0
        %898 = vmatprep.mubr.f32.mxu0 0.0
        %899 = vmatmul.mubr.f32.gmra.mrb[0].mxu0 %v630
        %v900 = vpop.f32.mrb[0].mxu0
        %v901 = vadd.f32 0.0, %v900
        %v902 = vpop.f32.mrb[0].mxu0
        %903 = vmatprep.mubr.f32.mxu0 0.0
        %904 = vmatmul.mubr.f32.gmra.mrb[0].mxu0 %v633
        %v905 = vpop.f32.mrb[0].mxu0
        %v906 = vadd.f32 0.0, %v905
        %v907 = vpop.f32.mrb[0].mxu0
        %908 = vmatprep.mubr.f32.mxu0 0.0
        %909 = vmatmul.mubr.f32.gmra.mrb[0].mxu0 %v636
        %v910 = vpop.f32.mrb[0].mxu0
        %v911 = vadd.f32 0.0, %v910
        %v912 = vpop.f32.mrb[0].mxu0
        %913 = vmatprep.mubr.f32.mxu0 0.0
        %914 = vmatmul.mubr.f32.gmra.mrb[0].mxu0 %v639
        %v915 = vpop.f32.mrb[0].mxu0
        %v916 = vadd.f32 0.0, %v915
        %v917 = vpop.f32.mrb[0].mxu0
        %918 = vmatprep.mubr.f32.mxu0 0.0
        %919 = vmatmul.mubr.f32.gmra.mrb[0].mxu0 %v642
        %v920 = vpop.f32.mrb[0].mxu0
        %v921 = vadd.f32 0.0, %v920
        %v922 = vpop.f32.mrb[0].mxu0
        %923 = vmatprep.mubr.f32.mxu0 0.0
        %924 = vmatmul.mubr.f32.gmra.mrb[0].mxu0 %v645
        %v925 = vpop.f32.mrb[0].mxu0
        %v926 = vadd.f32 0.0, %v925
        %v927 = vpop.f32.mrb[0].mxu0
        %928 = vmatprep.mubr.f32.mxu0 0.0
        %929 = vmatmul.mubr.f32.gmra.mrb[0].mxu0 %v648
        %v930 = vpop.f32.mrb[0].mxu0
        %v931 = vadd.f32 0.0, %v930
        %v932 = vpop.f32.mrb[0].mxu0
        %933 = vmatprep.mubr.f32.mxu0 0.0
        %934 = vmatmul.mubr.f32.gmra.mrb[0].mxu0 %v651
        %v935 = vpop.f32.mrb[0].mxu0
        %v936 = vadd.f32 0.0, %v935
        %v937 = vpop.f32.mrb[0].mxu0
        %938 = vmatprep.mubr.f32.mxu0 0.0
        %939 = vmatmul.mubr.f32.gmra.mrb[0].mxu0 %v654
        %v940 = vpop.f32.mrb[0].mxu0
        %v941 = vadd.f32 0.0, %v940
        %v942 = vpop.f32.mrb[0].mxu0
        %943 = vmatprep.mubr.f32.mxu0 0.0
        %944 = vmatmul.mubr.f32.gmra.mrb[0].mxu0 %v657
        %v945 = vpop.f32.mrb[0].mxu0
        %v946 = vadd.f32 0.0, %v945
        %v947 = vpop.f32.mrb[0].mxu0
        %948 = vmatprep.mubr.f32.mxu0 0.0
        %949 = vmatmul.mubr.f32.gmra.mrb[0].mxu0 %v660
        %v950 = vpop.f32.mrb[0].mxu0
        %v951 = vadd.f32 0.0, %v950
        %v952 = vpop.f32.mrb[0].mxu0
        %953 = vmatprep.mubr.f32.mxu0 0.0
        %954 = vmatmul.mubr.f32.gmra.mrb[0].mxu0 %v663
        %v955 = vpop.f32.mrb[0].mxu0
        %v956 = vadd.f32 0.0, %v955
        %v957 = vpop.f32.mrb[0].mxu0
        %958 = vmatprep.mubr.f32.mxu0 0.0
        %959 = vmatmul.mubr.f32.gmra.mrb[0].mxu0 %v666
        %v960 = vpop.f32.mrb[0].mxu0
        %v961 = vadd.f32 0.0, %v960
        %v962 = vpop.f32.mrb[0].mxu0
        %963 = vmatprep.mubr.f32.mxu0 0.0
        %964 = vmatmul.mubr.f32.gmra.mrb[0].mxu0 %v669
        %v965 = vpop.f32.mrb[0].mxu0
        %v966 = vadd.f32 0.0, %v965
        %v967 = vpop.f32.mrb[0].mxu0
        %968 = vdwg.mxu0
        %v969 = vld [vmem:[%s5] sm:$0xff]
        %v970 = vld [vmem:[%s5 + $0x8] sm:$0xff]
        %v971 = vld [vmem:[%s5 + $0x10] sm:$0xff]
        %v972 = vld [vmem:[%s5 + $0x18] sm:$0xff]
        %v973 = vld [vmem:[%s5 + $0x20] sm:$0xff]
        %v974 = vld [vmem:[%s5 + $0x28] sm:$0xff]
        %v975 = vld [vmem:[%s5 + $0x30] sm:$0xff]
        %v976 = vld [vmem:[%s5 + $0x38] sm:$0xff]
        %977 = vmatprep.subr.mxu0 0.0
        %978 = vmatpush1.msra.mxu0 %v969
        %979 = vmatprep.subr.mxu0 0.0
        %980 = vmatpush1.msra.mxu0 %v970
        %981 = vmatprep.subr.mxu0 0.0
        %982 = vmatpush1.msra.mxu0 %v971
        %983 = vmatprep.subr.mxu0 0.0
        %984 = vmatpush1.msra.mxu0 %v972
        %985 = vmatprep.subr.mxu0 0.0
        %986 = vmatpush1.msra.mxu0 %v973
        %987 = vmatprep.subr.mxu0 0.0
        %988 = vmatpush1.msra.mxu0 %v974
        %989 = vmatprep.subr.mxu0 0.0
        %990 = vmatpush1.msra.mxu0 %v975
        %991 = vmatprep.subr.mxu0 0.0
        %992 = vmatpush1.msra.mxu0 %v976
        %993 = vmatprep.subr.mxu0 0.0
        %994 = vmatpush1.msra.mxu0 0.0
        %995 = vmatprep.subr.mxu0 0.0
        %996 = vmatpush1.msra.mxu0 0.0
        %997 = vmatprep.subr.mxu0 0.0
        %998 = vmatpush1.msra.mxu0 0.0
        %999 = vmatprep.subr.mxu0 0.0
        %1000 = vmatpush1.msra.mxu0 0.0
        %1001 = vmatprep.subr.mxu0 0.0
        %1002 = vmatpush1.msra.mxu0 0.0
        %1003 = vmatprep.subr.mxu0 0.0
        %1004 = vmatpush1.msra.mxu0 0.0
        %1005 = vmatprep.subr.mxu0 0.0
        %1006 = vmatpush1.msra.mxu0 0.0
        %1007 = vmatprep.subr.mxu0 0.0
        %1008 = vmatpush1.msra.mxu0 0.0
        %1009 = vmatprep.subr.mxu0 0.0
        %1010 = vmatpush1.msra.mxu0 0.0
        %1011 = vmatprep.subr.mxu0 0.0
        %1012 = vmatpush1.msra.mxu0 0.0
        %1013 = vmatprep.subr.mxu0 0.0
        %1014 = vmatpush1.msra.mxu0 0.0
        %1015 = vmatprep.subr.mxu0 0.0
        %1016 = vmatpush1.msra.mxu0 0.0
        %1017 = vmatprep.subr.mxu0 0.0
        %1018 = vmatpush1.msra.mxu0 0.0
        %1019 = vmatprep.subr.mxu0 0.0
        %1020 = vmatpush1.msra.mxu0 0.0
        %1021 = vmatprep.subr.mxu0 0.0
        %1022 = vmatpush1.msra.mxu0 0.0
        %1023 = vmatprep.subr.mxu0 0.0
        %1024 = vmatpush1.msra.mxu0 0.0
        %1025 = vmatprep.subr.mxu0 0.0
        %1026 = vmatpush1.msra.mxu0 0.0
        %1027 = vmatprep.subr.mxu0 0.0
        %1028 = vmatpush1.msra.mxu0 0.0
        %1029 = vmatprep.subr.mxu0 0.0
        %1030 = vmatpush1.msra.mxu0 0.0
        %1031 = vmatprep.subr.mxu0 0.0
        %1032 = vmatpush1.msra.mxu0 0.0
        %1033 = vmatprep.subr.mxu0 0.0
        %1034 = vmatpush1.msra.mxu0 0.0
        %1035 = vmatprep.subr.mxu0 0.0
        %1036 = vmatpush1.msra.mxu0 0.0
        %1037 = vmatprep.subr.mxu0 0.0
        %1038 = vmatpush1.msra.mxu0 0.0
        %1039 = vmatprep.subr.mxu0 0.0
        %1040 = vmatpush1.msra.mxu0 0.0
        %1041 = vmatprep.mubr.f32.mxu0 0.0
        %1042 = vmatmul.mubr.f32.gmra.mrb[0].mxu0 %v624
        %v1043 = vpop.f32.mrb[0].mxu0
        %v1044 = vadd.f32 0.0, %v1043
        %v1045 = vpop.f32.mrb[0].mxu0
        %1046 = vmatprep.mubr.f32.mxu0 0.0
        %1047 = vmatmul.mubr.f32.gmra.mrb[0].mxu0 %v627
        %v1048 = vpop.f32.mrb[0].mxu0
        %v1049 = vadd.f32 0.0, %v1048
        %v1050 = vpop.f32.mrb[0].mxu0
        %1051 = vmatprep.mubr.f32.mxu0 0.0
        %1052 = vmatmul.mubr.f32.gmra.mrb[0].mxu0 %v630
        %v1053 = vpop.f32.mrb[0].mxu0
        %v1054 = vadd.f32 0.0, %v1053
        %v1055 = vpop.f32.mrb[0].mxu0
        %1056 = vmatprep.mubr.f32.mxu0 0.0
        %1057 = vmatmul.mubr.f32.gmra.mrb[0].mxu0 %v633
        %v1058 = vpop.f32.mrb[0].mxu0
        %v1059 = vadd.f32 0.0, %v1058
        %v1060 = vpop.f32.mrb[0].mxu0
        %1061 = vmatprep.mubr.f32.mxu0 0.0
        %1062 = vmatmul.mubr.f32.gmra.mrb[0].mxu0 %v636
        %v1063 = vpop.f32.mrb[0].mxu0
        %v1064 = vadd.f32 0.0, %v1063
        %v1065 = vpop.f32.mrb[0].mxu0
        %1066 = vmatprep.mubr.f32.mxu0 0.0
        %1067 = vmatmul.mubr.f32.gmra.mrb[0].mxu0 %v639
        %v1068 = vpop.f32.mrb[0].mxu0
        %v1069 = vadd.f32 0.0, %v1068
        %v1070 = vpop.f32.mrb[0].mxu0
        %1071 = vmatprep.mubr.f32.mxu0 0.0
        %1072 = vmatmul.mubr.f32.gmra.mrb[0].mxu0 %v642
        %v1073 = vpop.f32.mrb[0].mxu0
        %v1074 = vadd.f32 0.0, %v1073
        %v1075 = vpop.f32.mrb[0].mxu0
        %1076 = vmatprep.mubr.f32.mxu0 0.0
        %1077 = vmatmul.mubr.f32.gmra.mrb[0].mxu0 %v645
        %v1078 = vpop.f32.mrb[0].mxu0
        %v1079 = vadd.f32 0.0, %v1078
        %v1080 = vpop.f32.mrb[0].mxu0
        %1081 = vmatprep.mubr.f32.mxu0 0.0
        %1082 = vmatmul.mubr.f32.gmra.mrb[0].mxu0 %v648
        %v1083 = vpop.f32.mrb[0].mxu0
        %v1084 = vadd.f32 0.0, %v1083
        %v1085 = vpop.f32.mrb[0].mxu0
        %1086 = vmatprep.mubr.f32.mxu0 0.0
        %1087 = vmatmul.mubr.f32.gmra.mrb[0].mxu0 %v651
        %v1088 = vpop.f32.mrb[0].mxu0
        %v1089 = vadd.f32 0.0, %v1088
        %v1090 = vpop.f32.mrb[0].mxu0
        %1091 = vmatprep.mubr.f32.mxu0 0.0
        %1092 = vmatmul.mubr.f32.gmra.mrb[0].mxu0 %v654
        %v1093 = vpop.f32.mrb[0].mxu0
        %v1094 = vadd.f32 0.0, %v1093
        %v1095 = vpop.f32.mrb[0].mxu0
        %1096 = vmatprep.mubr.f32.mxu0 0.0
        %1097 = vmatmul.mubr.f32.gmra.mrb[0].mxu0 %v657
        %v1098 = vpop.f32.mrb[0].mxu0
        %v1099 = vadd.f32 0.0, %v1098
        %v1100 = vpop.f32.mrb[0].mxu0
        %1101 = vmatprep.mubr.f32.mxu0 0.0
        %1102 = vmatmul.mubr.f32.gmra.mrb[0].mxu0 %v660
        %v1103 = vpop.f32.mrb[0].mxu0
        %v1104 = vadd.f32 0.0, %v1103
        %v1105 = vpop.f32.mrb[0].mxu0
        %1106 = vmatprep.mubr.f32.mxu0 0.0
        %1107 = vmatmul.mubr.f32.gmra.mrb[0].mxu0 %v663
        %v1108 = vpop.f32.mrb[0].mxu0
        %v1109 = vadd.f32 0.0, %v1108
        %v1110 = vpop.f32.mrb[0].mxu0
        %1111 = vmatprep.mubr.f32.mxu0 0.0
        %1112 = vmatmul.mubr.f32.gmra.mrb[0].mxu0 %v666
        %v1113 = vpop.f32.mrb[0].mxu0
        %v1114 = vadd.f32 0.0, %v1113
        %v1115 = vpop.f32.mrb[0].mxu0
        %1116 = vmatprep.mubr.f32.mxu0 0.0
        %1117 = vmatmul.mubr.f32.gmra.mrb[0].mxu0 %v669
        %v1118 = vpop.f32.mrb[0].mxu0
        %v1119 = vadd.f32 0.0, %v1118
        %v1120 = vpop.f32.mrb[0].mxu0
        %1121 = vdwg.mxu0
        %v1123 = vsel %vm622, %v738, 0
        %v1126 = vsel %vm622, %v743, 0
        %v1129 = vsel %vm622, %v891, 0
        %v1132 = vsel %vm622, %v896, 0
        %1134 = vmatprep.subr.mxu0 0.0
        %1135 = vmatpush1.xpose.msra.mxu0 %v1129
        %1136 = vmatprep.subr.mxu0 0.0
        %1137 = vmatpush1.xpose.msra.mxu0 %v1132
        %1138 = vmatprep.subr.mxu0 0.0
        %1139 = vmatpush1.xpose.msra.mxu0 0.0
        %1140 = vmatprep.subr.mxu0 0.0
        %1141 = vmatpush1.xpose.msra.mxu0 0.0
        %1142 = vmatprep.subr.mxu0 0.0
        %1143 = vmatpush1.xpose.msra.mxu0 0.0
        %1144 = vmatprep.subr.mxu0 0.0
        %1145 = vmatpush1.xpose.msra.mxu0 0.0
        %1146 = vmatprep.subr.mxu0 0.0
        %1147 = vmatpush1.xpose.msra.mxu0 0.0
        %1148 = vmatprep.subr.mxu0 0.0
        %1149 = vmatpush1.xpose.msra.mxu0 0.0
        %1150 = vmatprep.subr.mxu0 0.0
        %1151 = vmatpush1.xpose.msra.mxu0 0.0
        %1152 = vmatprep.subr.mxu0 0.0
        %1153 = vmatpush1.xpose.msra.mxu0 0.0
        %1154 = vmatprep.subr.mxu0 0.0
        %1155 = vmatpush1.xpose.msra.mxu0 0.0
        %1156 = vmatprep.subr.mxu0 0.0
        %1157 = vmatpush1.xpose.msra.mxu0 0.0
        %1158 = vmatprep.subr.mxu0 0.0
        %1159 = vmatpush1.xpose.msra.mxu0 0.0
        %1160 = vmatprep.subr.mxu0 0.0
        %1161 = vmatpush1.xpose.msra.mxu0 0.0
        %1162 = vmatprep.subr.mxu0 0.0
        %1163 = vmatpush1.xpose.msra.mxu0 0.0
        %1164 = vmatprep.subr.mxu0 0.0
        %1165 = vmatpush1.xpose.msra.mxu0 0.0
        %1166 = vmatprep.subr.mxu0 0.0
        %1167 = vmatpush1.xpose.msra.mxu0 0.0
        %1168 = vmatprep.subr.mxu0 0.0
        %1169 = vmatpush1.xpose.msra.mxu0 0.0
        %1170 = vmatprep.subr.mxu0 0.0
        %1171 = vmatpush1.xpose.msra.mxu0 0.0
        %1172 = vmatprep.subr.mxu0 0.0
        %1173 = vmatpush1.xpose.msra.mxu0 0.0
        %1174 = vmatprep.subr.mxu0 0.0
        %1175 = vmatpush1.xpose.msra.mxu0 0.0
        %1176 = vmatprep.subr.mxu0 0.0
        %1177 = vmatpush1.xpose.msra.mxu0 0.0
        %1178 = vmatprep.subr.mxu0 0.0
        %1179 = vmatpush1.xpose.msra.mxu0 0.0
        %1180 = vmatprep.subr.mxu0 0.0
        %1181 = vmatpush1.xpose.msra.mxu0 0.0
        %1182 = vmatprep.subr.mxu0 0.0
        %1183 = vmatpush1.xpose.msra.mxu0 0.0
        %1184 = vmatprep.subr.mxu0 0.0
        %1185 = vmatpush1.xpose.msra.mxu0 0.0
        %1186 = vmatprep.subr.mxu0 0.0
        %1187 = vmatpush1.xpose.msra.mxu0 0.0
        %1188 = vmatprep.subr.mxu0 0.0
        %1189 = vmatpush1.xpose.msra.mxu0 0.0
        %1190 = vmatprep.subr.mxu0 0.0
        %1191 = vmatpush1.xpose.msra.mxu0 0.0
        %1192 = vmatprep.subr.mxu0 0.0
        %1193 = vmatpush1.xpose.msra.mxu0 0.0
        %1194 = vmatprep.subr.mxu0 0.0
        %1195 = vmatpush1.xpose.msra.mxu0 0.0
        %1196 = vmatprep.subr.mxu0 0.0
        %1197 = vmatpush1.xpose.msra.mxu0 0.0
        %1198 = vmatprep.mubr.f32.mxu0 0.0
        %1199 = vmatmul.mubr.f32.gmra.mrb[0].mxu0 %v1123
        %v1200 = vpop.f32.mrb[0].mxu0
        %v1201 = vadd.f32 0.0, %v1200
        %v1202 = vpop.f32.mrb[0].mxu0
        %1203 = vmatprep.mubr.f32.mxu0 0.0
        %1204 = vmatmul.mubr.f32.gmra.mrb[0].mxu0 %v1126
        %v1205 = vpop.f32.mrb[0].mxu0
        %v1206 = vadd.f32 0.0, %v1205
        %v1207 = vpop.f32.mrb[0].mxu0
        %1208 = vdwg.mxu0
        %v1210 = vsel %vm622, %v748, 0
        %v1213 = vsel %vm622, %v753, 0
        %v1216 = vsel %vm622, %v901, 0
        %v1219 = vsel %vm622, %v906, 0
        %1221 = vmatprep.subr.mxu0 0.0
        %1222 = vmatpush1.xpose.msra.mxu0 %v1216
        %1223 = vmatprep.subr.mxu0 0.0
        %1224 = vmatpush1.xpose.msra.mxu0 %v1219
        %1225 = vmatprep.subr.mxu0 0.0
        %1226 = vmatpush1.xpose.msra.mxu0 0.0
        %1227 = vmatprep.subr.mxu0 0.0
        %1228 = vmatpush1.xpose.msra.mxu0 0.0
        %1229 = vmatprep.subr.mxu0 0.0
        %1230 = vmatpush1.xpose.msra.mxu0 0.0
        %1231 = vmatprep.subr.mxu0 0.0
        %1232 = vmatpush1.xpose.msra.mxu0 0.0
        %1233 = vmatprep.subr.mxu0 0.0
        %1234 = vmatpush1.xpose.msra.mxu0 0.0
        %1235 = vmatprep.subr.mxu0 0.0
        %1236 = vmatpush1.xpose.msra.mxu0 0.0
        %1237 = vmatprep.subr.mxu0 0.0
        %1238 = vmatpush1.xpose.msra.mxu0 0.0
        %1239 = vmatprep.subr.mxu0 0.0
        %1240 = vmatpush1.xpose.msra.mxu0 0.0
        %1241 = vmatprep.subr.mxu0 0.0
        %1242 = vmatpush1.xpose.msra.mxu0 0.0
        %1243 = vmatprep.subr.mxu0 0.0
        %1244 = vmatpush1.xpose.msra.mxu0 0.0
        %1245 = vmatprep.subr.mxu0 0.0
        %1246 = vmatpush1.xpose.msra.mxu0 0.0
        %1247 = vmatprep.subr.mxu0 0.0
        %1248 = vmatpush1.xpose.msra.mxu0 0.0
        %1249 = vmatprep.subr.mxu0 0.0
        %1250 = vmatpush1.xpose.msra.mxu0 0.0
        %1251 = vmatprep.subr.mxu0 0.0
        %1252 = vmatpush1.xpose.msra.mxu0 0.0
        %1253 = vmatprep.subr.mxu0 0.0
        %1254 = vmatpush1.xpose.msra.mxu0 0.0
        %1255 = vmatprep.subr.mxu0 0.0
        %1256 = vmatpush1.xpose.msra.mxu0 0.0
        %1257 = vmatprep.subr.mxu0 0.0
        %1258 = vmatpush1.xpose.msra.mxu0 0.0
        %1259 = vmatprep.subr.mxu0 0.0
        %1260 = vmatpush1.xpose.msra.mxu0 0.0
        %1261 = vmatprep.subr.mxu0 0.0
        %1262 = vmatpush1.xpose.msra.mxu0 0.0
        %1263 = vmatprep.subr.mxu0 0.0
        %1264 = vmatpush1.xpose.msra.mxu0 0.0
        %1265 = vmatprep.subr.mxu0 0.0
        %1266 = vmatpush1.xpose.msra.mxu0 0.0
        %1267 = vmatprep.subr.mxu0 0.0
        %1268 = vmatpush1.xpose.msra.mxu0 0.0
        %1269 = vmatprep.subr.mxu0 0.0
        %1270 = vmatpush1.xpose.msra.mxu0 0.0
        %1271 = vmatprep.subr.mxu0 0.0
        %1272 = vmatpush1.xpose.msra.mxu0 0.0
        %1273 = vmatprep.subr.mxu0 0.0
        %1274 = vmatpush1.xpose.msra.mxu0 0.0
        %1275 = vmatprep.subr.mxu0 0.0
        %1276 = vmatpush1.xpose.msra.mxu0 0.0
        %1277 = vmatprep.subr.mxu0 0.0
        %1278 = vmatpush1.xpose.msra.mxu0 0.0
        %1279 = vmatprep.subr.mxu0 0.0
        %1280 = vmatpush1.xpose.msra.mxu0 0.0
        %1281 = vmatprep.subr.mxu0 0.0
        %1282 = vmatpush1.xpose.msra.mxu0 0.0
        %1283 = vmatprep.subr.mxu0 0.0
        %1284 = vmatpush1.xpose.msra.mxu0 0.0
        %1285 = vmatprep.mubr.f32.mxu0 0.0
        %1286 = vmatmul.mubr.f32.gmra.mrb[0].mxu0 %v1210
        %v1287 = vpop.f32.mrb[0].mxu0
        %v1288 = vadd.f32 0.0, %v1287
        %v1289 = vpop.f32.mrb[0].mxu0
        %1290 = vmatprep.mubr.f32.mxu0 0.0
        %1291 = vmatmul.mubr.f32.gmra.mrb[0].mxu0 %v1213
        %v1292 = vpop.f32.mrb[0].mxu0
        %v1293 = vadd.f32 0.0, %v1292
        %v1294 = vpop.f32.mrb[0].mxu0
        %1295 = vdwg.mxu0
        %v1297 = vsel %vm622, %v758, 0
        %v1300 = vsel %vm622, %v763, 0
        %v1303 = vsel %vm622, %v911, 0
        %v1306 = vsel %vm622, %v916, 0
        %1308 = vmatprep.subr.mxu0 0.0
        %1309 = vmatpush1.xpose.msra.mxu0 %v1303
        %1310 = vmatprep.subr.mxu0 0.0
        %1311 = vmatpush1.xpose.msra.mxu0 %v1306
        %1312 = vmatprep.subr.mxu0 0.0
        %1313 = vmatpush1.xpose.msra.mxu0 0.0
        %1314 = vmatprep.subr.mxu0 0.0
        %1315 = vmatpush1.xpose.msra.mxu0 0.0
        %1316 = vmatprep.subr.mxu0 0.0
        %1317 = vmatpush1.xpose.msra.mxu0 0.0
        %1318 = vmatprep.subr.mxu0 0.0
        %1319 = vmatpush1.xpose.msra.mxu0 0.0
        %1320 = vmatprep.subr.mxu0 0.0
        %1321 = vmatpush1.xpose.msra.mxu0 0.0
        %1322 = vmatprep.subr.mxu0 0.0
        %1323 = vmatpush1.xpose.msra.mxu0 0.0
        %1324 = vmatprep.subr.mxu0 0.0
        %1325 = vmatpush1.xpose.msra.mxu0 0.0
        %1326 = vmatprep.subr.mxu0 0.0
        %1327 = vmatpush1.xpose.msra.mxu0 0.0
        %1328 = vmatprep.subr.mxu0 0.0
        %1329 = vmatpush1.xpose.msra.mxu0 0.0
        %1330 = vmatprep.subr.mxu0 0.0
        %1331 = vmatpush1.xpose.msra.mxu0 0.0
        %1332 = vmatprep.subr.mxu0 0.0
        %1333 = vmatpush1.xpose.msra.mxu0 0.0
        %1334 = vmatprep.subr.mxu0 0.0
        %1335 = vmatpush1.xpose.msra.mxu0 0.0
        %1336 = vmatprep.subr.mxu0 0.0
        %1337 = vmatpush1.xpose.msra.mxu0 0.0
        %1338 = vmatprep.subr.mxu0 0.0
        %1339 = vmatpush1.xpose.msra.mxu0 0.0
        %1340 = vmatprep.subr.mxu0 0.0
        %1341 = vmatpush1.xpose.msra.mxu0 0.0
        %1342 = vmatprep.subr.mxu0 0.0
        %1343 = vmatpush1.xpose.msra.mxu0 0.0
        %1344 = vmatprep.subr.mxu0 0.0
        %1345 = vmatpush1.xpose.msra.mxu0 0.0
        %1346 = vmatprep.subr.mxu0 0.0
        %1347 = vmatpush1.xpose.msra.mxu0 0.0
        %1348 = vmatprep.subr.mxu0 0.0
        %1349 = vmatpush1.xpose.msra.mxu0 0.0
        %1350 = vmatprep.subr.mxu0 0.0
        %1351 = vmatpush1.xpose.msra.mxu0 0.0
        %1352 = vmatprep.subr.mxu0 0.0
        %1353 = vmatpush1.xpose.msra.mxu0 0.0
        %1354 = vmatprep.subr.mxu0 0.0
        %1355 = vmatpush1.xpose.msra.mxu0 0.0
        %1356 = vmatprep.subr.mxu0 0.0
        %1357 = vmatpush1.xpose.msra.mxu0 0.0
        %1358 = vmatprep.subr.mxu0 0.0
        %1359 = vmatpush1.xpose.msra.mxu0 0.0
        %1360 = vmatprep.subr.mxu0 0.0
        %1361 = vmatpush1.xpose.msra.mxu0 0.0
        %1362 = vmatprep.subr.mxu0 0.0
        %1363 = vmatpush1.xpose.msra.mxu0 0.0
        %1364 = vmatprep.subr.mxu0 0.0
        %1365 = vmatpush1.xpose.msra.mxu0 0.0
        %1366 = vmatprep.subr.mxu0 0.0
        %1367 = vmatpush1.xpose.msra.mxu0 0.0
        %1368 = vmatprep.subr.mxu0 0.0
        %1369 = vmatpush1.xpose.msra.mxu0 0.0
        %1370 = vmatprep.subr.mxu0 0.0
        %1371 = vmatpush1.xpose.msra.mxu0 0.0
        %1372 = vmatprep.mubr.f32.mxu0 0.0
        %1373 = vmatmul.mubr.f32.gmra.mrb[0].mxu0 %v1297
        %v1374 = vpop.f32.mrb[0].mxu0
        %v1375 = vadd.f32 0.0, %v1374
        %v1376 = vpop.f32.mrb[0].mxu0
        %1377 = vmatprep.mubr.f32.mxu0 0.0
        %1378 = vmatmul.mubr.f32.gmra.mrb[0].mxu0 %v1300
        %v1379 = vpop.f32.mrb[0].mxu0
        %v1380 = vadd.f32 0.0, %v1379
        %v1381 = vpop.f32.mrb[0].mxu0
        %1382 = vdwg.mxu0
        %v1384 = vsel %vm622, %v768, 0
        %v1387 = vsel %vm622, %v773, 0
        %v1390 = vsel %vm622, %v921, 0
        %v1393 = vsel %vm622, %v926, 0
        %1395 = vmatprep.subr.mxu0 0.0
        %1396 = vmatpush1.xpose.msra.mxu0 %v1390
        %1397 = vmatprep.subr.mxu0 0.0
        %1398 = vmatpush1.xpose.msra.mxu0 %v1393
        %1399 = vmatprep.subr.mxu0 0.0
        %1400 = vmatpush1.xpose.msra.mxu0 0.0
        %1401 = vmatprep.subr.mxu0 0.0
        %1402 = vmatpush1.xpose.msra.mxu0 0.0
        %1403 = vmatprep.subr.mxu0 0.0
        %1404 = vmatpush1.xpose.msra.mxu0 0.0
        %1405 = vmatprep.subr.mxu0 0.0
        %1406 = vmatpush1.xpose.msra.mxu0 0.0
        %1407 = vmatprep.subr.mxu0 0.0
        %1408 = vmatpush1.xpose.msra.mxu0 0.0
        %1409 = vmatprep.subr.mxu0 0.0
        %1410 = vmatpush1.xpose.msra.mxu0 0.0
        %1411 = vmatprep.subr.mxu0 0.0
        %1412 = vmatpush1.xpose.msra.mxu0 0.0
        %1413 = vmatprep.subr.mxu0 0.0
        %1414 = vmatpush1.xpose.msra.mxu0 0.0
        %1415 = vmatprep.subr.mxu0 0.0
        %1416 = vmatpush1.xpose.msra.mxu0 0.0
        %1417 = vmatprep.subr.mxu0 0.0
        %1418 = vmatpush1.xpose.msra.mxu0 0.0
        %1419 = vmatprep.subr.mxu0 0.0
        %1420 = vmatpush1.xpose.msra.mxu0 0.0
        %1421 = vmatprep.subr.mxu0 0.0
        %1422 = vmatpush1.xpose.msra.mxu0 0.0
        %1423 = vmatprep.subr.mxu0 0.0
        %1424 = vmatpush1.xpose.msra.mxu0 0.0
        %1425 = vmatprep.subr.mxu0 0.0
        %1426 = vmatpush1.xpose.msra.mxu0 0.0
        %1427 = vmatprep.subr.mxu0 0.0
        %1428 = vmatpush1.xpose.msra.mxu0 0.0
        %1429 = vmatprep.subr.mxu0 0.0
        %1430 = vmatpush1.xpose.msra.mxu0 0.0
        %1431 = vmatprep.subr.mxu0 0.0
        %1432 = vmatpush1.xpose.msra.mxu0 0.0
        %1433 = vmatprep.subr.mxu0 0.0
        %1434 = vmatpush1.xpose.msra.mxu0 0.0
        %1435 = vmatprep.subr.mxu0 0.0
        %1436 = vmatpush1.xpose.msra.mxu0 0.0
        %1437 = vmatprep.subr.mxu0 0.0
        %1438 = vmatpush1.xpose.msra.mxu0 0.0
        %1439 = vmatprep.subr.mxu0 0.0
        %1440 = vmatpush1.xpose.msra.mxu0 0.0
        %1441 = vmatprep.subr.mxu0 0.0
        %1442 = vmatpush1.xpose.msra.mxu0 0.0
        %1443 = vmatprep.subr.mxu0 0.0
        %1444 = vmatpush1.xpose.msra.mxu0 0.0
        %1445 = vmatprep.subr.mxu0 0.0
        %1446 = vmatpush1.xpose.msra.mxu0 0.0
        %1447 = vmatprep.subr.mxu0 0.0
        %1448 = vmatpush1.xpose.msra.mxu0 0.0
        %1449 = vmatprep.subr.mxu0 0.0
        %1450 = vmatpush1.xpose.msra.mxu0 0.0
        %1451 = vmatprep.subr.mxu0 0.0
        %1452 = vmatpush1.xpose.msra.mxu0 0.0
        %1453 = vmatprep.subr.mxu0 0.0
        %1454 = vmatpush1.xpose.msra.mxu0 0.0
        %1455 = vmatprep.subr.mxu0 0.0
        %1456 = vmatpush1.xpose.msra.mxu0 0.0
        %1457 = vmatprep.subr.mxu0 0.0
        %1458 = vmatpush1.xpose.msra.mxu0 0.0
        %1459 = vmatprep.mubr.f32.mxu0 0.0
        %1460 = vmatmul.mubr.f32.gmra.mrb[0].mxu0 %v1384
        %v1461 = vpop.f32.mrb[0].mxu0
        %v1462 = vadd.f32 0.0, %v1461
        %v1463 = vpop.f32.mrb[0].mxu0
        %1464 = vmatprep.mubr.f32.mxu0 0.0
        %1465 = vmatmul.mubr.f32.gmra.mrb[0].mxu0 %v1387
        %v1466 = vpop.f32.mrb[0].mxu0
        %v1467 = vadd.f32 0.0, %v1466
        %v1468 = vpop.f32.mrb[0].mxu0
        %1469 = vdwg.mxu0
        %v1471 = vsel %vm622, %v778, 0
        %v1474 = vsel %vm622, %v783, 0
        %v1477 = vsel %vm622, %v931, 0
        %v1480 = vsel %vm622, %v936, 0
        %1482 = vmatprep.subr.mxu0 0.0
        %1483 = vmatpush1.xpose.msra.mxu0 %v1477
        %1484 = vmatprep.subr.mxu0 0.0
        %1485 = vmatpush1.xpose.msra.mxu0 %v1480
        %1486 = vmatprep.subr.mxu0 0.0
        %1487 = vmatpush1.xpose.msra.mxu0 0.0
        %1488 = vmatprep.subr.mxu0 0.0
        %1489 = vmatpush1.xpose.msra.mxu0 0.0
        %1490 = vmatprep.subr.mxu0 0.0
        %1491 = vmatpush1.xpose.msra.mxu0 0.0
        %1492 = vmatprep.subr.mxu0 0.0
        %1493 = vmatpush1.xpose.msra.mxu0 0.0
        %1494 = vmatprep.subr.mxu0 0.0
        %1495 = vmatpush1.xpose.msra.mxu0 0.0
        %1496 = vmatprep.subr.mxu0 0.0
        %1497 = vmatpush1.xpose.msra.mxu0 0.0
        %1498 = vmatprep.subr.mxu0 0.0
        %1499 = vmatpush1.xpose.msra.mxu0 0.0
        %1500 = vmatprep.subr.mxu0 0.0
        %1501 = vmatpush1.xpose.msra.mxu0 0.0
        %1502 = vmatprep.subr.mxu0 0.0
        %1503 = vmatpush1.xpose.msra.mxu0 0.0
        %1504 = vmatprep.subr.mxu0 0.0
        %1505 = vmatpush1.xpose.msra.mxu0 0.0
        %1506 = vmatprep.subr.mxu0 0.0
        %1507 = vmatpush1.xpose.msra.mxu0 0.0
        %1508 = vmatprep.subr.mxu0 0.0
        %1509 = vmatpush1.xpose.msra.mxu0 0.0
        %1510 = vmatprep.subr.mxu0 0.0
        %1511 = vmatpush1.xpose.msra.mxu0 0.0
        %1512 = vmatprep.subr.mxu0 0.0
        %1513 = vmatpush1.xpose.msra.mxu0 0.0
        %1514 = vmatprep.subr.mxu0 0.0
        %1515 = vmatpush1.xpose.msra.mxu0 0.0
        %1516 = vmatprep.subr.mxu0 0.0
        %1517 = vmatpush1.xpose.msra.mxu0 0.0
        %1518 = vmatprep.subr.mxu0 0.0
        %1519 = vmatpush1.xpose.msra.mxu0 0.0
        %1520 = vmatprep.subr.mxu0 0.0
        %1521 = vmatpush1.xpose.msra.mxu0 0.0
        %1522 = vmatprep.subr.mxu0 0.0
        %1523 = vmatpush1.xpose.msra.mxu0 0.0
        %1524 = vmatprep.subr.mxu0 0.0
        %1525 = vmatpush1.xpose.msra.mxu0 0.0
        %1526 = vmatprep.subr.mxu0 0.0
        %1527 = vmatpush1.xpose.msra.mxu0 0.0
        %1528 = vmatprep.subr.mxu0 0.0
        %1529 = vmatpush1.xpose.msra.mxu0 0.0
        %1530 = vmatprep.subr.mxu0 0.0
        %1531 = vmatpush1.xpose.msra.mxu0 0.0
        %1532 = vmatprep.subr.mxu0 0.0
        %1533 = vmatpush1.xpose.msra.mxu0 0.0
        %1534 = vmatprep.subr.mxu0 0.0
        %1535 = vmatpush1.xpose.msra.mxu0 0.0
        %1536 = vmatprep.subr.mxu0 0.0
        %1537 = vmatpush1.xpose.msra.mxu0 0.0
        %1538 = vmatprep.subr.mxu0 0.0
        %1539 = vmatpush1.xpose.msra.mxu0 0.0
        %1540 = vmatprep.subr.mxu0 0.0
        %1541 = vmatpush1.xpose.msra.mxu0 0.0
        %1542 = vmatprep.subr.mxu0 0.0
        %1543 = vmatpush1.xpose.msra.mxu0 0.0
        %1544 = vmatprep.subr.mxu0 0.0
        %1545 = vmatpush1.xpose.msra.mxu0 0.0
        %1546 = vmatprep.mubr.f32.mxu0 0.0
        %1547 = vmatmul.mubr.f32.gmra.mrb[0].mxu0 %v1471
        %v1548 = vpop.f32.mrb[0].mxu0
        %v1549 = vadd.f32 0.0, %v1548
        %v1550 = vpop.f32.mrb[0].mxu0
        %1551 = vmatprep.mubr.f32.mxu0 0.0
        %1552 = vmatmul.mubr.f32.gmra.mrb[0].mxu0 %v1474
        %v1553 = vpop.f32.mrb[0].mxu0
        %v1554 = vadd.f32 0.0, %v1553
        %v1555 = vpop.f32.mrb[0].mxu0
        %1556 = vdwg.mxu0
        %v1558 = vsel %vm622, %v788, 0
        %v1561 = vsel %vm622, %v793, 0
        %v1564 = vsel %vm622, %v941, 0
        %v1567 = vsel %vm622, %v946, 0
        %1569 = vmatprep.subr.mxu0 0.0
        %1570 = vmatpush1.xpose.msra.mxu0 %v1564
        %1571 = vmatprep.subr.mxu0 0.0
        %1572 = vmatpush1.xpose.msra.mxu0 %v1567
        %1573 = vmatprep.subr.mxu0 0.0
        %1574 = vmatpush1.xpose.msra.mxu0 0.0
        %1575 = vmatprep.subr.mxu0 0.0
        %1576 = vmatpush1.xpose.msra.mxu0 0.0
        %1577 = vmatprep.subr.mxu0 0.0
        %1578 = vmatpush1.xpose.msra.mxu0 0.0
        %1579 = vmatprep.subr.mxu0 0.0
        %1580 = vmatpush1.xpose.msra.mxu0 0.0
        %1581 = vmatprep.subr.mxu0 0.0
        %1582 = vmatpush1.xpose.msra.mxu0 0.0
        %1583 = vmatprep.subr.mxu0 0.0
        %1584 = vmatpush1.xpose.msra.mxu0 0.0
        %1585 = vmatprep.subr.mxu0 0.0
        %1586 = vmatpush1.xpose.msra.mxu0 0.0
        %1587 = vmatprep.subr.mxu0 0.0
        %1588 = vmatpush1.xpose.msra.mxu0 0.0
        %1589 = vmatprep.subr.mxu0 0.0
        %1590 = vmatpush1.xpose.msra.mxu0 0.0
        %1591 = vmatprep.subr.mxu0 0.0
        %1592 = vmatpush1.xpose.msra.mxu0 0.0
        %1593 = vmatprep.subr.mxu0 0.0
        %1594 = vmatpush1.xpose.msra.mxu0 0.0
        %1595 = vmatprep.subr.mxu0 0.0
        %1596 = vmatpush1.xpose.msra.mxu0 0.0
        %1597 = vmatprep.subr.mxu0 0.0
        %1598 = vmatpush1.xpose.msra.mxu0 0.0
        %1599 = vmatprep.subr.mxu0 0.0
        %1600 = vmatpush1.xpose.msra.mxu0 0.0
        %1601 = vmatprep.subr.mxu0 0.0
        %1602 = vmatpush1.xpose.msra.mxu0 0.0
        %1603 = vmatprep.subr.mxu0 0.0
        %1604 = vmatpush1.xpose.msra.mxu0 0.0
        %1605 = vmatprep.subr.mxu0 0.0
        %1606 = vmatpush1.xpose.msra.mxu0 0.0
        %1607 = vmatprep.subr.mxu0 0.0
        %1608 = vmatpush1.xpose.msra.mxu0 0.0
        %1609 = vmatprep.subr.mxu0 0.0
        %1610 = vmatpush1.xpose.msra.mxu0 0.0
        %1611 = vmatprep.subr.mxu0 0.0
        %1612 = vmatpush1.xpose.msra.mxu0 0.0
        %1613 = vmatprep.subr.mxu0 0.0
        %1614 = vmatpush1.xpose.msra.mxu0 0.0
        %1615 = vmatprep.subr.mxu0 0.0
        %1616 = vmatpush1.xpose.msra.mxu0 0.0
        %1617 = vmatprep.subr.mxu0 0.0
        %1618 = vmatpush1.xpose.msra.mxu0 0.0
        %1619 = vmatprep.subr.mxu0 0.0
        %1620 = vmatpush1.xpose.msra.mxu0 0.0
        %1621 = vmatprep.subr.mxu0 0.0
        %1622 = vmatpush1.xpose.msra.mxu0 0.0
        %1623 = vmatprep.subr.mxu0 0.0
        %1624 = vmatpush1.xpose.msra.mxu0 0.0
        %1625 = vmatprep.subr.mxu0 0.0
        %1626 = vmatpush1.xpose.msra.mxu0 0.0
        %1627 = vmatprep.subr.mxu0 0.0
        %1628 = vmatpush1.xpose.msra.mxu0 0.0
        %1629 = vmatprep.subr.mxu0 0.0
        %1630 = vmatpush1.xpose.msra.mxu0 0.0
        %1631 = vmatprep.subr.mxu0 0.0
        %1632 = vmatpush1.xpose.msra.mxu0 0.0
        %1633 = vmatprep.mubr.f32.mxu0 0.0
        %1634 = vmatmul.mubr.f32.gmra.mrb[0].mxu0 %v1558
        %v1635 = vpop.f32.mrb[0].mxu0
        %v1636 = vadd.f32 0.0, %v1635
        %v1637 = vpop.f32.mrb[0].mxu0
        %1638 = vmatprep.mubr.f32.mxu0 0.0
        %1639 = vmatmul.mubr.f32.gmra.mrb[0].mxu0 %v1561
        %v1640 = vpop.f32.mrb[0].mxu0
        %v1641 = vadd.f32 0.0, %v1640
        %v1642 = vpop.f32.mrb[0].mxu0
        %1643 = vdwg.mxu0
        %v1645 = vsel %vm622, %v798, 0
        %v1648 = vsel %vm622, %v803, 0
        %v1651 = vsel %vm622, %v951, 0
        %v1654 = vsel %vm622, %v956, 0
        %1656 = vmatprep.subr.mxu0 0.0
        %1657 = vmatpush1.xpose.msra.mxu0 %v1651
        %1658 = vmatprep.subr.mxu0 0.0
        %1659 = vmatpush1.xpose.msra.mxu0 %v1654
        %1660 = vmatprep.subr.mxu0 0.0
        %1661 = vmatpush1.xpose.msra.mxu0 0.0
        %1662 = vmatprep.subr.mxu0 0.0
        %1663 = vmatpush1.xpose.msra.mxu0 0.0
        %1664 = vmatprep.subr.mxu0 0.0
        %1665 = vmatpush1.xpose.msra.mxu0 0.0
        %1666 = vmatprep.subr.mxu0 0.0
        %1667 = vmatpush1.xpose.msra.mxu0 0.0
        %1668 = vmatprep.subr.mxu0 0.0
        %1669 = vmatpush1.xpose.msra.mxu0 0.0
        %1670 = vmatprep.subr.mxu0 0.0
        %1671 = vmatpush1.xpose.msra.mxu0 0.0
        %1672 = vmatprep.subr.mxu0 0.0
        %1673 = vmatpush1.xpose.msra.mxu0 0.0
        %1674 = vmatprep.subr.mxu0 0.0
        %1675 = vmatpush1.xpose.msra.mxu0 0.0
        %1676 = vmatprep.subr.mxu0 0.0
        %1677 = vmatpush1.xpose.msra.mxu0 0.0
        %1678 = vmatprep.subr.mxu0 0.0
        %1679 = vmatpush1.xpose.msra.mxu0 0.0
        %1680 = vmatprep.subr.mxu0 0.0
        %1681 = vmatpush1.xpose.msra.mxu0 0.0
        %1682 = vmatprep.subr.mxu0 0.0
        %1683 = vmatpush1.xpose.msra.mxu0 0.0
        %1684 = vmatprep.subr.mxu0 0.0
        %1685 = vmatpush1.xpose.msra.mxu0 0.0
        %1686 = vmatprep.subr.mxu0 0.0
        %1687 = vmatpush1.xpose.msra.mxu0 0.0
        %1688 = vmatprep.subr.mxu0 0.0
        %1689 = vmatpush1.xpose.msra.mxu0 0.0
        %1690 = vmatprep.subr.mxu0 0.0
        %1691 = vmatpush1.xpose.msra.mxu0 0.0
        %1692 = vmatprep.subr.mxu0 0.0
        %1693 = vmatpush1.xpose.msra.mxu0 0.0
        %1694 = vmatprep.subr.mxu0 0.0
        %1695 = vmatpush1.xpose.msra.mxu0 0.0
        %1696 = vmatprep.subr.mxu0 0.0
        %1697 = vmatpush1.xpose.msra.mxu0 0.0
        %1698 = vmatprep.subr.mxu0 0.0
        %1699 = vmatpush1.xpose.msra.mxu0 0.0
        %1700 = vmatprep.subr.mxu0 0.0
        %1701 = vmatpush1.xpose.msra.mxu0 0.0
        %1702 = vmatprep.subr.mxu0 0.0
        %1703 = vmatpush1.xpose.msra.mxu0 0.0
        %1704 = vmatprep.subr.mxu0 0.0
        %1705 = vmatpush1.xpose.msra.mxu0 0.0
        %1706 = vmatprep.subr.mxu0 0.0
        %1707 = vmatpush1.xpose.msra.mxu0 0.0
        %1708 = vmatprep.subr.mxu0 0.0
        %1709 = vmatpush1.xpose.msra.mxu0 0.0
        %1710 = vmatprep.subr.mxu0 0.0
        %1711 = vmatpush1.xpose.msra.mxu0 0.0
        %1712 = vmatprep.subr.mxu0 0.0
        %1713 = vmatpush1.xpose.msra.mxu0 0.0
        %1714 = vmatprep.subr.mxu0 0.0
        %1715 = vmatpush1.xpose.msra.mxu0 0.0
        %1716 = vmatprep.subr.mxu0 0.0
        %1717 = vmatpush1.xpose.msra.mxu0 0.0
        %1718 = vmatprep.subr.mxu0 0.0
        %1719 = vmatpush1.xpose.msra.mxu0 0.0
        %1720 = vmatprep.mubr.f32.mxu0 0.0
        %1721 = vmatmul.mubr.f32.gmra.mrb[0].mxu0 %v1645
        %v1722 = vpop.f32.mrb[0].mxu0
        %v1723 = vadd.f32 0.0, %v1722
        %v1724 = vpop.f32.mrb[0].mxu0
        %1725 = vmatprep.mubr.f32.mxu0 0.0
        %1726 = vmatmul.mubr.f32.gmra.mrb[0].mxu0 %v1648
        %v1727 = vpop.f32.mrb[0].mxu0
        %v1728 = vadd.f32 0.0, %v1727
        %v1729 = vpop.f32.mrb[0].mxu0
        %1730 = vdwg.mxu0
        %v1732 = vsel %vm622, %v808, 0
        %v1735 = vsel %vm622, %v813, 0
        %v1738 = vsel %vm622, %v961, 0
        %v1741 = vsel %vm622, %v966, 0
        %1743 = vmatprep.subr.mxu0 0.0
        %1744 = vmatpush1.xpose.msra.mxu0 %v1738
        %1745 = vmatprep.subr.mxu0 0.0
        %1746 = vmatpush1.xpose.msra.mxu0 %v1741
        %1747 = vmatprep.subr.mxu0 0.0
        %1748 = vmatpush1.xpose.msra.mxu0 0.0
        %1749 = vmatprep.subr.mxu0 0.0
        %1750 = vmatpush1.xpose.msra.mxu0 0.0
        %1751 = vmatprep.subr.mxu0 0.0
        %1752 = vmatpush1.xpose.msra.mxu0 0.0
        %1753 = vmatprep.subr.mxu0 0.0
        %1754 = vmatpush1.xpose.msra.mxu0 0.0
        %1755 = vmatprep.subr.mxu0 0.0
        %1756 = vmatpush1.xpose.msra.mxu0 0.0
        %1757 = vmatprep.subr.mxu0 0.0
        %1758 = vmatpush1.xpose.msra.mxu0 0.0
        %1759 = vmatprep.subr.mxu0 0.0
        %1760 = vmatpush1.xpose.msra.mxu0 0.0
        %1761 = vmatprep.subr.mxu0 0.0
        %1762 = vmatpush1.xpose.msra.mxu0 0.0
        %1763 = vmatprep.subr.mxu0 0.0
        %1764 = vmatpush1.xpose.msra.mxu0 0.0
        %1765 = vmatprep.subr.mxu0 0.0
        %1766 = vmatpush1.xpose.msra.mxu0 0.0
        %1767 = vmatprep.subr.mxu0 0.0
        %1768 = vmatpush1.xpose.msra.mxu0 0.0
        %1769 = vmatprep.subr.mxu0 0.0
        %1770 = vmatpush1.xpose.msra.mxu0 0.0
        %1771 = vmatprep.subr.mxu0 0.0
        %1772 = vmatpush1.xpose.msra.mxu0 0.0
        %1773 = vmatprep.subr.mxu0 0.0
        %1774 = vmatpush1.xpose.msra.mxu0 0.0
        %1775 = vmatprep.subr.mxu0 0.0
        %1776 = vmatpush1.xpose.msra.mxu0 0.0
        %1777 = vmatprep.subr.mxu0 0.0
        %1778 = vmatpush1.xpose.msra.mxu0 0.0
        %1779 = vmatprep.subr.mxu0 0.0
        %1780 = vmatpush1.xpose.msra.mxu0 0.0
        %1781 = vmatprep.subr.mxu0 0.0
        %1782 = vmatpush1.xpose.msra.mxu0 0.0
        %1783 = vmatprep.subr.mxu0 0.0
        %1784 = vmatpush1.xpose.msra.mxu0 0.0
        %1785 = vmatprep.subr.mxu0 0.0
        %1786 = vmatpush1.xpose.msra.mxu0 0.0
        %1787 = vmatprep.subr.mxu0 0.0
        %1788 = vmatpush1.xpose.msra.mxu0 0.0
        %1789 = vmatprep.subr.mxu0 0.0
        %1790 = vmatpush1.xpose.msra.mxu0 0.0
        %1791 = vmatprep.subr.mxu0 0.0
        %1792 = vmatpush1.xpose.msra.mxu0 0.0
        %1793 = vmatprep.subr.mxu0 0.0
        %1794 = vmatpush1.xpose.msra.mxu0 0.0
        %1795 = vmatprep.subr.mxu0 0.0
        %1796 = vmatpush1.xpose.msra.mxu0 0.0
        %1797 = vmatprep.subr.mxu0 0.0
        %1798 = vmatpush1.xpose.msra.mxu0 0.0
        %1799 = vmatprep.subr.mxu0 0.0
        %1800 = vmatpush1.xpose.msra.mxu0 0.0
        %1801 = vmatprep.subr.mxu0 0.0
        %1802 = vmatpush1.xpose.msra.mxu0 0.0
        %1803 = vmatprep.subr.mxu0 0.0
        %1804 = vmatpush1.xpose.msra.mxu0 0.0
        %1805 = vmatprep.subr.mxu0 0.0
        %1806 = vmatpush1.xpose.msra.mxu0 0.0
        %1807 = vmatprep.mubr.f32.mxu0 0.0
        %1808 = vmatmul.mubr.f32.gmra.mrb[0].mxu0 %v1732
        %v1809 = vpop.f32.mrb[0].mxu0
        %v1810 = vadd.f32 0.0, %v1809
        %v1811 = vpop.f32.mrb[0].mxu0
        %1812 = vmatprep.mubr.f32.mxu0 0.0
        %1813 = vmatmul.mubr.f32.gmra.mrb[0].mxu0 %v1735
        %v1814 = vpop.f32.mrb[0].mxu0
        %v1815 = vadd.f32 0.0, %v1814
        %v1816 = vpop.f32.mrb[0].mxu0
        %1817 = vdwg.mxu0
        %v1818 = vmul.f32 %v1201, 0.125
        %v1819 = vmul.f32 %v1206, 0.125
        %v1820 = vmul.f32 %v1288, 0.125
        %v1821 = vmul.f32 %v1293, 0.125
        %v1822 = vmul.f32 %v1375, 0.125
        %v1823 = vmul.f32 %v1380, 0.125
        %v1824 = vmul.f32 %v1462, 0.125
        %v1825 = vmul.f32 %v1467, 0.125
        %v1826 = vmul.f32 %v1549, 0.125
        %v1827 = vmul.f32 %v1554, 0.125
        %v1828 = vmul.f32 %v1636, 0.125
        %v1829 = vmul.f32 %v1641, 0.125
        %v1830 = vmul.f32 %v1723, 0.125
        %v1831 = vmul.f32 %v1728, 0.125
        %v1832 = vmul.f32 %v1810, 0.125
        %v1833 = vmul.f32 %v1815, 0.125
        %v1834 = vadd.f32 %v1818, %v613
        %v1835 = vadd.f32 %v1819, %v613
        %v1836 = vadd.f32 %v1820, %v613
        %v1837 = vadd.f32 %v1821, %v613
        %v1838 = vadd.f32 %v1822, %v613
        %v1839 = vadd.f32 %v1823, %v613
        %v1840 = vadd.f32 %v1824, %v613
        %v1841 = vadd.f32 %v1825, %v613
        %v1842 = vadd.f32 %v1826, %v613
        %v1843 = vadd.f32 %v1827, %v613
        %v1844 = vadd.f32 %v1828, %v613
        %v1845 = vadd.f32 %v1829, %v613
        %v1846 = vadd.f32 %v1830, %v613
        %v1847 = vadd.f32 %v1831, %v613
        %v1848 = vadd.f32 %v1832, %v613
        %v1849 = vadd.f32 %v1833, %v613
        %vm1850 = vcmask 130048
        %v1851 = vsel %vm1850, %v1834, -inf
        %1852 = vmax.xlane.f32.xlu0 %v1851
        %v1853 = vpop.xlane.xlu0 %1852
        %v1854 = vsel %vm1850, %v1835, -inf
        %1855 = vmax.xlane.f32.xlu0 %v1854
        %v1856 = vpop.xlane.xlu0 %1855
        %v1857 = vsel %vm1850, %v1836, -inf
        %1858 = vmax.xlane.f32.xlu0 %v1857
        %v1859 = vpop.xlane.xlu0 %1858
        %v1860 = vsel %vm1850, %v1837, -inf
        %1861 = vmax.xlane.f32.xlu0 %v1860
        %v1862 = vpop.xlane.xlu0 %1861
        %v1863 = vsel %vm1850, %v1838, -inf
        %1864 = vmax.xlane.f32.xlu0 %v1863
        %v1865 = vpop.xlane.xlu0 %1864
        %v1866 = vsel %vm1850, %v1839, -inf
        %1867 = vmax.xlane.f32.xlu0 %v1866
        %v1868 = vpop.xlane.xlu0 %1867
        %v1869 = vsel %vm1850, %v1840, -inf
        %1870 = vmax.xlane.f32.xlu0 %v1869
        %v1871 = vpop.xlane.xlu0 %1870
        %v1872 = vsel %vm1850, %v1841, -inf
        %1873 = vmax.xlane.f32.xlu0 %v1872
        %v1874 = vpop.xlane.xlu0 %1873
        %v1875 = vsel %vm1850, %v1842, -inf
        %1876 = vmax.xlane.f32.xlu0 %v1875
        %v1877 = vpop.xlane.xlu0 %1876
        %v1878 = vsel %vm1850, %v1843, -inf
        %1879 = vmax.xlane.f32.xlu0 %v1878
        %v1880 = vpop.xlane.xlu0 %1879
        %v1881 = vsel %vm1850, %v1844, -inf
        %1882 = vmax.xlane.f32.xlu0 %v1881
        %v1883 = vpop.xlane.xlu0 %1882
        %v1884 = vsel %vm1850, %v1845, -inf
        %1885 = vmax.xlane.f32.xlu0 %v1884
        %v1886 = vpop.xlane.xlu0 %1885
        %v1887 = vsel %vm1850, %v1846, -inf
        %1888 = vmax.xlane.f32.xlu0 %v1887
        %v1889 = vpop.xlane.xlu0 %1888
        %v1890 = vsel %vm1850, %v1847, -inf
        %1891 = vmax.xlane.f32.xlu0 %v1890
        %v1892 = vpop.xlane.xlu0 %1891
        %v1893 = vsel %vm1850, %v1848, -inf
        %1894 = vmax.xlane.f32.xlu0 %v1893
        %v1895 = vpop.xlane.xlu0 %1894
        %v1896 = vsel %vm1850, %v1849, -inf
        %1897 = vmax.xlane.f32.xlu0 %v1896
        %v1898 = vpop.xlane.xlu0 %1897
        %v1899 = vsub.f32 %v1834, %v1853
        %v1900 = vsub.f32 %v1835, %v1856
        %v1901 = vsub.f32 %v1836, %v1859
        %v1902 = vsub.f32 %v1837, %v1862
        %v1903 = vsub.f32 %v1838, %v1865
        %v1904 = vsub.f32 %v1839, %v1868
        %v1905 = vsub.f32 %v1840, %v1871
        %v1906 = vsub.f32 %v1841, %v1874
        %v1907 = vsub.f32 %v1842, %v1877
        %v1908 = vsub.f32 %v1843, %v1880
        %v1909 = vsub.f32 %v1844, %v1883
        %v1910 = vsub.f32 %v1845, %v1886
        %v1911 = vsub.f32 %v1846, %v1889
        %v1912 = vsub.f32 %v1847, %v1892
        %v1913 = vsub.f32 %v1848, %v1895
        %v1914 = vsub.f32 %v1849, %v1898
        %v1915 = vmul.f32 %v1899, 1.442695
        %v1916 = vpow.pop %v1915
        %v1917 = vmul.f32 %v1900, 1.442695
        %v1918 = vpow.pop %v1917
        %v1919 = vmul.f32 %v1901, 1.442695
        %v1920 = vpow.pop %v1919
        %v1921 = vmul.f32 %v1902, 1.442695
        %v1922 = vpow.pop %v1921
        %v1923 = vmul.f32 %v1903, 1.442695
        %v1924 = vpow.pop %v1923
        %v1925 = vmul.f32 %v1904, 1.442695
        %v1926 = vpow.pop %v1925
        %v1927 = vmul.f32 %v1905, 1.442695
        %v1928 = vpow.pop %v1927
        %v1929 = vmul.f32 %v1906, 1.442695
        %v1930 = vpow.pop %v1929
        %v1931 = vmul.f32 %v1907, 1.442695
        %v1932 = vpow.pop %v1931
        %v1933 = vmul.f32 %v1908, 1.442695
        %v1934 = vpow.pop %v1933
        %v1935 = vmul.f32 %v1909, 1.442695
        %v1936 = vpow.pop %v1935
        %v1937 = vmul.f32 %v1910, 1.442695
        %v1938 = vpow.pop %v1937
        %v1939 = vmul.f32 %v1911, 1.442695
        %v1940 = vpow.pop %v1939
        %v1941 = vmul.f32 %v1912, 1.442695
        %v1942 = vpow.pop %v1941
        %v1943 = vmul.f32 %v1913, 1.442695
        %v1944 = vpow.pop %v1943
        %v1945 = vmul.f32 %v1914, 1.442695
        %v1946 = vpow.pop %v1945
        %v1947 = vsel %vm1850, %v1916, 0.0
        %1948 = vadd.xlane.f32.xlu0 %v1947
        %v1949 = vpop.xlane.xlu0 %1948
        %v1950 = vsel %vm1850, %v1918, 0.0
        %1951 = vadd.xlane.f32.xlu0 %v1950
        %v1952 = vpop.xlane.xlu0 %1951
        %v1953 = vsel %vm1850, %v1920, 0.0
        %1954 = vadd.xlane.f32.xlu0 %v1953
        %v1955 = vpop.xlane.xlu0 %1954
        %v1956 = vsel %vm1850, %v1922, 0.0
        %1957 = vadd.xlane.f32.xlu0 %v1956
        %v1958 = vpop.xlane.xlu0 %1957
        %v1959 = vsel %vm1850, %v1924, 0.0
        %1960 = vadd.xlane.f32.xlu0 %v1959
        %v1961 = vpop.xlane.xlu0 %1960
        %v1962 = vsel %vm1850, %v1926, 0.0
        %1963 = vadd.xlane.f32.xlu0 %v1962
        %v1964 = vpop.xlane.xlu0 %1963
        %v1965 = vsel %vm1850, %v1928, 0.0
        %1966 = vadd.xlane.f32.xlu0 %v1965
        %v1967 = vpop.xlane.xlu0 %1966
        %v1968 = vsel %vm1850, %v1930, 0.0
        %1969 = vadd.xlane.f32.xlu0 %v1968
        %v1970 = vpop.xlane.xlu0 %1969
        %v1971 = vsel %vm1850, %v1932, 0.0
        %1972 = vadd.xlane.f32.xlu0 %v1971
        %v1973 = vpop.xlane.xlu0 %1972
        %v1974 = vsel %vm1850, %v1934, 0.0
        %1975 = vadd.xlane.f32.xlu0 %v1974
        %v1976 = vpop.xlane.xlu0 %1975
        %v1977 = vsel %vm1850, %v1936, 0.0
        %1978 = vadd.xlane.f32.xlu0 %v1977
        %v1979 = vpop.xlane.xlu0 %1978
        %v1980 = vsel %vm1850, %v1938, 0.0
        %1981 = vadd.xlane.f32.xlu0 %v1980
        %v1982 = vpop.xlane.xlu0 %1981
        %v1983 = vsel %vm1850, %v1940, 0.0
        %1984 = vadd.xlane.f32.xlu0 %v1983
        %v1985 = vpop.xlane.xlu0 %1984
        %v1986 = vsel %vm1850, %v1942, 0.0
        %1987 = vadd.xlane.f32.xlu0 %v1986
        %v1988 = vpop.xlane.xlu0 %1987
        %v1989 = vsel %vm1850, %v1944, 0.0
        %1990 = vadd.xlane.f32.xlu0 %v1989
        %v1991 = vpop.xlane.xlu0 %1990
        %v1992 = vsel %vm1850, %v1946, 0.0
        %1993 = vadd.xlane.f32.xlu0 %v1992
        %v1994 = vpop.xlane.xlu0 %1993
        %v1995 = vrcp.pop %v1949
        %v1996 = vrcp.pop %v1952
        %v1997 = vrcp.pop %v1955
        %v1998 = vrcp.pop %v1958
        %v1999 = vrcp.pop %v1961
        %v2000 = vrcp.pop %v1964
        %v2001 = vrcp.pop %v1967
        %v2002 = vrcp.pop %v1970
        %v2003 = vrcp.pop %v1973
        %v2004 = vrcp.pop %v1976
        %v2005 = vrcp.pop %v1979
        %v2006 = vrcp.pop %v1982
        %v2007 = vrcp.pop %v1985
        %v2008 = vrcp.pop %v1988
        %v2009 = vrcp.pop %v1991
        %v2010 = vrcp.pop %v1994
        %v2011 = vmul.f32 %v1916, %v1995
        %v2012 = vmul.f32 %v1918, %v1996
        %v2013 = vmul.f32 %v1920, %v1997
        %v2014 = vmul.f32 %v1922, %v1998
        %v2015 = vmul.f32 %v1924, %v1999
        %v2016 = vmul.f32 %v1926, %v2000
        %v2017 = vmul.f32 %v1928, %v2001
        %v2018 = vmul.f32 %v1930, %v2002
        %v2019 = vmul.f32 %v1932, %v2003
        %v2020 = vmul.f32 %v1934, %v2004
        %v2021 = vmul.f32 %v1936, %v2005
        %v2022 = vmul.f32 %v1938, %v2006
        %v2023 = vmul.f32 %v1940, %v2007
        %v2024 = vmul.f32 %v1942, %v2008
        %v2025 = vmul.f32 %v1944, %v2009
        %v2026 = vmul.f32 %v1946, %v2010
        %2027 = vst.msk [vmem:[%s361] sm:$0xff] %vm1850, %v2011
        %2028 = vst.msk [vmem:[%s361 + $0x8] sm:$0xff] %vm1850, %v2012
        %2029 = vst.msk [vmem:[%s361 + $0x10] sm:$0xff] %vm1850, %v2013
        %2030 = vst.msk [vmem:[%s361 + $0x18] sm:$0xff] %vm1850, %v2014
        %2031 = vst.msk [vmem:[%s361 + $0x20] sm:$0xff] %vm1850, %v2015
        %2032 = vst.msk [vmem:[%s361 + $0x28] sm:$0xff] %vm1850, %v2016
        %2033 = vst.msk [vmem:[%s361 + $0x30] sm:$0xff] %vm1850, %v2017
        %2034 = vst.msk [vmem:[%s361 + $0x38] sm:$0xff] %vm1850, %v2018
        %2035 = vst.msk [vmem:[%s361 + $0x40] sm:$0xff] %vm1850, %v2019
        %2036 = vst.msk [vmem:[%s361 + $0x48] sm:$0xff] %vm1850, %v2020
        %2037 = vst.msk [vmem:[%s361 + $0x50] sm:$0xff] %vm1850, %v2021
        %2038 = vst.msk [vmem:[%s361 + $0x58] sm:$0xff] %vm1850, %v2022
        %2039 = vst.msk [vmem:[%s361 + $0x60] sm:$0xff] %vm1850, %v2023
        %2040 = vst.msk [vmem:[%s361 + $0x68] sm:$0xff] %vm1850, %v2024
        %2041 = vst.msk [vmem:[%s361 + $0x70] sm:$0xff] %vm1850, %v2025
        %2042 = vst.msk [vmem:[%s361 + $0x78] sm:$0xff] %vm1850, %v2026
        %v2044 = vsel %vm1850, %v2011, 0
        %v2047 = vsel %vm1850, %v2012, 0
        %2049 = vmatprep.subr.mxu0 0.0
        %2050 = vmatpush1.msra.mxu0 %v1044
        %2051 = vmatprep.subr.mxu0 0.0
        %2052 = vmatpush1.msra.mxu0 %v1049
        %2053 = vmatprep.subr.mxu0 0.0
        %2054 = vmatpush1.msra.mxu0 0.0
        %2055 = vmatprep.subr.mxu0 0.0
        %2056 = vmatpush1.msra.mxu0 0.0
        %2057 = vmatprep.subr.mxu0 0.0
        %2058 = vmatpush1.msra.mxu0 0.0
        %2059 = vmatprep.subr.mxu0 0.0
        %2060 = vmatpush1.msra.mxu0 0.0
        %2061 = vmatprep.subr.mxu0 0.0
        %2062 = vmatpush1.msra.mxu0 0.0
        %2063 = vmatprep.subr.mxu0 0.0
        %2064 = vmatpush1.msra.mxu0 0.0
        %2065 = vmatprep.subr.mxu0 0.0
        %2066 = vmatpush1.msra.mxu0 0.0
        %2067 = vmatprep.subr.mxu0 0.0
        %2068 = vmatpush1.msra.mxu0 0.0
        %2069 = vmatprep.subr.mxu0 0.0
        %2070 = vmatpush1.msra.mxu0 0.0
        %2071 = vmatprep.subr.mxu0 0.0
        %2072 = vmatpush1.msra.mxu0 0.0
        %2073 = vmatprep.subr.mxu0 0.0
        %2074 = vmatpush1.msra.mxu0 0.0
        %2075 = vmatprep.subr.mxu0 0.0
        %2076 = vmatpush1.msra.mxu0 0.0
        %2077 = vmatprep.subr.mxu0 0.0
        %2078 = vmatpush1.msra.mxu0 0.0
        %2079 = vmatprep.subr.mxu0 0.0
        %2080 = vmatpush1.msra.mxu0 0.0
        %2081 = vmatprep.subr.mxu0 0.0
        %2082 = vmatpush1.msra.mxu0 0.0
        %2083 = vmatprep.subr.mxu0 0.0
        %2084 = vmatpush1.msra.mxu0 0.0
        %2085 = vmatprep.subr.mxu0 0.0
        %2086 = vmatpush1.msra.mxu0 0.0
        %2087 = vmatprep.subr.mxu0 0.0
        %2088 = vmatpush1.msra.mxu0 0.0
        %2089 = vmatprep.subr.mxu0 0.0
        %2090 = vmatpush1.msra.mxu0 0.0
        %2091 = vmatprep.subr.mxu0 0.0
        %2092 = vmatpush1.msra.mxu0 0.0
        %2093 = vmatprep.subr.mxu0 0.0
        %2094 = vmatpush1.msra.mxu0 0.0
        %2095 = vmatprep.subr.mxu0 0.0
        %2096 = vmatpush1.msra.mxu0 0.0
        %2097 = vmatprep.subr.mxu0 0.0
        %2098 = vmatpush1.msra.mxu0 0.0
        %2099 = vmatprep.subr.mxu0 0.0
        %2100 = vmatpush1.msra.mxu0 0.0
        %2101 = vmatprep.subr.mxu0 0.0
        %2102 = vmatpush1.msra.mxu0 0.0
        %2103 = vmatprep.subr.mxu0 0.0
        %2104 = vmatpush1.msra.mxu0 0.0
        %2105 = vmatprep.subr.mxu0 0.0
        %2106 = vmatpush1.msra.mxu0 0.0
        %2107 = vmatprep.subr.mxu0 0.0
        %2108 = vmatpush1.msra.mxu0 0.0
        %2109 = vmatprep.subr.mxu0 0.0
        %2110 = vmatpush1.msra.mxu0 0.0
        %2111 = vmatprep.subr.mxu0 0.0
        %2112 = vmatpush1.msra.mxu0 0.0
        %2113 = vmatprep.mubr.f32.mxu0 0.0
        %2114 = vmatmul.mubr.f32.gmra.mrb[0].mxu0 %v2044
        %v2115 = vpop.f32.mrb[0].mxu0
        %v2116 = vadd.f32 0.0, %v2115
        %v2117 = vpop.f32.mrb[0].mxu0
        %2118 = vmatprep.mubr.f32.mxu0 0.0
        %2119 = vmatmul.mubr.f32.gmra.mrb[0].mxu0 %v2047
        %v2120 = vpop.f32.mrb[0].mxu0
        %v2121 = vadd.f32 0.0, %v2120
        %v2122 = vpop.f32.mrb[0].mxu0
        %2123 = vdwg.mxu0
        %v2125 = vsel %vm1850, %v2013, 0
        %v2128 = vsel %vm1850, %v2014, 0
        %2130 = vmatprep.subr.mxu0 0.0
        %2131 = vmatpush1.msra.mxu0 %v1054
        %2132 = vmatprep.subr.mxu0 0.0
        %2133 = vmatpush1.msra.mxu0 %v1059
        %2134 = vmatprep.subr.mxu0 0.0
        %2135 = vmatpush1.msra.mxu0 0.0
        %2136 = vmatprep.subr.mxu0 0.0
        %2137 = vmatpush1.msra.mxu0 0.0
        %2138 = vmatprep.subr.mxu0 0.0
        %2139 = vmatpush1.msra.mxu0 0.0
        %2140 = vmatprep.subr.mxu0 0.0
        %2141 = vmatpush1.msra.mxu0 0.0
        %2142 = vmatprep.subr.mxu0 0.0
        %2143 = vmatpush1.msra.mxu0 0.0
        %2144 = vmatprep.subr.mxu0 0.0
        %2145 = vmatpush1.msra.mxu0 0.0
        %2146 = vmatprep.subr.mxu0 0.0
        %2147 = vmatpush1.msra.mxu0 0.0
        %2148 = vmatprep.subr.mxu0 0.0
        %2149 = vmatpush1.msra.mxu0 0.0
        %2150 = vmatprep.subr.mxu0 0.0
        %2151 = vmatpush1.msra.mxu0 0.0
        %2152 = vmatprep.subr.mxu0 0.0
        %2153 = vmatpush1.msra.mxu0 0.0
        %2154 = vmatprep.subr.mxu0 0.0
        %2155 = vmatpush1.msra.mxu0 0.0
        %2156 = vmatprep.subr.mxu0 0.0
        %2157 = vmatpush1.msra.mxu0 0.0
        %2158 = vmatprep.subr.mxu0 0.0
        %2159 = vmatpush1.msra.mxu0 0.0
        %2160 = vmatprep.subr.mxu0 0.0
        %2161 = vmatpush1.msra.mxu0 0.0
        %2162 = vmatprep.subr.mxu0 0.0
        %2163 = vmatpush1.msra.mxu0 0.0
        %2164 = vmatprep.subr.mxu0 0.0
        %2165 = vmatpush1.msra.mxu0 0.0
        %2166 = vmatprep.subr.mxu0 0.0
        %2167 = vmatpush1.msra.mxu0 0.0
        %2168 = vmatprep.subr.mxu0 0.0
        %2169 = vmatpush1.msra.mxu0 0.0
        %2170 = vmatprep.subr.mxu0 0.0
        %2171 = vmatpush1.msra.mxu0 0.0
        %2172 = vmatprep.subr.mxu0 0.0
        %2173 = vmatpush1.msra.mxu0 0.0
        %2174 = vmatprep.subr.mxu0 0.0
        %2175 = vmatpush1.msra.mxu0 0.0
        %2176 = vmatprep.subr.mxu0 0.0
        %2177 = vmatpush1.msra.mxu0 0.0
        %2178 = vmatprep.subr.mxu0 0.0
        %2179 = vmatpush1.msra.mxu0 0.0
        %2180 = vmatprep.subr.mxu0 0.0
        %2181 = vmatpush1.msra.mxu0 0.0
        %2182 = vmatprep.subr.mxu0 0.0
        %2183 = vmatpush1.msra.mxu0 0.0
        %2184 = vmatprep.subr.mxu0 0.0
        %2185 = vmatpush1.msra.mxu0 0.0
        %2186 = vmatprep.subr.mxu0 0.0
        %2187 = vmatpush1.msra.mxu0 0.0
        %2188 = vmatprep.subr.mxu0 0.0
        %2189 = vmatpush1.msra.mxu0 0.0
        %2190 = vmatprep.subr.mxu0 0.0
        %2191 = vmatpush1.msra.mxu0 0.0
        %2192 = vmatprep.subr.mxu0 0.0
        %2193 = vmatpush1.msra.mxu0 0.0
        %2194 = vmatprep.mubr.f32.mxu0 0.0
        %2195 = vmatmul.mubr.f32.gmra.mrb[0].mxu0 %v2125
        %v2196 = vpop.f32.mrb[0].mxu0
        %v2197 = vadd.f32 0.0, %v2196
        %v2198 = vpop.f32.mrb[0].mxu0
        %2199 = vmatprep.mubr.f32.mxu0 0.0
        %2200 = vmatmul.mubr.f32.gmra.mrb[0].mxu0 %v2128
        %v2201 = vpop.f32.mrb[0].mxu0
        %v2202 = vadd.f32 0.0, %v2201
        %v2203 = vpop.f32.mrb[0].mxu0
        %2204 = vdwg.mxu0
        %v2206 = vsel %vm1850, %v2015, 0
        %v2209 = vsel %vm1850, %v2016, 0
        %2211 = vmatprep.subr.mxu0 0.0
        %2212 = vmatpush1.msra.mxu0 %v1064
        %2213 = vmatprep.subr.mxu0 0.0
        %2214 = vmatpush1.msra.mxu0 %v1069
        %2215 = vmatprep.subr.mxu0 0.0
        %2216 = vmatpush1.msra.mxu0 0.0
        %2217 = vmatprep.subr.mxu0 0.0
        %2218 = vmatpush1.msra.mxu0 0.0
        %2219 = vmatprep.subr.mxu0 0.0
        %2220 = vmatpush1.msra.mxu0 0.0
        %2221 = vmatprep.subr.mxu0 0.0
        %2222 = vmatpush1.msra.mxu0 0.0
        %2223 = vmatprep.subr.mxu0 0.0
        %2224 = vmatpush1.msra.mxu0 0.0
        %2225 = vmatprep.subr.mxu0 0.0
        %2226 = vmatpush1.msra.mxu0 0.0
        %2227 = vmatprep.subr.mxu0 0.0
        %2228 = vmatpush1.msra.mxu0 0.0
        %2229 = vmatprep.subr.mxu0 0.0
        %2230 = vmatpush1.msra.mxu0 0.0
        %2231 = vmatprep.subr.mxu0 0.0
        %2232 = vmatpush1.msra.mxu0 0.0
        %2233 = vmatprep.subr.mxu0 0.0
        %2234 = vmatpush1.msra.mxu0 0.0
        %2235 = vmatprep.subr.mxu0 0.0
        %2236 = vmatpush1.msra.mxu0 0.0
        %2237 = vmatprep.subr.mxu0 0.0
        %2238 = vmatpush1.msra.mxu0 0.0
        %2239 = vmatprep.subr.mxu0 0.0
        %2240 = vmatpush1.msra.mxu0 0.0
        %2241 = vmatprep.subr.mxu0 0.0
        %2242 = vmatpush1.msra.mxu0 0.0
        %2243 = vmatprep.subr.mxu0 0.0
        %2244 = vmatpush1.msra.mxu0 0.0
        %2245 = vmatprep.subr.mxu0 0.0
        %2246 = vmatpush1.msra.mxu0 0.0
        %2247 = vmatprep.subr.mxu0 0.0
        %2248 = vmatpush1.msra.mxu0 0.0
        %2249 = vmatprep.subr.mxu0 0.0
        %2250 = vmatpush1.msra.mxu0 0.0
        %2251 = vmatprep.subr.mxu0 0.0
        %2252 = vmatpush1.msra.mxu0 0.0
        %2253 = vmatprep.subr.mxu0 0.0
        %2254 = vmatpush1.msra.mxu0 0.0
        %2255 = vmatprep.subr.mxu0 0.0
        %2256 = vmatpush1.msra.mxu0 0.0
        %2257 = vmatprep.subr.mxu0 0.0
        %2258 = vmatpush1.msra.mxu0 0.0
        %2259 = vmatprep.subr.mxu0 0.0
        %2260 = vmatpush1.msra.mxu0 0.0
        %2261 = vmatprep.subr.mxu0 0.0
        %2262 = vmatpush1.msra.mxu0 0.0
        %2263 = vmatprep.subr.mxu0 0.0
        %2264 = vmatpush1.msra.mxu0 0.0
        %2265 = vmatprep.subr.mxu0 0.0
        %2266 = vmatpush1.msra.mxu0 0.0
        %2267 = vmatprep.subr.mxu0 0.0
        %2268 = vmatpush1.msra.mxu0 0.0
        %2269 = vmatprep.subr.mxu0 0.0
        %2270 = vmatpush1.msra.mxu0 0.0
        %2271 = vmatprep.subr.mxu0 0.0
        %2272 = vmatpush1.msra.mxu0 0.0
        %2273 = vmatprep.subr.mxu0 0.0
        %2274 = vmatpush1.msra.mxu0 0.0
        %2275 = vmatprep.mubr.f32.mxu0 0.0
        %2276 = vmatmul.mubr.f32.gmra.mrb[0].mxu0 %v2206
        %v2277 = vpop.f32.mrb[0].mxu0
        %v2278 = vadd.f32 0.0, %v2277
        %v2279 = vpop.f32.mrb[0].mxu0
        %2280 = vmatprep.mubr.f32.mxu0 0.0
        %2281 = vmatmul.mubr.f32.gmra.mrb[0].mxu0 %v2209
        %v2282 = vpop.f32.mrb[0].mxu0
        %v2283 = vadd.f32 0.0, %v2282
        %v2284 = vpop.f32.mrb[0].mxu0
        %2285 = vdwg.mxu0
        %v2287 = vsel %vm1850, %v2017, 0
        %v2290 = vsel %vm1850, %v2018, 0
        %2292 = vmatprep.subr.mxu0 0.0
        %2293 = vmatpush1.msra.mxu0 %v1074
        %2294 = vmatprep.subr.mxu0 0.0
        %2295 = vmatpush1.msra.mxu0 %v1079
        %2296 = vmatprep.subr.mxu0 0.0
        %2297 = vmatpush1.msra.mxu0 0.0
        %2298 = vmatprep.subr.mxu0 0.0
        %2299 = vmatpush1.msra.mxu0 0.0
        %2300 = vmatprep.subr.mxu0 0.0
        %2301 = vmatpush1.msra.mxu0 0.0
        %2302 = vmatprep.subr.mxu0 0.0
        %2303 = vmatpush1.msra.mxu0 0.0
        %2304 = vmatprep.subr.mxu0 0.0
        %2305 = vmatpush1.msra.mxu0 0.0
        %2306 = vmatprep.subr.mxu0 0.0
        %2307 = vmatpush1.msra.mxu0 0.0
        %2308 = vmatprep.subr.mxu0 0.0
        %2309 = vmatpush1.msra.mxu0 0.0
        %2310 = vmatprep.subr.mxu0 0.0
        %2311 = vmatpush1.msra.mxu0 0.0
        %2312 = vmatprep.subr.mxu0 0.0
        %2313 = vmatpush1.msra.mxu0 0.0
        %2314 = vmatprep.subr.mxu0 0.0
        %2315 = vmatpush1.msra.mxu0 0.0
        %2316 = vmatprep.subr.mxu0 0.0
        %2317 = vmatpush1.msra.mxu0 0.0
        %2318 = vmatprep.subr.mxu0 0.0
        %2319 = vmatpush1.msra.mxu0 0.0
        %2320 = vmatprep.subr.mxu0 0.0
        %2321 = vmatpush1.msra.mxu0 0.0
        %2322 = vmatprep.subr.mxu0 0.0
        %2323 = vmatpush1.msra.mxu0 0.0
        %2324 = vmatprep.subr.mxu0 0.0
        %2325 = vmatpush1.msra.mxu0 0.0
        %2326 = vmatprep.subr.mxu0 0.0
        %2327 = vmatpush1.msra.mxu0 0.0
        %2328 = vmatprep.subr.mxu0 0.0
        %2329 = vmatpush1.msra.mxu0 0.0
        %2330 = vmatprep.subr.mxu0 0.0
        %2331 = vmatpush1.msra.mxu0 0.0
        %2332 = vmatprep.subr.mxu0 0.0
        %2333 = vmatpush1.msra.mxu0 0.0
        %2334 = vmatprep.subr.mxu0 0.0
        %2335 = vmatpush1.msra.mxu0 0.0
        %2336 = vmatprep.subr.mxu0 0.0
        %2337 = vmatpush1.msra.mxu0 0.0
        %2338 = vmatprep.subr.mxu0 0.0
        %2339 = vmatpush1.msra.mxu0 0.0
        %2340 = vmatprep.subr.mxu0 0.0
        %2341 = vmatpush1.msra.mxu0 0.0
        %2342 = vmatprep.subr.mxu0 0.0
        %2343 = vmatpush1.msra.mxu0 0.0
        %2344 = vmatprep.subr.mxu0 0.0
        %2345 = vmatpush1.msra.mxu0 0.0
        %2346 = vmatprep.subr.mxu0 0.0
        %2347 = vmatpush1.msra.mxu0 0.0
        %2348 = vmatprep.subr.mxu0 0.0
        %2349 = vmatpush1.msra.mxu0 0.0
        %2350 = vmatprep.subr.mxu0 0.0
        %2351 = vmatpush1.msra.mxu0 0.0
        %2352 = vmatprep.subr.mxu0 0.0
        %2353 = vmatpush1.msra.mxu0 0.0
        %2354 = vmatprep.subr.mxu0 0.0
        %2355 = vmatpush1.msra.mxu0 0.0
        %2356 = vmatprep.mubr.f32.mxu0 0.0
        %2357 = vmatmul.mubr.f32.gmra.mrb[0].mxu0 %v2287
        %v2358 = vpop.f32.mrb[0].mxu0
        %v2359 = vadd.f32 0.0, %v2358
        %v2360 = vpop.f32.mrb[0].mxu0
        %2361 = vmatprep.mubr.f32.mxu0 0.0
        %2362 = vmatmul.mubr.f32.gmra.mrb[0].mxu0 %v2290
        %v2363 = vpop.f32.mrb[0].mxu0
        %v2364 = vadd.f32 0.0, %v2363
        %v2365 = vpop.f32.mrb[0].mxu0
        %2366 = vdwg.mxu0
        %v2368 = vsel %vm1850, %v2019, 0
        %v2371 = vsel %vm1850, %v2020, 0
        %2373 = vmatprep.subr.mxu0 0.0
        %2374 = vmatpush1.msra.mxu0 %v1084
        %2375 = vmatprep.subr.mxu0 0.0
        %2376 = vmatpush1.msra.mxu0 %v1089
        %2377 = vmatprep.subr.mxu0 0.0
        %2378 = vmatpush1.msra.mxu0 0.0
        %2379 = vmatprep.subr.mxu0 0.0
        %2380 = vmatpush1.msra.mxu0 0.0
        %2381 = vmatprep.subr.mxu0 0.0
        %2382 = vmatpush1.msra.mxu0 0.0
        %2383 = vmatprep.subr.mxu0 0.0
        %2384 = vmatpush1.msra.mxu0 0.0
        %2385 = vmatprep.subr.mxu0 0.0
        %2386 = vmatpush1.msra.mxu0 0.0
        %2387 = vmatprep.subr.mxu0 0.0
        %2388 = vmatpush1.msra.mxu0 0.0
        %2389 = vmatprep.subr.mxu0 0.0
        %2390 = vmatpush1.msra.mxu0 0.0
        %2391 = vmatprep.subr.mxu0 0.0
        %2392 = vmatpush1.msra.mxu0 0.0
        %2393 = vmatprep.subr.mxu0 0.0
        %2394 = vmatpush1.msra.mxu0 0.0
        %2395 = vmatprep.subr.mxu0 0.0
        %2396 = vmatpush1.msra.mxu0 0.0
        %2397 = vmatprep.subr.mxu0 0.0
        %2398 = vmatpush1.msra.mxu0 0.0
        %2399 = vmatprep.subr.mxu0 0.0
        %2400 = vmatpush1.msra.mxu0 0.0
        %2401 = vmatprep.subr.mxu0 0.0
        %2402 = vmatpush1.msra.mxu0 0.0
        %2403 = vmatprep.subr.mxu0 0.0
        %2404 = vmatpush1.msra.mxu0 0.0
        %2405 = vmatprep.subr.mxu0 0.0
        %2406 = vmatpush1.msra.mxu0 0.0
        %2407 = vmatprep.subr.mxu0 0.0
        %2408 = vmatpush1.msra.mxu0 0.0
        %2409 = vmatprep.subr.mxu0 0.0
        %2410 = vmatpush1.msra.mxu0 0.0
        %2411 = vmatprep.subr.mxu0 0.0
        %2412 = vmatpush1.msra.mxu0 0.0
        %2413 = vmatprep.subr.mxu0 0.0
        %2414 = vmatpush1.msra.mxu0 0.0
        %2415 = vmatprep.subr.mxu0 0.0
        %2416 = vmatpush1.msra.mxu0 0.0
        %2417 = vmatprep.subr.mxu0 0.0
        %2418 = vmatpush1.msra.mxu0 0.0
        %2419 = vmatprep.subr.mxu0 0.0
        %2420 = vmatpush1.msra.mxu0 0.0
        %2421 = vmatprep.subr.mxu0 0.0
        %2422 = vmatpush1.msra.mxu0 0.0
        %2423 = vmatprep.subr.mxu0 0.0
        %2424 = vmatpush1.msra.mxu0 0.0
        %2425 = vmatprep.subr.mxu0 0.0
        %2426 = vmatpush1.msra.mxu0 0.0
        %2427 = vmatprep.subr.mxu0 0.0
        %2428 = vmatpush1.msra.mxu0 0.0
        %2429 = vmatprep.subr.mxu0 0.0
        %2430 = vmatpush1.msra.mxu0 0.0
        %2431 = vmatprep.subr.mxu0 0.0
        %2432 = vmatpush1.msra.mxu0 0.0
        %2433 = vmatprep.subr.mxu0 0.0
        %2434 = vmatpush1.msra.mxu0 0.0
        %2435 = vmatprep.subr.mxu0 0.0
        %2436 = vmatpush1.msra.mxu0 0.0
        %2437 = vmatprep.mubr.f32.mxu0 0.0
        %2438 = vmatmul.mubr.f32.gmra.mrb[0].mxu0 %v2368
        %v2439 = vpop.f32.mrb[0].mxu0
        %v2440 = vadd.f32 0.0, %v2439
        %v2441 = vpop.f32.mrb[0].mxu0
        %2442 = vmatprep.mubr.f32.mxu0 0.0
        %2443 = vmatmul.mubr.f32.gmra.mrb[0].mxu0 %v2371
        %v2444 = vpop.f32.mrb[0].mxu0
        %v2445 = vadd.f32 0.0, %v2444
        %v2446 = vpop.f32.mrb[0].mxu0
        %2447 = vdwg.mxu0
        %v2449 = vsel %vm1850, %v2021, 0
        %v2452 = vsel %vm1850, %v2022, 0
        %2454 = vmatprep.subr.mxu0 0.0
        %2455 = vmatpush1.msra.mxu0 %v1094
        %2456 = vmatprep.subr.mxu0 0.0
        %2457 = vmatpush1.msra.mxu0 %v1099
        %2458 = vmatprep.subr.mxu0 0.0
        %2459 = vmatpush1.msra.mxu0 0.0
        %2460 = vmatprep.subr.mxu0 0.0
        %2461 = vmatpush1.msra.mxu0 0.0
        %2462 = vmatprep.subr.mxu0 0.0
        %2463 = vmatpush1.msra.mxu0 0.0
        %2464 = vmatprep.subr.mxu0 0.0
        %2465 = vmatpush1.msra.mxu0 0.0
        %2466 = vmatprep.subr.mxu0 0.0
        %2467 = vmatpush1.msra.mxu0 0.0
        %2468 = vmatprep.subr.mxu0 0.0
        %2469 = vmatpush1.msra.mxu0 0.0
        %2470 = vmatprep.subr.mxu0 0.0
        %2471 = vmatpush1.msra.mxu0 0.0
        %2472 = vmatprep.subr.mxu0 0.0
        %2473 = vmatpush1.msra.mxu0 0.0
        %2474 = vmatprep.subr.mxu0 0.0
        %2475 = vmatpush1.msra.mxu0 0.0
        %2476 = vmatprep.subr.mxu0 0.0
        %2477 = vmatpush1.msra.mxu0 0.0
        %2478 = vmatprep.subr.mxu0 0.0
        %2479 = vmatpush1.msra.mxu0 0.0
        %2480 = vmatprep.subr.mxu0 0.0
        %2481 = vmatpush1.msra.mxu0 0.0
        %2482 = vmatprep.subr.mxu0 0.0
        %2483 = vmatpush1.msra.mxu0 0.0
        %2484 = vmatprep.subr.mxu0 0.0
        %2485 = vmatpush1.msra.mxu0 0.0
        %2486 = vmatprep.subr.mxu0 0.0
        %2487 = vmatpush1.msra.mxu0 0.0
        %2488 = vmatprep.subr.mxu0 0.0
        %2489 = vmatpush1.msra.mxu0 0.0
        %2490 = vmatprep.subr.mxu0 0.0
        %2491 = vmatpush1.msra.mxu0 0.0
        %2492 = vmatprep.subr.mxu0 0.0
        %2493 = vmatpush1.msra.mxu0 0.0
        %2494 = vmatprep.subr.mxu0 0.0
        %2495 = vmatpush1.msra.mxu0 0.0
        %2496 = vmatprep.subr.mxu0 0.0
        %2497 = vmatpush1.msra.mxu0 0.0
        %2498 = vmatprep.subr.mxu0 0.0
        %2499 = vmatpush1.msra.mxu0 0.0
        %2500 = vmatprep.subr.mxu0 0.0
        %2501 = vmatpush1.msra.mxu0 0.0
        %2502 = vmatprep.subr.mxu0 0.0
        %2503 = vmatpush1.msra.mxu0 0.0
        %2504 = vmatprep.subr.mxu0 0.0
        %2505 = vmatpush1.msra.mxu0 0.0
        %2506 = vmatprep.subr.mxu0 0.0
        %2507 = vmatpush1.msra.mxu0 0.0
        %2508 = vmatprep.subr.mxu0 0.0
        %2509 = vmatpush1.msra.mxu0 0.0
        %2510 = vmatprep.subr.mxu0 0.0
        %2511 = vmatpush1.msra.mxu0 0.0
        %2512 = vmatprep.subr.mxu0 0.0
        %2513 = vmatpush1.msra.mxu0 0.0
        %2514 = vmatprep.subr.mxu0 0.0
        %2515 = vmatpush1.msra.mxu0 0.0
        %2516 = vmatprep.subr.mxu0 0.0
        %2517 = vmatpush1.msra.mxu0 0.0
        %2518 = vmatprep.mubr.f32.mxu0 0.0
        %2519 = vmatmul.mubr.f32.gmra.mrb[0].mxu0 %v2449
        %v2520 = vpop.f32.mrb[0].mxu0
        %v2521 = vadd.f32 0.0, %v2520
        %v2522 = vpop.f32.mrb[0].mxu0
        %2523 = vmatprep.mubr.f32.mxu0 0.0
        %2524 = vmatmul.mubr.f32.gmra.mrb[0].mxu0 %v2452
        %v2525 = vpop.f32.mrb[0].mxu0
        %v2526 = vadd.f32 0.0, %v2525
        %v2527 = vpop.f32.mrb[0].mxu0
        %2528 = vdwg.mxu0
        %v2530 = vsel %vm1850, %v2023, 0
        %v2533 = vsel %vm1850, %v2024, 0
        %2535 = vmatprep.subr.mxu0 0.0
        %2536 = vmatpush1.msra.mxu0 %v1104
        %2537 = vmatprep.subr.mxu0 0.0
        %2538 = vmatpush1.msra.mxu0 %v1109
        %2539 = vmatprep.subr.mxu0 0.0
        %2540 = vmatpush1.msra.mxu0 0.0
        %2541 = vmatprep.subr.mxu0 0.0
        %2542 = vmatpush1.msra.mxu0 0.0
        %2543 = vmatprep.subr.mxu0 0.0
        %2544 = vmatpush1.msra.mxu0 0.0
        %2545 = vmatprep.subr.mxu0 0.0
        %2546 = vmatpush1.msra.mxu0 0.0
        %2547 = vmatprep.subr.mxu0 0.0
        %2548 = vmatpush1.msra.mxu0 0.0
        %2549 = vmatprep.subr.mxu0 0.0
        %2550 = vmatpush1.msra.mxu0 0.0
        %2551 = vmatprep.subr.mxu0 0.0
        %2552 = vmatpush1.msra.mxu0 0.0
        %2553 = vmatprep.subr.mxu0 0.0
        %2554 = vmatpush1.msra.mxu0 0.0
        %2555 = vmatprep.subr.mxu0 0.0
        %2556 = vmatpush1.msra.mxu0 0.0
        %2557 = vmatprep.subr.mxu0 0.0
        %2558 = vmatpush1.msra.mxu0 0.0
        %2559 = vmatprep.subr.mxu0 0.0
        %2560 = vmatpush1.msra.mxu0 0.0
        %2561 = vmatprep.subr.mxu0 0.0
        %2562 = vmatpush1.msra.mxu0 0.0
        %2563 = vmatprep.subr.mxu0 0.0
        %2564 = vmatpush1.msra.mxu0 0.0
        %2565 = vmatprep.subr.mxu0 0.0
        %2566 = vmatpush1.msra.mxu0 0.0
        %2567 = vmatprep.subr.mxu0 0.0
        %2568 = vmatpush1.msra.mxu0 0.0
        %2569 = vmatprep.subr.mxu0 0.0
        %2570 = vmatpush1.msra.mxu0 0.0
        %2571 = vmatprep.subr.mxu0 0.0
        %2572 = vmatpush1.msra.mxu0 0.0
        %2573 = vmatprep.subr.mxu0 0.0
        %2574 = vmatpush1.msra.mxu0 0.0
        %2575 = vmatprep.subr.mxu0 0.0
        %2576 = vmatpush1.msra.mxu0 0.0
        %2577 = vmatprep.subr.mxu0 0.0
        %2578 = vmatpush1.msra.mxu0 0.0
        %2579 = vmatprep.subr.mxu0 0.0
        %2580 = vmatpush1.msra.mxu0 0.0
        %2581 = vmatprep.subr.mxu0 0.0
        %2582 = vmatpush1.msra.mxu0 0.0
        %2583 = vmatprep.subr.mxu0 0.0
        %2584 = vmatpush1.msra.mxu0 0.0
        %2585 = vmatprep.subr.mxu0 0.0
        %2586 = vmatpush1.msra.mxu0 0.0
        %2587 = vmatprep.subr.mxu0 0.0
        %2588 = vmatpush1.msra.mxu0 0.0
        %2589 = vmatprep.subr.mxu0 0.0
        %2590 = vmatpush1.msra.mxu0 0.0
        %2591 = vmatprep.subr.mxu0 0.0
        %2592 = vmatpush1.msra.mxu0 0.0
        %2593 = vmatprep.subr.mxu0 0.0
        %2594 = vmatpush1.msra.mxu0 0.0
        %2595 = vmatprep.subr.mxu0 0.0
        %2596 = vmatpush1.msra.mxu0 0.0
        %2597 = vmatprep.subr.mxu0 0.0
        %2598 = vmatpush1.msra.mxu0 0.0
        %2599 = vmatprep.mubr.f32.mxu0 0.0
        %2600 = vmatmul.mubr.f32.gmra.mrb[0].mxu0 %v2530
        %v2601 = vpop.f32.mrb[0].mxu0
        %v2602 = vadd.f32 0.0, %v2601
        %v2603 = vpop.f32.mrb[0].mxu0
        %2604 = vmatprep.mubr.f32.mxu0 0.0
        %2605 = vmatmul.mubr.f32.gmra.mrb[0].mxu0 %v2533
        %v2606 = vpop.f32.mrb[0].mxu0
        %v2607 = vadd.f32 0.0, %v2606
        %v2608 = vpop.f32.mrb[0].mxu0
        %2609 = vdwg.mxu0
        %v2611 = vsel %vm1850, %v2025, 0
        %v2614 = vsel %vm1850, %v2026, 0
        %2616 = vmatprep.subr.mxu0 0.0
        %2617 = vmatpush1.msra.mxu0 %v1114
        %2618 = vmatprep.subr.mxu0 0.0
        %2619 = vmatpush1.msra.mxu0 %v1119
        %2620 = vmatprep.subr.mxu0 0.0
        %2621 = vmatpush1.msra.mxu0 0.0
        %2622 = vmatprep.subr.mxu0 0.0
        %2623 = vmatpush1.msra.mxu0 0.0
        %2624 = vmatprep.subr.mxu0 0.0
        %2625 = vmatpush1.msra.mxu0 0.0
        %2626 = vmatprep.subr.mxu0 0.0
        %2627 = vmatpush1.msra.mxu0 0.0
        %2628 = vmatprep.subr.mxu0 0.0
        %2629 = vmatpush1.msra.mxu0 0.0
        %2630 = vmatprep.subr.mxu0 0.0
        %2631 = vmatpush1.msra.mxu0 0.0
        %2632 = vmatprep.subr.mxu0 0.0
        %2633 = vmatpush1.msra.mxu0 0.0
        %2634 = vmatprep.subr.mxu0 0.0
        %2635 = vmatpush1.msra.mxu0 0.0
        %2636 = vmatprep.subr.mxu0 0.0
        %2637 = vmatpush1.msra.mxu0 0.0
        %2638 = vmatprep.subr.mxu0 0.0
        %2639 = vmatpush1.msra.mxu0 0.0
        %2640 = vmatprep.subr.mxu0 0.0
        %2641 = vmatpush1.msra.mxu0 0.0
        %2642 = vmatprep.subr.mxu0 0.0
        %2643 = vmatpush1.msra.mxu0 0.0
        %2644 = vmatprep.subr.mxu0 0.0
        %2645 = vmatpush1.msra.mxu0 0.0
        %2646 = vmatprep.subr.mxu0 0.0
        %2647 = vmatpush1.msra.mxu0 0.0
        %2648 = vmatprep.subr.mxu0 0.0
        %2649 = vmatpush1.msra.mxu0 0.0
        %2650 = vmatprep.subr.mxu0 0.0
        %2651 = vmatpush1.msra.mxu0 0.0
        %2652 = vmatprep.subr.mxu0 0.0
        %2653 = vmatpush1.msra.mxu0 0.0
        %2654 = vmatprep.subr.mxu0 0.0
        %2655 = vmatpush1.msra.mxu0 0.0
        %2656 = vmatprep.subr.mxu0 0.0
        %2657 = vmatpush1.msra.mxu0 0.0
        %2658 = vmatprep.subr.mxu0 0.0
        %2659 = vmatpush1.msra.mxu0 0.0
        %2660 = vmatprep.subr.mxu0 0.0
        %2661 = vmatpush1.msra.mxu0 0.0
        %2662 = vmatprep.subr.mxu0 0.0
        %2663 = vmatpush1.msra.mxu0 0.0
        %2664 = vmatprep.subr.mxu0 0.0
        %2665 = vmatpush1.msra.mxu0 0.0
        %2666 = vmatprep.subr.mxu0 0.0
        %2667 = vmatpush1.msra.mxu0 0.0
        %2668 = vmatprep.subr.mxu0 0.0
        %2669 = vmatpush1.msra.mxu0 0.0
        %2670 = vmatprep.subr.mxu0 0.0
        %2671 = vmatpush1.msra.mxu0 0.0
        %2672 = vmatprep.subr.mxu0 0.0
        %2673 = vmatpush1.msra.mxu0 0.0
        %2674 = vmatprep.subr.mxu0 0.0
        %2675 = vmatpush1.msra.mxu0 0.0
        %2676 = vmatprep.subr.mxu0 0.0
        %2677 = vmatpush1.msra.mxu0 0.0
        %2678 = vmatprep.subr.mxu0 0.0
        %2679 = vmatpush1.msra.mxu0 0.0
        %2680 = vmatprep.mubr.f32.mxu0 0.0
        %2681 = vmatmul.mubr.f32.gmra.mrb[0].mxu0 %v2611
        %v2682 = vpop.f32.mrb[0].mxu0
        %v2683 = vadd.f32 0.0, %v2682
        %v2684 = vpop.f32.mrb[0].mxu0
        %2685 = vmatprep.mubr.f32.mxu0 0.0
        %2686 = vmatmul.mubr.f32.gmra.mrb[0].mxu0 %v2614
        %v2687 = vpop.f32.mrb[0].mxu0
        %v2688 = vadd.f32 0.0, %v2687
        %v2689 = vpop.f32.mrb[0].mxu0
        %2690 = vdwg.mxu0
        %2691 = vrot.lane.b32.xlu0 %v738, 64
        %v2692 = vpop.permute.xlu0 %2691
        %2693 = vrot.lane.b32.xlu0 %v743, 64
        %v2694 = vpop.permute.xlu0 %2693
        %2695 = vrot.lane.b32.xlu0 %v891, 64
        %v2696 = vpop.permute.xlu0 %2695
        %2697 = vrot.lane.b32.xlu0 %v896, 64
        %v2698 = vpop.permute.xlu0 %2697
        %v2699 = vsel %vm622, %v2692, 0
        %v2701 = vsel %vm622, %v2694, 0
        %v2703 = vsel %vm622, %v2696, 0
        %v2705 = vsel %vm622, %v2698, 0
        %2707 = vmatprep.subr.mxu0 0.0
        %2708 = vmatpush1.xpose.msra.mxu0 %v2703
        %2709 = vmatprep.subr.mxu0 0.0
        %2710 = vmatpush1.xpose.msra.mxu0 %v2705
        %2711 = vmatprep.subr.mxu0 0.0
        %2712 = vmatpush1.xpose.msra.mxu0 0.0
        %2713 = vmatprep.subr.mxu0 0.0
        %2714 = vmatpush1.xpose.msra.mxu0 0.0
        %2715 = vmatprep.subr.mxu0 0.0
        %2716 = vmatpush1.xpose.msra.mxu0 0.0
        %2717 = vmatprep.subr.mxu0 0.0
        %2718 = vmatpush1.xpose.msra.mxu0 0.0
        %2719 = vmatprep.subr.mxu0 0.0
        %2720 = vmatpush1.xpose.msra.mxu0 0.0
        %2721 = vmatprep.subr.mxu0 0.0
        %2722 = vmatpush1.xpose.msra.mxu0 0.0
        %2723 = vmatprep.subr.mxu0 0.0
        %2724 = vmatpush1.xpose.msra.mxu0 0.0
        %2725 = vmatprep.subr.mxu0 0.0
        %2726 = vmatpush1.xpose.msra.mxu0 0.0
        %2727 = vmatprep.subr.mxu0 0.0
        %2728 = vmatpush1.xpose.msra.mxu0 0.0
        %2729 = vmatprep.subr.mxu0 0.0
        %2730 = vmatpush1.xpose.msra.mxu0 0.0
        %2731 = vmatprep.subr.mxu0 0.0
        %2732 = vmatpush1.xpose.msra.mxu0 0.0
        %2733 = vmatprep.subr.mxu0 0.0
        %2734 = vmatpush1.xpose.msra.mxu0 0.0
        %2735 = vmatprep.subr.mxu0 0.0
        %2736 = vmatpush1.xpose.msra.mxu0 0.0
        %2737 = vmatprep.subr.mxu0 0.0
        %2738 = vmatpush1.xpose.msra.mxu0 0.0
        %2739 = vmatprep.subr.mxu0 0.0
        %2740 = vmatpush1.xpose.msra.mxu0 0.0
        %2741 = vmatprep.subr.mxu0 0.0
        %2742 = vmatpush1.xpose.msra.mxu0 0.0
        %2743 = vmatprep.subr.mxu0 0.0
        %2744 = vmatpush1.xpose.msra.mxu0 0.0
        %2745 = vmatprep.subr.mxu0 0.0
        %2746 = vmatpush1.xpose.msra.mxu0 0.0
        %2747 = vmatprep.subr.mxu0 0.0
        %2748 = vmatpush1.xpose.msra.mxu0 0.0
        %2749 = vmatprep.subr.mxu0 0.0
        %2750 = vmatpush1.xpose.msra.mxu0 0.0
        %2751 = vmatprep.subr.mxu0 0.0
        %2752 = vmatpush1.xpose.msra.mxu0 0.0
        %2753 = vmatprep.subr.mxu0 0.0
        %2754 = vmatpush1.xpose.msra.mxu0 0.0
        %2755 = vmatprep.subr.mxu0 0.0
        %2756 = vmatpush1.xpose.msra.mxu0 0.0
        %2757 = vmatprep.subr.mxu0 0.0
        %2758 = vmatpush1.xpose.msra.mxu0 0.0
        %2759 = vmatprep.subr.mxu0 0.0
        %2760 = vmatpush1.xpose.msra.mxu0 0.0
        %2761 = vmatprep.subr.mxu0 0.0
        %2762 = vmatpush1.xpose.msra.mxu0 0.0
        %2763 = vmatprep.subr.mxu0 0.0
        %2764 = vmatpush1.xpose.msra.mxu0 0.0
        %2765 = vmatprep.subr.mxu0 0.0
        %2766 = vmatpush1.xpose.msra.mxu0 0.0
        %2767 = vmatprep.subr.mxu0 0.0
        %2768 = vmatpush1.xpose.msra.mxu0 0.0
        %2769 = vmatprep.subr.mxu0 0.0
        %2770 = vmatpush1.xpose.msra.mxu0 0.0
        %2771 = vmatprep.mubr.f32.mxu0 0.0
        %2772 = vmatmul.mubr.f32.gmra.mrb[0].mxu0 %v2699
        %v2773 = vpop.f32.mrb[0].mxu0
        %v2774 = vadd.f32 0.0, %v2773
        %v2775 = vpop.f32.mrb[0].mxu0
        %2776 = vmatprep.mubr.f32.mxu0 0.0
        %2777 = vmatmul.mubr.f32.gmra.mrb[0].mxu0 %v2701
        %v2778 = vpop.f32.mrb[0].mxu0
        %v2779 = vadd.f32 0.0, %v2778
        %v2780 = vpop.f32.mrb[0].mxu0
        %2781 = vdwg.mxu0
        %2782 = vrot.lane.b32.xlu0 %v748, 64
        %v2783 = vpop.permute.xlu0 %2782
        %2784 = vrot.lane.b32.xlu0 %v753, 64
        %v2785 = vpop.permute.xlu0 %2784
        %2786 = vrot.lane.b32.xlu0 %v901, 64
        %v2787 = vpop.permute.xlu0 %2786
        %2788 = vrot.lane.b32.xlu0 %v906, 64
        %v2789 = vpop.permute.xlu0 %2788
        %v2790 = vsel %vm622, %v2783, 0
        %v2792 = vsel %vm622, %v2785, 0
        %v2794 = vsel %vm622, %v2787, 0
        %v2796 = vsel %vm622, %v2789, 0
        %2798 = vmatprep.subr.mxu0 0.0
        %2799 = vmatpush1.xpose.msra.mxu0 %v2794
        %2800 = vmatprep.subr.mxu0 0.0
        %2801 = vmatpush1.xpose.msra.mxu0 %v2796
        %2802 = vmatprep.subr.mxu0 0.0
        %2803 = vmatpush1.xpose.msra.mxu0 0.0
        %2804 = vmatprep.subr.mxu0 0.0
        %2805 = vmatpush1.xpose.msra.mxu0 0.0
        %2806 = vmatprep.subr.mxu0 0.0
        %2807 = vmatpush1.xpose.msra.mxu0 0.0
        %2808 = vmatprep.subr.mxu0 0.0
        %2809 = vmatpush1.xpose.msra.mxu0 0.0
        %2810 = vmatprep.subr.mxu0 0.0
        %2811 = vmatpush1.xpose.msra.mxu0 0.0
        %2812 = vmatprep.subr.mxu0 0.0
        %2813 = vmatpush1.xpose.msra.mxu0 0.0
        %2814 = vmatprep.subr.mxu0 0.0
        %2815 = vmatpush1.xpose.msra.mxu0 0.0
        %2816 = vmatprep.subr.mxu0 0.0
        %2817 = vmatpush1.xpose.msra.mxu0 0.0
        %2818 = vmatprep.subr.mxu0 0.0
        %2819 = vmatpush1.xpose.msra.mxu0 0.0
        %2820 = vmatprep.subr.mxu0 0.0
        %2821 = vmatpush1.xpose.msra.mxu0 0.0
        %2822 = vmatprep.subr.mxu0 0.0
        %2823 = vmatpush1.xpose.msra.mxu0 0.0
        %2824 = vmatprep.subr.mxu0 0.0
        %2825 = vmatpush1.xpose.msra.mxu0 0.0
        %2826 = vmatprep.subr.mxu0 0.0
        %2827 = vmatpush1.xpose.msra.mxu0 0.0
        %2828 = vmatprep.subr.mxu0 0.0
        %2829 = vmatpush1.xpose.msra.mxu0 0.0
        %2830 = vmatprep.subr.mxu0 0.0
        %2831 = vmatpush1.xpose.msra.mxu0 0.0
        %2832 = vmatprep.subr.mxu0 0.0
        %2833 = vmatpush1.xpose.msra.mxu0 0.0
        %2834 = vmatprep.subr.mxu0 0.0
        %2835 = vmatpush1.xpose.msra.mxu0 0.0
        %2836 = vmatprep.subr.mxu0 0.0
        %2837 = vmatpush1.xpose.msra.mxu0 0.0
        %2838 = vmatprep.subr.mxu0 0.0
        %2839 = vmatpush1.xpose.msra.mxu0 0.0
        %2840 = vmatprep.subr.mxu0 0.0
        %2841 = vmatpush1.xpose.msra.mxu0 0.0
        %2842 = vmatprep.subr.mxu0 0.0
        %2843 = vmatpush1.xpose.msra.mxu0 0.0
        %2844 = vmatprep.subr.mxu0 0.0
        %2845 = vmatpush1.xpose.msra.mxu0 0.0
        %2846 = vmatprep.subr.mxu0 0.0
        %2847 = vmatpush1.xpose.msra.mxu0 0.0
        %2848 = vmatprep.subr.mxu0 0.0
        %2849 = vmatpush1.xpose.msra.mxu0 0.0
        %2850 = vmatprep.subr.mxu0 0.0
        %2851 = vmatpush1.xpose.msra.mxu0 0.0
        %2852 = vmatprep.subr.mxu0 0.0
        %2853 = vmatpush1.xpose.msra.mxu0 0.0
        %2854 = vmatprep.subr.mxu0 0.0
        %2855 = vmatpush1.xpose.msra.mxu0 0.0
        %2856 = vmatprep.subr.mxu0 0.0
        %2857 = vmatpush1.xpose.msra.mxu0 0.0
        %2858 = vmatprep.subr.mxu0 0.0
        %2859 = vmatpush1.xpose.msra.mxu0 0.0
        %2860 = vmatprep.subr.mxu0 0.0
        %2861 = vmatpush1.xpose.msra.mxu0 0.0
        %2862 = vmatprep.mubr.f32.mxu0 0.0
        %2863 = vmatmul.mubr.f32.gmra.mrb[0].mxu0 %v2790
        %v2864 = vpop.f32.mrb[0].mxu0
        %v2865 = vadd.f32 0.0, %v2864
        %v2866 = vpop.f32.mrb[0].mxu0
        %2867 = vmatprep.mubr.f32.mxu0 0.0
        %2868 = vmatmul.mubr.f32.gmra.mrb[0].mxu0 %v2792
        %v2869 = vpop.f32.mrb[0].mxu0
        %v2870 = vadd.f32 0.0, %v2869
        %v2871 = vpop.f32.mrb[0].mxu0
        %2872 = vdwg.mxu0
        %2873 = vrot.lane.b32.xlu0 %v758, 64
        %v2874 = vpop.permute.xlu0 %2873
        %2875 = vrot.lane.b32.xlu0 %v763, 64
        %v2876 = vpop.permute.xlu0 %2875
        %2877 = vrot.lane.b32.xlu0 %v911, 64
        %v2878 = vpop.permute.xlu0 %2877
        %2879 = vrot.lane.b32.xlu0 %v916, 64
        %v2880 = vpop.permute.xlu0 %2879
        %v2881 = vsel %vm622, %v2874, 0
        %v2883 = vsel %vm622, %v2876, 0
        %v2885 = vsel %vm622, %v2878, 0
        %v2887 = vsel %vm622, %v2880, 0
        %2889 = vmatprep.subr.mxu0 0.0
        %2890 = vmatpush1.xpose.msra.mxu0 %v2885
        %2891 = vmatprep.subr.mxu0 0.0
        %2892 = vmatpush1.xpose.msra.mxu0 %v2887
        %2893 = vmatprep.subr.mxu0 0.0
        %2894 = vmatpush1.xpose.msra.mxu0 0.0
        %2895 = vmatprep.subr.mxu0 0.0
        %2896 = vmatpush1.xpose.msra.mxu0 0.0
        %2897 = vmatprep.subr.mxu0 0.0
        %2898 = vmatpush1.xpose.msra.mxu0 0.0
        %2899 = vmatprep.subr.mxu0 0.0
        %2900 = vmatpush1.xpose.msra.mxu0 0.0
        %2901 = vmatprep.subr.mxu0 0.0
        %2902 = vmatpush1.xpose.msra.mxu0 0.0
        %2903 = vmatprep.subr.mxu0 0.0
        %2904 = vmatpush1.xpose.msra.mxu0 0.0
        %2905 = vmatprep.subr.mxu0 0.0
        %2906 = vmatpush1.xpose.msra.mxu0 0.0
        %2907 = vmatprep.subr.mxu0 0.0
        %2908 = vmatpush1.xpose.msra.mxu0 0.0
        %2909 = vmatprep.subr.mxu0 0.0
        %2910 = vmatpush1.xpose.msra.mxu0 0.0
        %2911 = vmatprep.subr.mxu0 0.0
        %2912 = vmatpush1.xpose.msra.mxu0 0.0
        %2913 = vmatprep.subr.mxu0 0.0
        %2914 = vmatpush1.xpose.msra.mxu0 0.0
        %2915 = vmatprep.subr.mxu0 0.0
        %2916 = vmatpush1.xpose.msra.mxu0 0.0
        %2917 = vmatprep.subr.mxu0 0.0
        %2918 = vmatpush1.xpose.msra.mxu0 0.0
        %2919 = vmatprep.subr.mxu0 0.0
        %2920 = vmatpush1.xpose.msra.mxu0 0.0
        %2921 = vmatprep.subr.mxu0 0.0
        %2922 = vmatpush1.xpose.msra.mxu0 0.0
        %2923 = vmatprep.subr.mxu0 0.0
        %2924 = vmatpush1.xpose.msra.mxu0 0.0
        %2925 = vmatprep.subr.mxu0 0.0
        %2926 = vmatpush1.xpose.msra.mxu0 0.0
        %2927 = vmatprep.subr.mxu0 0.0
        %2928 = vmatpush1.xpose.msra.mxu0 0.0
        %2929 = vmatprep.subr.mxu0 0.0
        %2930 = vmatpush1.xpose.msra.mxu0 0.0
        %2931 = vmatprep.subr.mxu0 0.0
        %2932 = vmatpush1.xpose.msra.mxu0 0.0
        %2933 = vmatprep.subr.mxu0 0.0
        %2934 = vmatpush1.xpose.msra.mxu0 0.0
        %2935 = vmatprep.subr.mxu0 0.0
        %2936 = vmatpush1.xpose.msra.mxu0 0.0
        %2937 = vmatprep.subr.mxu0 0.0
        %2938 = vmatpush1.xpose.msra.mxu0 0.0
        %2939 = vmatprep.subr.mxu0 0.0
        %2940 = vmatpush1.xpose.msra.mxu0 0.0
        %2941 = vmatprep.subr.mxu0 0.0
        %2942 = vmatpush1.xpose.msra.mxu0 0.0
        %2943 = vmatprep.subr.mxu0 0.0
        %2944 = vmatpush1.xpose.msra.mxu0 0.0
        %2945 = vmatprep.subr.mxu0 0.0
        %2946 = vmatpush1.xpose.msra.mxu0 0.0
        %2947 = vmatprep.subr.mxu0 0.0
        %2948 = vmatpush1.xpose.msra.mxu0 0.0
        %2949 = vmatprep.subr.mxu0 0.0
        %2950 = vmatpush1.xpose.msra.mxu0 0.0
        %2951 = vmatprep.subr.mxu0 0.0
        %2952 = vmatpush1.xpose.msra.mxu0 0.0
        %2953 = vmatprep.mubr.f32.mxu0 0.0
        %2954 = vmatmul.mubr.f32.gmra.mrb[0].mxu0 %v2881
        %v2955 = vpop.f32.mrb[0].mxu0
        %v2956 = vadd.f32 0.0, %v2955
        %v2957 = vpop.f32.mrb[0].mxu0
        %2958 = vmatprep.mubr.f32.mxu0 0.0
        %2959 = vmatmul.mubr.f32.gmra.mrb[0].mxu0 %v2883
        %v2960 = vpop.f32.mrb[0].mxu0
        %v2961 = vadd.f32 0.0, %v2960
        %v2962 = vpop.f32.mrb[0].mxu0
        %2963 = vdwg.mxu0
        %2964 = vrot.lane.b32.xlu0 %v768, 64
        %v2965 = vpop.permute.xlu0 %2964
        %2966 = vrot.lane.b32.xlu0 %v773, 64
        %v2967 = vpop.permute.xlu0 %2966
        %2968 = vrot.lane.b32.xlu0 %v921, 64
        %v2969 = vpop.permute.xlu0 %2968
        %2970 = vrot.lane.b32.xlu0 %v926, 64
        %v2971 = vpop.permute.xlu0 %2970
        %v2972 = vsel %vm622, %v2965, 0
        %v2974 = vsel %vm622, %v2967, 0
        %v2976 = vsel %vm622, %v2969, 0
        %v2978 = vsel %vm622, %v2971, 0
        %2980 = vmatprep.subr.mxu0 0.0
        %2981 = vmatpush1.xpose.msra.mxu0 %v2976
        %2982 = vmatprep.subr.mxu0 0.0
        %2983 = vmatpush1.xpose.msra.mxu0 %v2978
        %2984 = vmatprep.subr.mxu0 0.0
        %2985 = vmatpush1.xpose.msra.mxu0 0.0
        %2986 = vmatprep.subr.mxu0 0.0
        %2987 = vmatpush1.xpose.msra.mxu0 0.0
        %2988 = vmatprep.subr.mxu0 0.0
        %2989 = vmatpush1.xpose.msra.mxu0 0.0
        %2990 = vmatprep.subr.mxu0 0.0
        %2991 = vmatpush1.xpose.msra.mxu0 0.0
        %2992 = vmatprep.subr.mxu0 0.0
        %2993 = vmatpush1.xpose.msra.mxu0 0.0
        %2994 = vmatprep.subr.mxu0 0.0
        %2995 = vmatpush1.xpose.msra.mxu0 0.0
        %2996 = vmatprep.subr.mxu0 0.0
        %2997 = vmatpush1.xpose.msra.mxu0 0.0
        %2998 = vmatprep.subr.mxu0 0.0
        %2999 = vmatpush1.xpose.msra.mxu0 0.0
        %3000 = vmatprep.subr.mxu0 0.0
        %3001 = vmatpush1.xpose.msra.mxu0 0.0
        %3002 = vmatprep.subr.mxu0 0.0
        %3003 = vmatpush1.xpose.msra.mxu0 0.0
        %3004 = vmatprep.subr.mxu0 0.0
        %3005 = vmatpush1.xpose.msra.mxu0 0.0
        %3006 = vmatprep.subr.mxu0 0.0
        %3007 = vmatpush1.xpose.msra.mxu0 0.0
        %3008 = vmatprep.subr.mxu0 0.0
        %3009 = vmatpush1.xpose.msra.mxu0 0.0
        %3010 = vmatprep.subr.mxu0 0.0
        %3011 = vmatpush1.xpose.msra.mxu0 0.0
        %3012 = vmatprep.subr.mxu0 0.0
        %3013 = vmatpush1.xpose.msra.mxu0 0.0
        %3014 = vmatprep.subr.mxu0 0.0
        %3015 = vmatpush1.xpose.msra.mxu0 0.0
        %3016 = vmatprep.subr.mxu0 0.0
        %3017 = vmatpush1.xpose.msra.mxu0 0.0
        %3018 = vmatprep.subr.mxu0 0.0
        %3019 = vmatpush1.xpose.msra.mxu0 0.0
        %3020 = vmatprep.subr.mxu0 0.0
        %3021 = vmatpush1.xpose.msra.mxu0 0.0
        %3022 = vmatprep.subr.mxu0 0.0
        %3023 = vmatpush1.xpose.msra.mxu0 0.0
        %3024 = vmatprep.subr.mxu0 0.0
        %3025 = vmatpush1.xpose.msra.mxu0 0.0
        %3026 = vmatprep.subr.mxu0 0.0
        %3027 = vmatpush1.xpose.msra.mxu0 0.0
        %3028 = vmatprep.subr.mxu0 0.0
        %3029 = vmatpush1.xpose.msra.mxu0 0.0
        %3030 = vmatprep.subr.mxu0 0.0
        %3031 = vmatpush1.xpose.msra.mxu0 0.0
        %3032 = vmatprep.subr.mxu0 0.0
        %3033 = vmatpush1.xpose.msra.mxu0 0.0
        %3034 = vmatprep.subr.mxu0 0.0
        %3035 = vmatpush1.xpose.msra.mxu0 0.0
        %3036 = vmatprep.subr.mxu0 0.0
        %3037 = vmatpush1.xpose.msra.mxu0 0.0
        %3038 = vmatprep.subr.mxu0 0.0
        %3039 = vmatpush1.xpose.msra.mxu0 0.0
        %3040 = vmatprep.subr.mxu0 0.0
        %3041 = vmatpush1.xpose.msra.mxu0 0.0
        %3042 = vmatprep.subr.mxu0 0.0
        %3043 = vmatpush1.xpose.msra.mxu0 0.0
        %3044 = vmatprep.mubr.f32.mxu0 0.0
        %3045 = vmatmul.mubr.f32.gmra.mrb[0].mxu0 %v2972
        %v3046 = vpop.f32.mrb[0].mxu0
        %v3047 = vadd.f32 0.0, %v3046
        %v3048 = vpop.f32.mrb[0].mxu0
        %3049 = vmatprep.mubr.f32.mxu0 0.0
        %3050 = vmatmul.mubr.f32.gmra.mrb[0].mxu0 %v2974
        %v3051 = vpop.f32.mrb[0].mxu0
        %v3052 = vadd.f32 0.0, %v3051
        %v3053 = vpop.f32.mrb[0].mxu0
        %3054 = vdwg.mxu0
        %3055 = vrot.lane.b32.xlu0 %v778, 64
        %v3056 = vpop.permute.xlu0 %3055
        %3057 = vrot.lane.b32.xlu0 %v783, 64
        %v3058 = vpop.permute.xlu0 %3057
        %3059 = vrot.lane.b32.xlu0 %v931, 64
        %v3060 = vpop.permute.xlu0 %3059
        %3061 = vrot.lane.b32.xlu0 %v936, 64
        %v3062 = vpop.permute.xlu0 %3061
        %v3063 = vsel %vm622, %v3056, 0
        %v3065 = vsel %vm622, %v3058, 0
        %v3067 = vsel %vm622, %v3060, 0
        %v3069 = vsel %vm622, %v3062, 0
        %3071 = vmatprep.subr.mxu0 0.0
        %3072 = vmatpush1.xpose.msra.mxu0 %v3067
        %3073 = vmatprep.subr.mxu0 0.0
        %3074 = vmatpush1.xpose.msra.mxu0 %v3069
        %3075 = vmatprep.subr.mxu0 0.0
        %3076 = vmatpush1.xpose.msra.mxu0 0.0
        %3077 = vmatprep.subr.mxu0 0.0
        %3078 = vmatpush1.xpose.msra.mxu0 0.0
        %3079 = vmatprep.subr.mxu0 0.0
        %3080 = vmatpush1.xpose.msra.mxu0 0.0
        %3081 = vmatprep.subr.mxu0 0.0
        %3082 = vmatpush1.xpose.msra.mxu0 0.0
        %3083 = vmatprep.subr.mxu0 0.0
        %3084 = vmatpush1.xpose.msra.mxu0 0.0
        %3085 = vmatprep.subr.mxu0 0.0
        %3086 = vmatpush1.xpose.msra.mxu0 0.0
        %3087 = vmatprep.subr.mxu0 0.0
        %3088 = vmatpush1.xpose.msra.mxu0 0.0
        %3089 = vmatprep.subr.mxu0 0.0
        %3090 = vmatpush1.xpose.msra.mxu0 0.0
        %3091 = vmatprep.subr.mxu0 0.0
        %3092 = vmatpush1.xpose.msra.mxu0 0.0
        %3093 = vmatprep.subr.mxu0 0.0
        %3094 = vmatpush1.xpose.msra.mxu0 0.0
        %3095 = vmatprep.subr.mxu0 0.0
        %3096 = vmatpush1.xpose.msra.mxu0 0.0
        %3097 = vmatprep.subr.mxu0 0.0
        %3098 = vmatpush1.xpose.msra.mxu0 0.0
        %3099 = vmatprep.subr.mxu0 0.0
        %3100 = vmatpush1.xpose.msra.mxu0 0.0
        %3101 = vmatprep.subr.mxu0 0.0
        %3102 = vmatpush1.xpose.msra.mxu0 0.0
        %3103 = vmatprep.subr.mxu0 0.0
        %3104 = vmatpush1.xpose.msra.mxu0 0.0
        %3105 = vmatprep.subr.mxu0 0.0
        %3106 = vmatpush1.xpose.msra.mxu0 0.0
        %3107 = vmatprep.subr.mxu0 0.0
        %3108 = vmatpush1.xpose.msra.mxu0 0.0
        %3109 = vmatprep.subr.mxu0 0.0
        %3110 = vmatpush1.xpose.msra.mxu0 0.0
        %3111 = vmatprep.subr.mxu0 0.0
        %3112 = vmatpush1.xpose.msra.mxu0 0.0
        %3113 = vmatprep.subr.mxu0 0.0
        %3114 = vmatpush1.xpose.msra.mxu0 0.0
        %3115 = vmatprep.subr.mxu0 0.0
        %3116 = vmatpush1.xpose.msra.mxu0 0.0
        %3117 = vmatprep.subr.mxu0 0.0
        %3118 = vmatpush1.xpose.msra.mxu0 0.0
        %3119 = vmatprep.subr.mxu0 0.0
        %3120 = vmatpush1.xpose.msra.mxu0 0.0
        %3121 = vmatprep.subr.mxu0 0.0
        %3122 = vmatpush1.xpose.msra.mxu0 0.0
        %3123 = vmatprep.subr.mxu0 0.0
        %3124 = vmatpush1.xpose.msra.mxu0 0.0
        %3125 = vmatprep.subr.mxu0 0.0
        %3126 = vmatpush1.xpose.msra.mxu0 0.0
        %3127 = vmatprep.subr.mxu0 0.0
        %3128 = vmatpush1.xpose.msra.mxu0 0.0
        %3129 = vmatprep.subr.mxu0 0.0
        %3130 = vmatpush1.xpose.msra.mxu0 0.0
        %3131 = vmatprep.subr.mxu0 0.0
        %3132 = vmatpush1.xpose.msra.mxu0 0.0
        %3133 = vmatprep.subr.mxu0 0.0
        %3134 = vmatpush1.xpose.msra.mxu0 0.0
        %3135 = vmatprep.mubr.f32.mxu0 0.0
        %3136 = vmatmul.mubr.f32.gmra.mrb[0].mxu0 %v3063
        %v3137 = vpop.f32.mrb[0].mxu0
        %v3138 = vadd.f32 0.0, %v3137
        %v3139 = vpop.f32.mrb[0].mxu0
        %3140 = vmatprep.mubr.f32.mxu0 0.0
        %3141 = vmatmul.mubr.f32.gmra.mrb[0].mxu0 %v3065
        %v3142 = vpop.f32.mrb[0].mxu0
        %v3143 = vadd.f32 0.0, %v3142
        %v3144 = vpop.f32.mrb[0].mxu0
        %3145 = vdwg.mxu0
        %3146 = vrot.lane.b32.xlu0 %v788, 64
        %v3147 = vpop.permute.xlu0 %3146
        %3148 = vrot.lane.b32.xlu0 %v793, 64
        %v3149 = vpop.permute.xlu0 %3148
        %3150 = vrot.lane.b32.xlu0 %v941, 64
        %v3151 = vpop.permute.xlu0 %3150
        %3152 = vrot.lane.b32.xlu0 %v946, 64
        %v3153 = vpop.permute.xlu0 %3152
        %v3154 = vsel %vm622, %v3147, 0
        %v3156 = vsel %vm622, %v3149, 0
        %v3158 = vsel %vm622, %v3151, 0
        %v3160 = vsel %vm622, %v3153, 0
        %3162 = vmatprep.subr.mxu0 0.0
        %3163 = vmatpush1.xpose.msra.mxu0 %v3158
        %3164 = vmatprep.subr.mxu0 0.0
        %3165 = vmatpush1.xpose.msra.mxu0 %v3160
        %3166 = vmatprep.subr.mxu0 0.0
        %3167 = vmatpush1.xpose.msra.mxu0 0.0
        %3168 = vmatprep.subr.mxu0 0.0
        %3169 = vmatpush1.xpose.msra.mxu0 0.0
        %3170 = vmatprep.subr.mxu0 0.0
        %3171 = vmatpush1.xpose.msra.mxu0 0.0
        %3172 = vmatprep.subr.mxu0 0.0
        %3173 = vmatpush1.xpose.msra.mxu0 0.0
        %3174 = vmatprep.subr.mxu0 0.0
        %3175 = vmatpush1.xpose.msra.mxu0 0.0
        %3176 = vmatprep.subr.mxu0 0.0
        %3177 = vmatpush1.xpose.msra.mxu0 0.0
        %3178 = vmatprep.subr.mxu0 0.0
        %3179 = vmatpush1.xpose.msra.mxu0 0.0
        %3180 = vmatprep.subr.mxu0 0.0
        %3181 = vmatpush1.xpose.msra.mxu0 0.0
        %3182 = vmatprep.subr.mxu0 0.0
        %3183 = vmatpush1.xpose.msra.mxu0 0.0
        %3184 = vmatprep.subr.mxu0 0.0
        %3185 = vmatpush1.xpose.msra.mxu0 0.0
        %3186 = vmatprep.subr.mxu0 0.0
        %3187 = vmatpush1.xpose.msra.mxu0 0.0
        %3188 = vmatprep.subr.mxu0 0.0
        %3189 = vmatpush1.xpose.msra.mxu0 0.0
        %3190 = vmatprep.subr.mxu0 0.0
        %3191 = vmatpush1.xpose.msra.mxu0 0.0
        %3192 = vmatprep.subr.mxu0 0.0
        %3193 = vmatpush1.xpose.msra.mxu0 0.0
        %3194 = vmatprep.subr.mxu0 0.0
        %3195 = vmatpush1.xpose.msra.mxu0 0.0
        %3196 = vmatprep.subr.mxu0 0.0
        %3197 = vmatpush1.xpose.msra.mxu0 0.0
        %3198 = vmatprep.subr.mxu0 0.0
        %3199 = vmatpush1.xpose.msra.mxu0 0.0
        %3200 = vmatprep.subr.mxu0 0.0
        %3201 = vmatpush1.xpose.msra.mxu0 0.0
        %3202 = vmatprep.subr.mxu0 0.0
        %3203 = vmatpush1.xpose.msra.mxu0 0.0
        %3204 = vmatprep.subr.mxu0 0.0
        %3205 = vmatpush1.xpose.msra.mxu0 0.0
        %3206 = vmatprep.subr.mxu0 0.0
        %3207 = vmatpush1.xpose.msra.mxu0 0.0
        %3208 = vmatprep.subr.mxu0 0.0
        %3209 = vmatpush1.xpose.msra.mxu0 0.0
        %3210 = vmatprep.subr.mxu0 0.0
        %3211 = vmatpush1.xpose.msra.mxu0 0.0
        %3212 = vmatprep.subr.mxu0 0.0
        %3213 = vmatpush1.xpose.msra.mxu0 0.0
        %3214 = vmatprep.subr.mxu0 0.0
        %3215 = vmatpush1.xpose.msra.mxu0 0.0
        %3216 = vmatprep.subr.mxu0 0.0
        %3217 = vmatpush1.xpose.msra.mxu0 0.0
        %3218 = vmatprep.subr.mxu0 0.0
        %3219 = vmatpush1.xpose.msra.mxu0 0.0
        %3220 = vmatprep.subr.mxu0 0.0
        %3221 = vmatpush1.xpose.msra.mxu0 0.0
        %3222 = vmatprep.subr.mxu0 0.0
        %3223 = vmatpush1.xpose.msra.mxu0 0.0
        %3224 = vmatprep.subr.mxu0 0.0
        %3225 = vmatpush1.xpose.msra.mxu0 0.0
        %3226 = vmatprep.mubr.f32.mxu0 0.0
        %3227 = vmatmul.mubr.f32.gmra.mrb[0].mxu0 %v3154
        %v3228 = vpop.f32.mrb[0].mxu0
        %v3229 = vadd.f32 0.0, %v3228
        %v3230 = vpop.f32.mrb[0].mxu0
        %3231 = vmatprep.mubr.f32.mxu0 0.0
        %3232 = vmatmul.mubr.f32.gmra.mrb[0].mxu0 %v3156
        %v3233 = vpop.f32.mrb[0].mxu0
        %v3234 = vadd.f32 0.0, %v3233
        %v3235 = vpop.f32.mrb[0].mxu0
        %3236 = vdwg.mxu0
        %3237 = vrot.lane.b32.xlu0 %v798, 64
        %v3238 = vpop.permute.xlu0 %3237
        %3239 = vrot.lane.b32.xlu0 %v803, 64
        %v3240 = vpop.permute.xlu0 %3239
        %3241 = vrot.lane.b32.xlu0 %v951, 64
        %v3242 = vpop.permute.xlu0 %3241
        %3243 = vrot.lane.b32.xlu0 %v956, 64
        %v3244 = vpop.permute.xlu0 %3243
        %v3245 = vsel %vm622, %v3238, 0
        %v3247 = vsel %vm622, %v3240, 0
        %v3249 = vsel %vm622, %v3242, 0
        %v3251 = vsel %vm622, %v3244, 0
        %3253 = vmatprep.subr.mxu0 0.0
        %3254 = vmatpush1.xpose.msra.mxu0 %v3249
        %3255 = vmatprep.subr.mxu0 0.0
        %3256 = vmatpush1.xpose.msra.mxu0 %v3251
        %3257 = vmatprep.subr.mxu0 0.0
        %3258 = vmatpush1.xpose.msra.mxu0 0.0
        %3259 = vmatprep.subr.mxu0 0.0
        %3260 = vmatpush1.xpose.msra.mxu0 0.0
        %3261 = vmatprep.subr.mxu0 0.0
        %3262 = vmatpush1.xpose.msra.mxu0 0.0
        %3263 = vmatprep.subr.mxu0 0.0
        %3264 = vmatpush1.xpose.msra.mxu0 0.0
        %3265 = vmatprep.subr.mxu0 0.0
        %3266 = vmatpush1.xpose.msra.mxu0 0.0
        %3267 = vmatprep.subr.mxu0 0.0
        %3268 = vmatpush1.xpose.msra.mxu0 0.0
        %3269 = vmatprep.subr.mxu0 0.0
        %3270 = vmatpush1.xpose.msra.mxu0 0.0
        %3271 = vmatprep.subr.mxu0 0.0
        %3272 = vmatpush1.xpose.msra.mxu0 0.0
        %3273 = vmatprep.subr.mxu0 0.0
        %3274 = vmatpush1.xpose.msra.mxu0 0.0
        %3275 = vmatprep.subr.mxu0 0.0
        %3276 = vmatpush1.xpose.msra.mxu0 0.0
        %3277 = vmatprep.subr.mxu0 0.0
        %3278 = vmatpush1.xpose.msra.mxu0 0.0
        %3279 = vmatprep.subr.mxu0 0.0
        %3280 = vmatpush1.xpose.msra.mxu0 0.0
        %3281 = vmatprep.subr.mxu0 0.0
        %3282 = vmatpush1.xpose.msra.mxu0 0.0
        %3283 = vmatprep.subr.mxu0 0.0
        %3284 = vmatpush1.xpose.msra.mxu0 0.0
        %3285 = vmatprep.subr.mxu0 0.0
        %3286 = vmatpush1.xpose.msra.mxu0 0.0
        %3287 = vmatprep.subr.mxu0 0.0
        %3288 = vmatpush1.xpose.msra.mxu0 0.0
        %3289 = vmatprep.subr.mxu0 0.0
        %3290 = vmatpush1.xpose.msra.mxu0 0.0
        %3291 = vmatprep.subr.mxu0 0.0
        %3292 = vmatpush1.xpose.msra.mxu0 0.0
        %3293 = vmatprep.subr.mxu0 0.0
        %3294 = vmatpush1.xpose.msra.mxu0 0.0
        %3295 = vmatprep.subr.mxu0 0.0
        %3296 = vmatpush1.xpose.msra.mxu0 0.0
        %3297 = vmatprep.subr.mxu0 0.0
        %3298 = vmatpush1.xpose.msra.mxu0 0.0
        %3299 = vmatprep.subr.mxu0 0.0
        %3300 = vmatpush1.xpose.msra.mxu0 0.0
        %3301 = vmatprep.subr.mxu0 0.0
        %3302 = vmatpush1.xpose.msra.mxu0 0.0
        %3303 = vmatprep.subr.mxu0 0.0
        %3304 = vmatpush1.xpose.msra.mxu0 0.0
        %3305 = vmatprep.subr.mxu0 0.0
        %3306 = vmatpush1.xpose.msra.mxu0 0.0
        %3307 = vmatprep.subr.mxu0 0.0
        %3308 = vmatpush1.xpose.msra.mxu0 0.0
        %3309 = vmatprep.subr.mxu0 0.0
        %3310 = vmatpush1.xpose.msra.mxu0 0.0
        %3311 = vmatprep.subr.mxu0 0.0
        %3312 = vmatpush1.xpose.msra.mxu0 0.0
        %3313 = vmatprep.subr.mxu0 0.0
        %3314 = vmatpush1.xpose.msra.mxu0 0.0
        %3315 = vmatprep.subr.mxu0 0.0
        %3316 = vmatpush1.xpose.msra.mxu0 0.0
        %3317 = vmatprep.mubr.f32.mxu0 0.0
        %3318 = vmatmul.mubr.f32.gmra.mrb[0].mxu0 %v3245
        %v3319 = vpop.f32.mrb[0].mxu0
        %v3320 = vadd.f32 0.0, %v3319
        %v3321 = vpop.f32.mrb[0].mxu0
        %3322 = vmatprep.mubr.f32.mxu0 0.0
        %3323 = vmatmul.mubr.f32.gmra.mrb[0].mxu0 %v3247
        %v3324 = vpop.f32.mrb[0].mxu0
        %v3325 = vadd.f32 0.0, %v3324
        %v3326 = vpop.f32.mrb[0].mxu0
        %3327 = vdwg.mxu0
        %3328 = vrot.lane.b32.xlu0 %v808, 64
        %v3329 = vpop.permute.xlu0 %3328
        %3330 = vrot.lane.b32.xlu0 %v813, 64
        %v3331 = vpop.permute.xlu0 %3330
        %3332 = vrot.lane.b32.xlu0 %v961, 64
        %v3333 = vpop.permute.xlu0 %3332
        %3334 = vrot.lane.b32.xlu0 %v966, 64
        %v3335 = vpop.permute.xlu0 %3334
        %v3336 = vsel %vm622, %v3329, 0
        %v3338 = vsel %vm622, %v3331, 0
        %v3340 = vsel %vm622, %v3333, 0
        %v3342 = vsel %vm622, %v3335, 0
        %3344 = vmatprep.subr.mxu0 0.0
        %3345 = vmatpush1.xpose.msra.mxu0 %v3340
        %3346 = vmatprep.subr.mxu0 0.0
        %3347 = vmatpush1.xpose.msra.mxu0 %v3342
        %3348 = vmatprep.subr.mxu0 0.0
        %3349 = vmatpush1.xpose.msra.mxu0 0.0
        %3350 = vmatprep.subr.mxu0 0.0
        %3351 = vmatpush1.xpose.msra.mxu0 0.0
        %3352 = vmatprep.subr.mxu0 0.0
        %3353 = vmatpush1.xpose.msra.mxu0 0.0
        %3354 = vmatprep.subr.mxu0 0.0
        %3355 = vmatpush1.xpose.msra.mxu0 0.0
        %3356 = vmatprep.subr.mxu0 0.0
        %3357 = vmatpush1.xpose.msra.mxu0 0.0
        %3358 = vmatprep.subr.mxu0 0.0
        %3359 = vmatpush1.xpose.msra.mxu0 0.0
        %3360 = vmatprep.subr.mxu0 0.0
        %3361 = vmatpush1.xpose.msra.mxu0 0.0
        %3362 = vmatprep.subr.mxu0 0.0
        %3363 = vmatpush1.xpose.msra.mxu0 0.0
        %3364 = vmatprep.subr.mxu0 0.0
        %3365 = vmatpush1.xpose.msra.mxu0 0.0
        %3366 = vmatprep.subr.mxu0 0.0
        %3367 = vmatpush1.xpose.msra.mxu0 0.0
        %3368 = vmatprep.subr.mxu0 0.0
        %3369 = vmatpush1.xpose.msra.mxu0 0.0
        %3370 = vmatprep.subr.mxu0 0.0
        %3371 = vmatpush1.xpose.msra.mxu0 0.0
        %3372 = vmatprep.subr.mxu0 0.0
        %3373 = vmatpush1.xpose.msra.mxu0 0.0
        %3374 = vmatprep.subr.mxu0 0.0
        %3375 = vmatpush1.xpose.msra.mxu0 0.0
        %3376 = vmatprep.subr.mxu0 0.0
        %3377 = vmatpush1.xpose.msra.mxu0 0.0
        %3378 = vmatprep.subr.mxu0 0.0
        %3379 = vmatpush1.xpose.msra.mxu0 0.0
        %3380 = vmatprep.subr.mxu0 0.0
        %3381 = vmatpush1.xpose.msra.mxu0 0.0
        %3382 = vmatprep.subr.mxu0 0.0
        %3383 = vmatpush1.xpose.msra.mxu0 0.0
        %3384 = vmatprep.subr.mxu0 0.0
        %3385 = vmatpush1.xpose.msra.mxu0 0.0
        %3386 = vmatprep.subr.mxu0 0.0
        %3387 = vmatpush1.xpose.msra.mxu0 0.0
        %3388 = vmatprep.subr.mxu0 0.0
        %3389 = vmatpush1.xpose.msra.mxu0 0.0
        %3390 = vmatprep.subr.mxu0 0.0
        %3391 = vmatpush1.xpose.msra.mxu0 0.0
        %3392 = vmatprep.subr.mxu0 0.0
        %3393 = vmatpush1.xpose.msra.mxu0 0.0
        %3394 = vmatprep.subr.mxu0 0.0
        %3395 = vmatpush1.xpose.msra.mxu0 0.0
        %3396 = vmatprep.subr.mxu0 0.0
        %3397 = vmatpush1.xpose.msra.mxu0 0.0
        %3398 = vmatprep.subr.mxu0 0.0
        %3399 = vmatpush1.xpose.msra.mxu0 0.0
        %3400 = vmatprep.subr.mxu0 0.0
        %3401 = vmatpush1.xpose.msra.mxu0 0.0
        %3402 = vmatprep.subr.mxu0 0.0
        %3403 = vmatpush1.xpose.msra.mxu0 0.0
        %3404 = vmatprep.subr.mxu0 0.0
        %3405 = vmatpush1.xpose.msra.mxu0 0.0
        %3406 = vmatprep.subr.mxu0 0.0
        %3407 = vmatpush1.xpose.msra.mxu0 0.0
        %3408 = vmatprep.mubr.f32.mxu0 0.0
        %3409 = vmatmul.mubr.f32.gmra.mrb[0].mxu0 %v3336
        %v3410 = vpop.f32.mrb[0].mxu0
        %v3411 = vadd.f32 0.0, %v3410
        %v3412 = vpop.f32.mrb[0].mxu0
        %3413 = vmatprep.mubr.f32.mxu0 0.0
        %3414 = vmatmul.mubr.f32.gmra.mrb[0].mxu0 %v3338
        %v3415 = vpop.f32.mrb[0].mxu0
        %v3416 = vadd.f32 0.0, %v3415
        %v3417 = vpop.f32.mrb[0].mxu0
        %3418 = vdwg.mxu0
        %v3419 = vmul.f32 %v2774, 0.125
        %v3420 = vmul.f32 %v2779, 0.125
        %v3421 = vmul.f32 %v2865, 0.125
        %v3422 = vmul.f32 %v2870, 0.125
        %v3423 = vmul.f32 %v2956, 0.125
        %v3424 = vmul.f32 %v2961, 0.125
        %v3425 = vmul.f32 %v3047, 0.125
        %v3426 = vmul.f32 %v3052, 0.125
        %v3427 = vmul.f32 %v3138, 0.125
        %v3428 = vmul.f32 %v3143, 0.125
        %v3429 = vmul.f32 %v3229, 0.125
        %v3430 = vmul.f32 %v3234, 0.125
        %v3431 = vmul.f32 %v3320, 0.125
        %v3432 = vmul.f32 %v3325, 0.125
        %v3433 = vmul.f32 %v3411, 0.125
        %v3434 = vmul.f32 %v3416, 0.125
        %v3435 = vadd.f32 %v3419, %v613
        %v3436 = vadd.f32 %v3420, %v613
        %v3437 = vadd.f32 %v3421, %v613
        %v3438 = vadd.f32 %v3422, %v613
        %v3439 = vadd.f32 %v3423, %v613
        %v3440 = vadd.f32 %v3424, %v613
        %v3441 = vadd.f32 %v3425, %v613
        %v3442 = vadd.f32 %v3426, %v613
        %v3443 = vadd.f32 %v3427, %v613
        %v3444 = vadd.f32 %v3428, %v613
        %v3445 = vadd.f32 %v3429, %v613
        %v3446 = vadd.f32 %v3430, %v613
        %v3447 = vadd.f32 %v3431, %v613
        %v3448 = vadd.f32 %v3432, %v613
        %v3449 = vadd.f32 %v3433, %v613
        %v3450 = vadd.f32 %v3434, %v613
        %v3451 = vsel %vm1850, %v3435, -inf
        %3452 = vmax.xlane.f32.xlu0 %v3451
        %v3453 = vpop.xlane.xlu0 %3452
        %v3454 = vsel %vm1850, %v3436, -inf
        %3455 = vmax.xlane.f32.xlu0 %v3454
        %v3456 = vpop.xlane.xlu0 %3455
        %v3457 = vsel %vm1850, %v3437, -inf
        %3458 = vmax.xlane.f32.xlu0 %v3457
        %v3459 = vpop.xlane.xlu0 %3458
        %v3460 = vsel %vm1850, %v3438, -inf
        %3461 = vmax.xlane.f32.xlu0 %v3460
        %v3462 = vpop.xlane.xlu0 %3461
        %v3463 = vsel %vm1850, %v3439, -inf
        %3464 = vmax.xlane.f32.xlu0 %v3463
        %v3465 = vpop.xlane.xlu0 %3464
        %v3466 = vsel %vm1850, %v3440, -inf
        %3467 = vmax.xlane.f32.xlu0 %v3466
        %v3468 = vpop.xlane.xlu0 %3467
        %v3469 = vsel %vm1850, %v3441, -inf
        %3470 = vmax.xlane.f32.xlu0 %v3469
        %v3471 = vpop.xlane.xlu0 %3470
        %v3472 = vsel %vm1850, %v3442, -inf
        %3473 = vmax.xlane.f32.xlu0 %v3472
        %v3474 = vpop.xlane.xlu0 %3473
        %v3475 = vsel %vm1850, %v3443, -inf
        %3476 = vmax.xlane.f32.xlu0 %v3475
        %v3477 = vpop.xlane.xlu0 %3476
        %v3478 = vsel %vm1850, %v3444, -inf
        %3479 = vmax.xlane.f32.xlu0 %v3478
        %v3480 = vpop.xlane.xlu0 %3479
        %v3481 = vsel %vm1850, %v3445, -inf
        %3482 = vmax.xlane.f32.xlu0 %v3481
        %v3483 = vpop.xlane.xlu0 %3482
        %v3484 = vsel %vm1850, %v3446, -inf
        %3485 = vmax.xlane.f32.xlu0 %v3484
        %v3486 = vpop.xlane.xlu0 %3485
        %v3487 = vsel %vm1850, %v3447, -inf
        %3488 = vmax.xlane.f32.xlu0 %v3487
        %v3489 = vpop.xlane.xlu0 %3488
        %v3490 = vsel %vm1850, %v3448, -inf
        %3491 = vmax.xlane.f32.xlu0 %v3490
        %v3492 = vpop.xlane.xlu0 %3491
        %v3493 = vsel %vm1850, %v3449, -inf
        %3494 = vmax.xlane.f32.xlu0 %v3493
        %v3495 = vpop.xlane.xlu0 %3494
        %v3496 = vsel %vm1850, %v3450, -inf
        %3497 = vmax.xlane.f32.xlu0 %v3496
        %v3498 = vpop.xlane.xlu0 %3497
        %v3499 = vsub.f32 %v3435, %v3453
        %v3500 = vsub.f32 %v3436, %v3456
        %v3501 = vsub.f32 %v3437, %v3459
        %v3502 = vsub.f32 %v3438, %v3462
        %v3503 = vsub.f32 %v3439, %v3465
        %v3504 = vsub.f32 %v3440, %v3468
        %v3505 = vsub.f32 %v3441, %v3471
        %v3506 = vsub.f32 %v3442, %v3474
        %v3507 = vsub.f32 %v3443, %v3477
        %v3508 = vsub.f32 %v3444, %v3480
        %v3509 = vsub.f32 %v3445, %v3483
        %v3510 = vsub.f32 %v3446, %v3486
        %v3511 = vsub.f32 %v3447, %v3489
        %v3512 = vsub.f32 %v3448, %v3492
        %v3513 = vsub.f32 %v3449, %v3495
        %v3514 = vsub.f32 %v3450, %v3498
        %v3515 = vmul.f32 %v3499, 1.442695
        %v3516 = vpow.pop %v3515
        %v3517 = vmul.f32 %v3500, 1.442695
        %v3518 = vpow.pop %v3517
        %v3519 = vmul.f32 %v3501, 1.442695
        %v3520 = vpow.pop %v3519
        %v3521 = vmul.f32 %v3502, 1.442695
        %v3522 = vpow.pop %v3521
        %v3523 = vmul.f32 %v3503, 1.442695
        %v3524 = vpow.pop %v3523
        %v3525 = vmul.f32 %v3504, 1.442695
        %v3526 = vpow.pop %v3525
        %v3527 = vmul.f32 %v3505, 1.442695
        %v3528 = vpow.pop %v3527
        %v3529 = vmul.f32 %v3506, 1.442695
        %v3530 = vpow.pop %v3529
        %v3531 = vmul.f32 %v3507, 1.442695
        %v3532 = vpow.pop %v3531
        %v3533 = vmul.f32 %v3508, 1.442695
        %v3534 = vpow.pop %v3533
        %v3535 = vmul.f32 %v3509, 1.442695
        %v3536 = vpow.pop %v3535
        %v3537 = vmul.f32 %v3510, 1.442695
        %v3538 = vpow.pop %v3537
        %v3539 = vmul.f32 %v3511, 1.442695
        %v3540 = vpow.pop %v3539
        %v3541 = vmul.f32 %v3512, 1.442695
        %v3542 = vpow.pop %v3541
        %v3543 = vmul.f32 %v3513, 1.442695
        %v3544 = vpow.pop %v3543
        %v3545 = vmul.f32 %v3514, 1.442695
        %v3546 = vpow.pop %v3545
        %v3547 = vsel %vm1850, %v3516, 0.0
        %3548 = vadd.xlane.f32.xlu0 %v3547
        %v3549 = vpop.xlane.xlu0 %3548
        %v3550 = vsel %vm1850, %v3518, 0.0
        %3551 = vadd.xlane.f32.xlu0 %v3550
        %v3552 = vpop.xlane.xlu0 %3551
        %v3553 = vsel %vm1850, %v3520, 0.0
        %3554 = vadd.xlane.f32.xlu0 %v3553
        %v3555 = vpop.xlane.xlu0 %3554
        %v3556 = vsel %vm1850, %v3522, 0.0
        %3557 = vadd.xlane.f32.xlu0 %v3556
        %v3558 = vpop.xlane.xlu0 %3557
        %v3559 = vsel %vm1850, %v3524, 0.0
        %3560 = vadd.xlane.f32.xlu0 %v3559
        %v3561 = vpop.xlane.xlu0 %3560
        %v3562 = vsel %vm1850, %v3526, 0.0
        %3563 = vadd.xlane.f32.xlu0 %v3562
        %v3564 = vpop.xlane.xlu0 %3563
        %v3565 = vsel %vm1850, %v3528, 0.0
        %3566 = vadd.xlane.f32.xlu0 %v3565
        %v3567 = vpop.xlane.xlu0 %3566
        %v3568 = vsel %vm1850, %v3530, 0.0
        %3569 = vadd.xlane.f32.xlu0 %v3568
        %v3570 = vpop.xlane.xlu0 %3569
        %v3571 = vsel %vm1850, %v3532, 0.0
        %3572 = vadd.xlane.f32.xlu0 %v3571
        %v3573 = vpop.xlane.xlu0 %3572
        %v3574 = vsel %vm1850, %v3534, 0.0
        %3575 = vadd.xlane.f32.xlu0 %v3574
        %v3576 = vpop.xlane.xlu0 %3575
        %v3577 = vsel %vm1850, %v3536, 0.0
        %3578 = vadd.xlane.f32.xlu0 %v3577
        %v3579 = vpop.xlane.xlu0 %3578
        %v3580 = vsel %vm1850, %v3538, 0.0
        %3581 = vadd.xlane.f32.xlu0 %v3580
        %v3582 = vpop.xlane.xlu0 %3581
        %v3583 = vsel %vm1850, %v3540, 0.0
        %3584 = vadd.xlane.f32.xlu0 %v3583
        %v3585 = vpop.xlane.xlu0 %3584
        %v3586 = vsel %vm1850, %v3542, 0.0
        %3587 = vadd.xlane.f32.xlu0 %v3586
        %v3588 = vpop.xlane.xlu0 %3587
        %v3589 = vsel %vm1850, %v3544, 0.0
        %3590 = vadd.xlane.f32.xlu0 %v3589
        %v3591 = vpop.xlane.xlu0 %3590
        %v3592 = vsel %vm1850, %v3546, 0.0
        %3593 = vadd.xlane.f32.xlu0 %v3592
        %v3594 = vpop.xlane.xlu0 %3593
        %v3595 = vrcp.pop %v3549
        %v3596 = vrcp.pop %v3552
        %v3597 = vrcp.pop %v3555
        %v3598 = vrcp.pop %v3558
        %v3599 = vrcp.pop %v3561
        %v3600 = vrcp.pop %v3564
        %v3601 = vrcp.pop %v3567
        %v3602 = vrcp.pop %v3570
        %v3603 = vrcp.pop %v3573
        %v3604 = vrcp.pop %v3576
        %v3605 = vrcp.pop %v3579
        %v3606 = vrcp.pop %v3582
        %v3607 = vrcp.pop %v3585
        %v3608 = vrcp.pop %v3588
        %v3609 = vrcp.pop %v3591
        %v3610 = vrcp.pop %v3594
        %v3611 = vmul.f32 %v3516, %v3595
        %v3612 = vmul.f32 %v3518, %v3596
        %v3613 = vmul.f32 %v3520, %v3597
        %v3614 = vmul.f32 %v3522, %v3598
        %v3615 = vmul.f32 %v3524, %v3599
        %v3616 = vmul.f32 %v3526, %v3600
        %v3617 = vmul.f32 %v3528, %v3601
        %v3618 = vmul.f32 %v3530, %v3602
        %v3619 = vmul.f32 %v3532, %v3603
        %v3620 = vmul.f32 %v3534, %v3604
        %v3621 = vmul.f32 %v3536, %v3605
        %v3622 = vmul.f32 %v3538, %v3606
        %v3623 = vmul.f32 %v3540, %v3607
        %v3624 = vmul.f32 %v3542, %v3608
        %v3625 = vmul.f32 %v3544, %v3609
        %v3626 = vmul.f32 %v3546, %v3610
        %s3627 = scalar_lea.vmem %s361, 128 [#allocation2]
        %3628 = vst.msk [vmem:[%s3627] sm:$0xff] %vm1850, %v3611
        %3629 = vst.msk [vmem:[%s3627 + $0x8] sm:$0xff] %vm1850, %v3612
        %3630 = vst.msk [vmem:[%s3627 + $0x10] sm:$0xff] %vm1850, %v3613
        %3631 = vst.msk [vmem:[%s3627 + $0x18] sm:$0xff] %vm1850, %v3614
        %3632 = vst.msk [vmem:[%s3627 + $0x20] sm:$0xff] %vm1850, %v3615
        %3633 = vst.msk [vmem:[%s3627 + $0x28] sm:$0xff] %vm1850, %v3616
        %3634 = vst.msk [vmem:[%s3627 + $0x30] sm:$0xff] %vm1850, %v3617
        %3635 = vst.msk [vmem:[%s3627 + $0x38] sm:$0xff] %vm1850, %v3618
        %3636 = vst.msk [vmem:[%s3627 + $0x40] sm:$0xff] %vm1850, %v3619
        %3637 = vst.msk [vmem:[%s3627 + $0x48] sm:$0xff] %vm1850, %v3620
        %3638 = vst.msk [vmem:[%s3627 + $0x50] sm:$0xff] %vm1850, %v3621
        %3639 = vst.msk [vmem:[%s3627 + $0x58] sm:$0xff] %vm1850, %v3622
        %3640 = vst.msk [vmem:[%s3627 + $0x60] sm:$0xff] %vm1850, %v3623
        %3641 = vst.msk [vmem:[%s3627 + $0x68] sm:$0xff] %vm1850, %v3624
        %3642 = vst.msk [vmem:[%s3627 + $0x70] sm:$0xff] %vm1850, %v3625
        %3643 = vst.msk [vmem:[%s3627 + $0x78] sm:$0xff] %vm1850, %v3626
        %3646 = vrot.lane.b32.xlu0 %v1044, 64
        %v3647 = vpop.permute.xlu0 %3646
        %3648 = vrot.lane.b32.xlu0 %v1049, 64
        %v3649 = vpop.permute.xlu0 %3648
        %v3653 = vsel %vm1850, %v3611, 0
        %v3656 = vsel %vm1850, %v3612, 0
        %3658 = vmatprep.subr.mxu0 0.0
        %3659 = vmatpush1.msra.mxu0 %v3647
        %3660 = vmatprep.subr.mxu0 0.0
        %3661 = vmatpush1.msra.mxu0 %v3649
        %3662 = vmatprep.subr.mxu0 0.0
        %3663 = vmatpush1.msra.mxu0 0.0
        %3664 = vmatprep.subr.mxu0 0.0
        %3665 = vmatpush1.msra.mxu0 0.0
        %3666 = vmatprep.subr.mxu0 0.0
        %3667 = vmatpush1.msra.mxu0 0.0
        %3668 = vmatprep.subr.mxu0 0.0
        %3669 = vmatpush1.msra.mxu0 0.0
        %3670 = vmatprep.subr.mxu0 0.0
        %3671 = vmatpush1.msra.mxu0 0.0
        %3672 = vmatprep.subr.mxu0 0.0
        %3673 = vmatpush1.msra.mxu0 0.0
        %3674 = vmatprep.subr.mxu0 0.0
        %3675 = vmatpush1.msra.mxu0 0.0
        %3676 = vmatprep.subr.mxu0 0.0
        %3677 = vmatpush1.msra.mxu0 0.0
        %3678 = vmatprep.subr.mxu0 0.0
        %3679 = vmatpush1.msra.mxu0 0.0
        %3680 = vmatprep.subr.mxu0 0.0
        %3681 = vmatpush1.msra.mxu0 0.0
        %3682 = vmatprep.subr.mxu0 0.0
        %3683 = vmatpush1.msra.mxu0 0.0
        %3684 = vmatprep.subr.mxu0 0.0
        %3685 = vmatpush1.msra.mxu0 0.0
        %3686 = vmatprep.subr.mxu0 0.0
        %3687 = vmatpush1.msra.mxu0 0.0
        %3688 = vmatprep.subr.mxu0 0.0
        %3689 = vmatpush1.msra.mxu0 0.0
        %3690 = vmatprep.subr.mxu0 0.0
        %3691 = vmatpush1.msra.mxu0 0.0
        %3692 = vmatprep.subr.mxu0 0.0
        %3693 = vmatpush1.msra.mxu0 0.0
        %3694 = vmatprep.subr.mxu0 0.0
        %3695 = vmatpush1.msra.mxu0 0.0
        %3696 = vmatprep.subr.mxu0 0.0
        %3697 = vmatpush1.msra.mxu0 0.0
        %3698 = vmatprep.subr.mxu0 0.0
        %3699 = vmatpush1.msra.mxu0 0.0
        %3700 = vmatprep.subr.mxu0 0.0
        %3701 = vmatpush1.msra.mxu0 0.0
        %3702 = vmatprep.subr.mxu0 0.0
        %3703 = vmatpush1.msra.mxu0 0.0
        %3704 = vmatprep.subr.mxu0 0.0
        %3705 = vmatpush1.msra.mxu0 0.0
        %3706 = vmatprep.subr.mxu0 0.0
        %3707 = vmatpush1.msra.mxu0 0.0
        %3708 = vmatprep.subr.mxu0 0.0
        %3709 = vmatpush1.msra.mxu0 0.0
        %3710 = vmatprep.subr.mxu0 0.0
        %3711 = vmatpush1.msra.mxu0 0.0
        %3712 = vmatprep.subr.mxu0 0.0
        %3713 = vmatpush1.msra.mxu0 0.0
        %3714 = vmatprep.subr.mxu0 0.0
        %3715 = vmatpush1.msra.mxu0 0.0
        %3716 = vmatprep.subr.mxu0 0.0
        %3717 = vmatpush1.msra.mxu0 0.0
        %3718 = vmatprep.subr.mxu0 0.0
        %3719 = vmatpush1.msra.mxu0 0.0
        %3720 = vmatprep.subr.mxu0 0.0
        %3721 = vmatpush1.msra.mxu0 0.0
        %3722 = vmatprep.mubr.f32.mxu0 0.0
        %3723 = vmatmul.mubr.f32.gmra.mrb[0].mxu0 %v3653
        %v3724 = vpop.f32.mrb[0].mxu0
        %v3725 = vadd.f32 0.0, %v3724
        %v3726 = vpop.f32.mrb[0].mxu0
        %3727 = vmatprep.mubr.f32.mxu0 0.0
        %3728 = vmatmul.mubr.f32.gmra.mrb[0].mxu0 %v3656
        %v3729 = vpop.f32.mrb[0].mxu0
        %v3730 = vadd.f32 0.0, %v3729
        %v3731 = vpop.f32.mrb[0].mxu0
        %3732 = vdwg.mxu0
        %3735 = vrot.lane.b32.xlu0 %v1054, 64
        %v3736 = vpop.permute.xlu0 %3735
        %3737 = vrot.lane.b32.xlu0 %v1059, 64
        %v3738 = vpop.permute.xlu0 %3737
        %v3742 = vsel %vm1850, %v3613, 0
        %v3745 = vsel %vm1850, %v3614, 0
        %3747 = vmatprep.subr.mxu0 0.0
        %3748 = vmatpush1.msra.mxu0 %v3736
        %3749 = vmatprep.subr.mxu0 0.0
        %3750 = vmatpush1.msra.mxu0 %v3738
        %3751 = vmatprep.subr.mxu0 0.0
        %3752 = vmatpush1.msra.mxu0 0.0
        %3753 = vmatprep.subr.mxu0 0.0
        %3754 = vmatpush1.msra.mxu0 0.0
        %3755 = vmatprep.subr.mxu0 0.0
        %3756 = vmatpush1.msra.mxu0 0.0
        %3757 = vmatprep.subr.mxu0 0.0
        %3758 = vmatpush1.msra.mxu0 0.0
        %3759 = vmatprep.subr.mxu0 0.0
        %3760 = vmatpush1.msra.mxu0 0.0
        %3761 = vmatprep.subr.mxu0 0.0
        %3762 = vmatpush1.msra.mxu0 0.0
        %3763 = vmatprep.subr.mxu0 0.0
        %3764 = vmatpush1.msra.mxu0 0.0
        %3765 = vmatprep.subr.mxu0 0.0
        %3766 = vmatpush1.msra.mxu0 0.0
        %3767 = vmatprep.subr.mxu0 0.0
        %3768 = vmatpush1.msra.mxu0 0.0
        %3769 = vmatprep.subr.mxu0 0.0
        %3770 = vmatpush1.msra.mxu0 0.0
        %3771 = vmatprep.subr.mxu0 0.0
        %3772 = vmatpush1.msra.mxu0 0.0
        %3773 = vmatprep.subr.mxu0 0.0
        %3774 = vmatpush1.msra.mxu0 0.0
        %3775 = vmatprep.subr.mxu0 0.0
        %3776 = vmatpush1.msra.mxu0 0.0
        %3777 = vmatprep.subr.mxu0 0.0
        %3778 = vmatpush1.msra.mxu0 0.0
        %3779 = vmatprep.subr.mxu0 0.0
        %3780 = vmatpush1.msra.mxu0 0.0
        %3781 = vmatprep.subr.mxu0 0.0
        %3782 = vmatpush1.msra.mxu0 0.0
        %3783 = vmatprep.subr.mxu0 0.0
        %3784 = vmatpush1.msra.mxu0 0.0
        %3785 = vmatprep.subr.mxu0 0.0
        %3786 = vmatpush1.msra.mxu0 0.0
        %3787 = vmatprep.subr.mxu0 0.0
        %3788 = vmatpush1.msra.mxu0 0.0
        %3789 = vmatprep.subr.mxu0 0.0
        %3790 = vmatpush1.msra.mxu0 0.0
        %3791 = vmatprep.subr.mxu0 0.0
        %3792 = vmatpush1.msra.mxu0 0.0
        %3793 = vmatprep.subr.mxu0 0.0
        %3794 = vmatpush1.msra.mxu0 0.0
        %3795 = vmatprep.subr.mxu0 0.0
        %3796 = vmatpush1.msra.mxu0 0.0
        %3797 = vmatprep.subr.mxu0 0.0
        %3798 = vmatpush1.msra.mxu0 0.0
        %3799 = vmatprep.subr.mxu0 0.0
        %3800 = vmatpush1.msra.mxu0 0.0
        %3801 = vmatprep.subr.mxu0 0.0
        %3802 = vmatpush1.msra.mxu0 0.0
        %3803 = vmatprep.subr.mxu0 0.0
        %3804 = vmatpush1.msra.mxu0 0.0
        %3805 = vmatprep.subr.mxu0 0.0
        %3806 = vmatpush1.msra.mxu0 0.0
        %3807 = vmatprep.subr.mxu0 0.0
        %3808 = vmatpush1.msra.mxu0 0.0
        %3809 = vmatprep.subr.mxu0 0.0
        %3810 = vmatpush1.msra.mxu0 0.0
        %3811 = vmatprep.mubr.f32.mxu0 0.0
        %3812 = vmatmul.mubr.f32.gmra.mrb[0].mxu0 %v3742
        %v3813 = vpop.f32.mrb[0].mxu0
        %v3814 = vadd.f32 0.0, %v3813
        %v3815 = vpop.f32.mrb[0].mxu0
        %3816 = vmatprep.mubr.f32.mxu0 0.0
        %3817 = vmatmul.mubr.f32.gmra.mrb[0].mxu0 %v3745
        %v3818 = vpop.f32.mrb[0].mxu0
        %v3819 = vadd.f32 0.0, %v3818
        %v3820 = vpop.f32.mrb[0].mxu0
        %3821 = vdwg.mxu0
        %3824 = vrot.lane.b32.xlu0 %v1064, 64
        %v3825 = vpop.permute.xlu0 %3824
        %3826 = vrot.lane.b32.xlu0 %v1069, 64
        %v3827 = vpop.permute.xlu0 %3826
        %v3831 = vsel %vm1850, %v3615, 0
        %v3834 = vsel %vm1850, %v3616, 0
        %3836 = vmatprep.subr.mxu0 0.0
        %3837 = vmatpush1.msra.mxu0 %v3825
        %3838 = vmatprep.subr.mxu0 0.0
        %3839 = vmatpush1.msra.mxu0 %v3827
        %3840 = vmatprep.subr.mxu0 0.0
        %3841 = vmatpush1.msra.mxu0 0.0
        %3842 = vmatprep.subr.mxu0 0.0
        %3843 = vmatpush1.msra.mxu0 0.0
        %3844 = vmatprep.subr.mxu0 0.0
        %3845 = vmatpush1.msra.mxu0 0.0
        %3846 = vmatprep.subr.mxu0 0.0
        %3847 = vmatpush1.msra.mxu0 0.0
        %3848 = vmatprep.subr.mxu0 0.0
        %3849 = vmatpush1.msra.mxu0 0.0
        %3850 = vmatprep.subr.mxu0 0.0
        %3851 = vmatpush1.msra.mxu0 0.0
        %3852 = vmatprep.subr.mxu0 0.0
        %3853 = vmatpush1.msra.mxu0 0.0
        %3854 = vmatprep.subr.mxu0 0.0
        %3855 = vmatpush1.msra.mxu0 0.0
        %3856 = vmatprep.subr.mxu0 0.0
        %3857 = vmatpush1.msra.mxu0 0.0
        %3858 = vmatprep.subr.mxu0 0.0
        %3859 = vmatpush1.msra.mxu0 0.0
        %3860 = vmatprep.subr.mxu0 0.0
        %3861 = vmatpush1.msra.mxu0 0.0
        %3862 = vmatprep.subr.mxu0 0.0
        %3863 = vmatpush1.msra.mxu0 0.0
        %3864 = vmatprep.subr.mxu0 0.0
        %3865 = vmatpush1.msra.mxu0 0.0
        %3866 = vmatprep.subr.mxu0 0.0
        %3867 = vmatpush1.msra.mxu0 0.0
        %3868 = vmatprep.subr.mxu0 0.0
        %3869 = vmatpush1.msra.mxu0 0.0
        %3870 = vmatprep.subr.mxu0 0.0
        %3871 = vmatpush1.msra.mxu0 0.0
        %3872 = vmatprep.subr.mxu0 0.0
        %3873 = vmatpush1.msra.mxu0 0.0
        %3874 = vmatprep.subr.mxu0 0.0
        %3875 = vmatpush1.msra.mxu0 0.0
        %3876 = vmatprep.subr.mxu0 0.0
        %3877 = vmatpush1.msra.mxu0 0.0
        %3878 = vmatprep.subr.mxu0 0.0
        %3879 = vmatpush1.msra.mxu0 0.0
        %3880 = vmatprep.subr.mxu0 0.0
        %3881 = vmatpush1.msra.mxu0 0.0
        %3882 = vmatprep.subr.mxu0 0.0
        %3883 = vmatpush1.msra.mxu0 0.0
        %3884 = vmatprep.subr.mxu0 0.0
        %3885 = vmatpush1.msra.mxu0 0.0
        %3886 = vmatprep.subr.mxu0 0.0
        %3887 = vmatpush1.msra.mxu0 0.0
        %3888 = vmatprep.subr.mxu0 0.0
        %3889 = vmatpush1.msra.mxu0 0.0
        %3890 = vmatprep.subr.mxu0 0.0
        %3891 = vmatpush1.msra.mxu0 0.0
        %3892 = vmatprep.subr.mxu0 0.0
        %3893 = vmatpush1.msra.mxu0 0.0
        %3894 = vmatprep.subr.mxu0 0.0
        %3895 = vmatpush1.msra.mxu0 0.0
        %3896 = vmatprep.subr.mxu0 0.0
        %3897 = vmatpush1.msra.mxu0 0.0
        %3898 = vmatprep.subr.mxu0 0.0
        %3899 = vmatpush1.msra.mxu0 0.0
        %3900 = vmatprep.mubr.f32.mxu0 0.0
        %3901 = vmatmul.mubr.f32.gmra.mrb[0].mxu0 %v3831
        %v3902 = vpop.f32.mrb[0].mxu0
        %v3903 = vadd.f32 0.0, %v3902
        %v3904 = vpop.f32.mrb[0].mxu0
        %3905 = vmatprep.mubr.f32.mxu0 0.0
        %3906 = vmatmul.mubr.f32.gmra.mrb[0].mxu0 %v3834
        %v3907 = vpop.f32.mrb[0].mxu0
        %v3908 = vadd.f32 0.0, %v3907
        %v3909 = vpop.f32.mrb[0].mxu0
        %3910 = vdwg.mxu0
        %3913 = vrot.lane.b32.xlu0 %v1074, 64
        %v3914 = vpop.permute.xlu0 %3913
        %3915 = vrot.lane.b32.xlu0 %v1079, 64
        %v3916 = vpop.permute.xlu0 %3915
        %v3920 = vsel %vm1850, %v3617, 0
        %v3923 = vsel %vm1850, %v3618, 0
        %3925 = vmatprep.subr.mxu0 0.0
        %3926 = vmatpush1.msra.mxu0 %v3914
        %3927 = vmatprep.subr.mxu0 0.0
        %3928 = vmatpush1.msra.mxu0 %v3916
        %3929 = vmatprep.subr.mxu0 0.0
        %3930 = vmatpush1.msra.mxu0 0.0
        %3931 = vmatprep.subr.mxu0 0.0
        %3932 = vmatpush1.msra.mxu0 0.0
        %3933 = vmatprep.subr.mxu0 0.0
        %3934 = vmatpush1.msra.mxu0 0.0
        %3935 = vmatprep.subr.mxu0 0.0
        %3936 = vmatpush1.msra.mxu0 0.0
        %3937 = vmatprep.subr.mxu0 0.0
        %3938 = vmatpush1.msra.mxu0 0.0
        %3939 = vmatprep.subr.mxu0 0.0
        %3940 = vmatpush1.msra.mxu0 0.0
        %3941 = vmatprep.subr.mxu0 0.0
        %3942 = vmatpush1.msra.mxu0 0.0
        %3943 = vmatprep.subr.mxu0 0.0
        %3944 = vmatpush1.msra.mxu0 0.0
        %3945 = vmatprep.subr.mxu0 0.0
        %3946 = vmatpush1.msra.mxu0 0.0
        %3947 = vmatprep.subr.mxu0 0.0
        %3948 = vmatpush1.msra.mxu0 0.0
        %3949 = vmatprep.subr.mxu0 0.0
        %3950 = vmatpush1.msra.mxu0 0.0
        %3951 = vmatprep.subr.mxu0 0.0
        %3952 = vmatpush1.msra.mxu0 0.0
        %3953 = vmatprep.subr.mxu0 0.0
        %3954 = vmatpush1.msra.mxu0 0.0
        %3955 = vmatprep.subr.mxu0 0.0
        %3956 = vmatpush1.msra.mxu0 0.0
        %3957 = vmatprep.subr.mxu0 0.0
        %3958 = vmatpush1.msra.mxu0 0.0
        %3959 = vmatprep.subr.mxu0 0.0
        %3960 = vmatpush1.msra.mxu0 0.0
        %3961 = vmatprep.subr.mxu0 0.0
        %3962 = vmatpush1.msra.mxu0 0.0
        %3963 = vmatprep.subr.mxu0 0.0
        %3964 = vmatpush1.msra.mxu0 0.0
        %3965 = vmatprep.subr.mxu0 0.0
        %3966 = vmatpush1.msra.mxu0 0.0
        %3967 = vmatprep.subr.mxu0 0.0
        %3968 = vmatpush1.msra.mxu0 0.0
        %3969 = vmatprep.subr.mxu0 0.0
        %3970 = vmatpush1.msra.mxu0 0.0
        %3971 = vmatprep.subr.mxu0 0.0
        %3972 = vmatpush1.msra.mxu0 0.0
        %3973 = vmatprep.subr.mxu0 0.0
        %3974 = vmatpush1.msra.mxu0 0.0
        %3975 = vmatprep.subr.mxu0 0.0
        %3976 = vmatpush1.msra.mxu0 0.0
        %3977 = vmatprep.subr.mxu0 0.0
        %3978 = vmatpush1.msra.mxu0 0.0
        %3979 = vmatprep.subr.mxu0 0.0
        %3980 = vmatpush1.msra.mxu0 0.0
        %3981 = vmatprep.subr.mxu0 0.0
        %3982 = vmatpush1.msra.mxu0 0.0
        %3983 = vmatprep.subr.mxu0 0.0
        %3984 = vmatpush1.msra.mxu0 0.0
        %3985 = vmatprep.subr.mxu0 0.0
        %3986 = vmatpush1.msra.mxu0 0.0
        %3987 = vmatprep.subr.mxu0 0.0
        %3988 = vmatpush1.msra.mxu0 0.0
        %3989 = vmatprep.mubr.f32.mxu0 0.0
        %3990 = vmatmul.mubr.f32.gmra.mrb[0].mxu0 %v3920
        %v3991 = vpop.f32.mrb[0].mxu0
        %v3992 = vadd.f32 0.0, %v3991
        %v3993 = vpop.f32.mrb[0].mxu0
        %3994 = vmatprep.mubr.f32.mxu0 0.0
        %3995 = vmatmul.mubr.f32.gmra.mrb[0].mxu0 %v3923
        %v3996 = vpop.f32.mrb[0].mxu0
        %v3997 = vadd.f32 0.0, %v3996
        %v3998 = vpop.f32.mrb[0].mxu0
        %3999 = vdwg.mxu0
        %4002 = vrot.lane.b32.xlu0 %v1084, 64
        %v4003 = vpop.permute.xlu0 %4002
        %4004 = vrot.lane.b32.xlu0 %v1089, 64
        %v4005 = vpop.permute.xlu0 %4004
        %v4009 = vsel %vm1850, %v3619, 0
        %v4012 = vsel %vm1850, %v3620, 0
        %4014 = vmatprep.subr.mxu0 0.0
        %4015 = vmatpush1.msra.mxu0 %v4003
        %4016 = vmatprep.subr.mxu0 0.0
        %4017 = vmatpush1.msra.mxu0 %v4005
        %4018 = vmatprep.subr.mxu0 0.0
        %4019 = vmatpush1.msra.mxu0 0.0
        %4020 = vmatprep.subr.mxu0 0.0
        %4021 = vmatpush1.msra.mxu0 0.0
        %4022 = vmatprep.subr.mxu0 0.0
        %4023 = vmatpush1.msra.mxu0 0.0
        %4024 = vmatprep.subr.mxu0 0.0
        %4025 = vmatpush1.msra.mxu0 0.0
        %4026 = vmatprep.subr.mxu0 0.0
        %4027 = vmatpush1.msra.mxu0 0.0
        %4028 = vmatprep.subr.mxu0 0.0
        %4029 = vmatpush1.msra.mxu0 0.0
        %4030 = vmatprep.subr.mxu0 0.0
        %4031 = vmatpush1.msra.mxu0 0.0
        %4032 = vmatprep.subr.mxu0 0.0
        %4033 = vmatpush1.msra.mxu0 0.0
        %4034 = vmatprep.subr.mxu0 0.0
        %4035 = vmatpush1.msra.mxu0 0.0
        %4036 = vmatprep.subr.mxu0 0.0
        %4037 = vmatpush1.msra.mxu0 0.0
        %4038 = vmatprep.subr.mxu0 0.0
        %4039 = vmatpush1.msra.mxu0 0.0
        %4040 = vmatprep.subr.mxu0 0.0
        %4041 = vmatpush1.msra.mxu0 0.0
        %4042 = vmatprep.subr.mxu0 0.0
        %4043 = vmatpush1.msra.mxu0 0.0
        %4044 = vmatprep.subr.mxu0 0.0
        %4045 = vmatpush1.msra.mxu0 0.0
        %4046 = vmatprep.subr.mxu0 0.0
        %4047 = vmatpush1.msra.mxu0 0.0
        %4048 = vmatprep.subr.mxu0 0.0
        %4049 = vmatpush1.msra.mxu0 0.0
        %4050 = vmatprep.subr.mxu0 0.0
        %4051 = vmatpush1.msra.mxu0 0.0
        %4052 = vmatprep.subr.mxu0 0.0
        %4053 = vmatpush1.msra.mxu0 0.0
        %4054 = vmatprep.subr.mxu0 0.0
        %4055 = vmatpush1.msra.mxu0 0.0
        %4056 = vmatprep.subr.mxu0 0.0
        %4057 = vmatpush1.msra.mxu0 0.0
        %4058 = vmatprep.subr.mxu0 0.0
        %4059 = vmatpush1.msra.mxu0 0.0
        %4060 = vmatprep.subr.mxu0 0.0
        %4061 = vmatpush1.msra.mxu0 0.0
        %4062 = vmatprep.subr.mxu0 0.0
        %4063 = vmatpush1.msra.mxu0 0.0
        %4064 = vmatprep.subr.mxu0 0.0
        %4065 = vmatpush1.msra.mxu0 0.0
        %4066 = vmatprep.subr.mxu0 0.0
        %4067 = vmatpush1.msra.mxu0 0.0
        %4068 = vmatprep.subr.mxu0 0.0
        %4069 = vmatpush1.msra.mxu0 0.0
        %4070 = vmatprep.subr.mxu0 0.0
        %4071 = vmatpush1.msra.mxu0 0.0
        %4072 = vmatprep.subr.mxu0 0.0
        %4073 = vmatpush1.msra.mxu0 0.0
        %4074 = vmatprep.subr.mxu0 0.0
        %4075 = vmatpush1.msra.mxu0 0.0
        %4076 = vmatprep.subr.mxu0 0.0
        %4077 = vmatpush1.msra.mxu0 0.0
        %4078 = vmatprep.mubr.f32.mxu0 0.0
        %4079 = vmatmul.mubr.f32.gmra.mrb[0].mxu0 %v4009
        %v4080 = vpop.f32.mrb[0].mxu0
        %v4081 = vadd.f32 0.0, %v4080
        %v4082 = vpop.f32.mrb[0].mxu0
        %4083 = vmatprep.mubr.f32.mxu0 0.0
        %4084 = vmatmul.mubr.f32.gmra.mrb[0].mxu0 %v4012
        %v4085 = vpop.f32.mrb[0].mxu0
        %v4086 = vadd.f32 0.0, %v4085
        %v4087 = vpop.f32.mrb[0].mxu0
        %4088 = vdwg.mxu0
        %4091 = vrot.lane.b32.xlu0 %v1094, 64
        %v4092 = vpop.permute.xlu0 %4091
        %4093 = vrot.lane.b32.xlu0 %v1099, 64
        %v4094 = vpop.permute.xlu0 %4093
        %v4098 = vsel %vm1850, %v3621, 0
        %v4101 = vsel %vm1850, %v3622, 0
        %4103 = vmatprep.subr.mxu0 0.0
        %4104 = vmatpush1.msra.mxu0 %v4092
        %4105 = vmatprep.subr.mxu0 0.0
        %4106 = vmatpush1.msra.mxu0 %v4094
        %4107 = vmatprep.subr.mxu0 0.0
        %4108 = vmatpush1.msra.mxu0 0.0
        %4109 = vmatprep.subr.mxu0 0.0
        %4110 = vmatpush1.msra.mxu0 0.0
        %4111 = vmatprep.subr.mxu0 0.0
        %4112 = vmatpush1.msra.mxu0 0.0
        %4113 = vmatprep.subr.mxu0 0.0
        %4114 = vmatpush1.msra.mxu0 0.0
        %4115 = vmatprep.subr.mxu0 0.0
        %4116 = vmatpush1.msra.mxu0 0.0
        %4117 = vmatprep.subr.mxu0 0.0
        %4118 = vmatpush1.msra.mxu0 0.0
        %4119 = vmatprep.subr.mxu0 0.0
        %4120 = vmatpush1.msra.mxu0 0.0
        %4121 = vmatprep.subr.mxu0 0.0
        %4122 = vmatpush1.msra.mxu0 0.0
        %4123 = vmatprep.subr.mxu0 0.0
        %4124 = vmatpush1.msra.mxu0 0.0
        %4125 = vmatprep.subr.mxu0 0.0
        %4126 = vmatpush1.msra.mxu0 0.0
        %4127 = vmatprep.subr.mxu0 0.0
        %4128 = vmatpush1.msra.mxu0 0.0
        %4129 = vmatprep.subr.mxu0 0.0
        %4130 = vmatpush1.msra.mxu0 0.0
        %4131 = vmatprep.subr.mxu0 0.0
        %4132 = vmatpush1.msra.mxu0 0.0
        %4133 = vmatprep.subr.mxu0 0.0
        %4134 = vmatpush1.msra.mxu0 0.0
        %4135 = vmatprep.subr.mxu0 0.0
        %4136 = vmatpush1.msra.mxu0 0.0
        %4137 = vmatprep.subr.mxu0 0.0
        %4138 = vmatpush1.msra.mxu0 0.0
        %4139 = vmatprep.subr.mxu0 0.0
        %4140 = vmatpush1.msra.mxu0 0.0
        %4141 = vmatprep.subr.mxu0 0.0
        %4142 = vmatpush1.msra.mxu0 0.0
        %4143 = vmatprep.subr.mxu0 0.0
        %4144 = vmatpush1.msra.mxu0 0.0
        %4145 = vmatprep.subr.mxu0 0.0
        %4146 = vmatpush1.msra.mxu0 0.0
        %4147 = vmatprep.subr.mxu0 0.0
        %4148 = vmatpush1.msra.mxu0 0.0
        %4149 = vmatprep.subr.mxu0 0.0
        %4150 = vmatpush1.msra.mxu0 0.0
        %4151 = vmatprep.subr.mxu0 0.0
        %4152 = vmatpush1.msra.mxu0 0.0
        %4153 = vmatprep.subr.mxu0 0.0
        %4154 = vmatpush1.msra.mxu0 0.0
        %4155 = vmatprep.subr.mxu0 0.0
        %4156 = vmatpush1.msra.mxu0 0.0
        %4157 = vmatprep.subr.mxu0 0.0
        %4158 = vmatpush1.msra.mxu0 0.0
        %4159 = vmatprep.subr.mxu0 0.0
        %4160 = vmatpush1.msra.mxu0 0.0
        %4161 = vmatprep.subr.mxu0 0.0
        %4162 = vmatpush1.msra.mxu0 0.0
        %4163 = vmatprep.subr.mxu0 0.0
        %4164 = vmatpush1.msra.mxu0 0.0
        %4165 = vmatprep.subr.mxu0 0.0
        %4166 = vmatpush1.msra.mxu0 0.0
        %4167 = vmatprep.mubr.f32.mxu0 0.0
        %4168 = vmatmul.mubr.f32.gmra.mrb[0].mxu0 %v4098
        %v4169 = vpop.f32.mrb[0].mxu0
        %v4170 = vadd.f32 0.0, %v4169
        %v4171 = vpop.f32.mrb[0].mxu0
        %4172 = vmatprep.mubr.f32.mxu0 0.0
        %4173 = vmatmul.mubr.f32.gmra.mrb[0].mxu0 %v4101
        %v4174 = vpop.f32.mrb[0].mxu0
        %v4175 = vadd.f32 0.0, %v4174
        %v4176 = vpop.f32.mrb[0].mxu0
        %4177 = vdwg.mxu0
        %4180 = vrot.lane.b32.xlu0 %v1104, 64
        %v4181 = vpop.permute.xlu0 %4180
        %4182 = vrot.lane.b32.xlu0 %v1109, 64
        %v4183 = vpop.permute.xlu0 %4182
        %v4187 = vsel %vm1850, %v3623, 0
        %v4190 = vsel %vm1850, %v3624, 0
        %4192 = vmatprep.subr.mxu0 0.0
        %4193 = vmatpush1.msra.mxu0 %v4181
        %4194 = vmatprep.subr.mxu0 0.0
        %4195 = vmatpush1.msra.mxu0 %v4183
        %4196 = vmatprep.subr.mxu0 0.0
        %4197 = vmatpush1.msra.mxu0 0.0
        %4198 = vmatprep.subr.mxu0 0.0
        %4199 = vmatpush1.msra.mxu0 0.0
        %4200 = vmatprep.subr.mxu0 0.0
        %4201 = vmatpush1.msra.mxu0 0.0
        %4202 = vmatprep.subr.mxu0 0.0
        %4203 = vmatpush1.msra.mxu0 0.0
        %4204 = vmatprep.subr.mxu0 0.0
        %4205 = vmatpush1.msra.mxu0 0.0
        %4206 = vmatprep.subr.mxu0 0.0
        %4207 = vmatpush1.msra.mxu0 0.0
        %4208 = vmatprep.subr.mxu0 0.0
        %4209 = vmatpush1.msra.mxu0 0.0
        %4210 = vmatprep.subr.mxu0 0.0
        %4211 = vmatpush1.msra.mxu0 0.0
        %4212 = vmatprep.subr.mxu0 0.0
        %4213 = vmatpush1.msra.mxu0 0.0
        %4214 = vmatprep.subr.mxu0 0.0
        %4215 = vmatpush1.msra.mxu0 0.0
        %4216 = vmatprep.subr.mxu0 0.0
        %4217 = vmatpush1.msra.mxu0 0.0
        %4218 = vmatprep.subr.mxu0 0.0
        %4219 = vmatpush1.msra.mxu0 0.0
        %4220 = vmatprep.subr.mxu0 0.0
        %4221 = vmatpush1.msra.mxu0 0.0
        %4222 = vmatprep.subr.mxu0 0.0
        %4223 = vmatpush1.msra.mxu0 0.0
        %4224 = vmatprep.subr.mxu0 0.0
        %4225 = vmatpush1.msra.mxu0 0.0
        %4226 = vmatprep.subr.mxu0 0.0
        %4227 = vmatpush1.msra.mxu0 0.0
        %4228 = vmatprep.subr.mxu0 0.0
        %4229 = vmatpush1.msra.mxu0 0.0
        %4230 = vmatprep.subr.mxu0 0.0
        %4231 = vmatpush1.msra.mxu0 0.0
        %4232 = vmatprep.subr.mxu0 0.0
        %4233 = vmatpush1.msra.mxu0 0.0
        %4234 = vmatprep.subr.mxu0 0.0
        %4235 = vmatpush1.msra.mxu0 0.0
        %4236 = vmatprep.subr.mxu0 0.0
        %4237 = vmatpush1.msra.mxu0 0.0
        %4238 = vmatprep.subr.mxu0 0.0
        %4239 = vmatpush1.msra.mxu0 0.0
        %4240 = vmatprep.subr.mxu0 0.0
        %4241 = vmatpush1.msra.mxu0 0.0
        %4242 = vmatprep.subr.mxu0 0.0
        %4243 = vmatpush1.msra.mxu0 0.0
        %4244 = vmatprep.subr.mxu0 0.0
        %4245 = vmatpush1.msra.mxu0 0.0
        %4246 = vmatprep.subr.mxu0 0.0
        %4247 = vmatpush1.msra.mxu0 0.0
        %4248 = vmatprep.subr.mxu0 0.0
        %4249 = vmatpush1.msra.mxu0 0.0
        %4250 = vmatprep.subr.mxu0 0.0
        %4251 = vmatpush1.msra.mxu0 0.0
        %4252 = vmatprep.subr.mxu0 0.0
        %4253 = vmatpush1.msra.mxu0 0.0
        %4254 = vmatprep.subr.mxu0 0.0
        %4255 = vmatpush1.msra.mxu0 0.0
        %4256 = vmatprep.mubr.f32.mxu0 0.0
        %4257 = vmatmul.mubr.f32.gmra.mrb[0].mxu0 %v4187
        %v4258 = vpop.f32.mrb[0].mxu0
        %v4259 = vadd.f32 0.0, %v4258
        %v4260 = vpop.f32.mrb[0].mxu0
        %4261 = vmatprep.mubr.f32.mxu0 0.0
        %4262 = vmatmul.mubr.f32.gmra.mrb[0].mxu0 %v4190
        %v4263 = vpop.f32.mrb[0].mxu0
        %v4264 = vadd.f32 0.0, %v4263
        %v4265 = vpop.f32.mrb[0].mxu0
        %4266 = vdwg.mxu0
        %4269 = vrot.lane.b32.xlu0 %v1114, 64
        %v4270 = vpop.permute.xlu0 %4269
        %4271 = vrot.lane.b32.xlu0 %v1119, 64
        %v4272 = vpop.permute.xlu0 %4271
        %v4276 = vsel %vm1850, %v3625, 0
        %v4279 = vsel %vm1850, %v3626, 0
        %4281 = vmatprep.subr.mxu0 0.0
        %4282 = vmatpush1.msra.mxu0 %v4270
        %4283 = vmatprep.subr.mxu0 0.0
        %4284 = vmatpush1.msra.mxu0 %v4272
        %4285 = vmatprep.subr.mxu0 0.0
        %4286 = vmatpush1.msra.mxu0 0.0
        %4287 = vmatprep.subr.mxu0 0.0
        %4288 = vmatpush1.msra.mxu0 0.0
        %4289 = vmatprep.subr.mxu0 0.0
        %4290 = vmatpush1.msra.mxu0 0.0
        %4291 = vmatprep.subr.mxu0 0.0
        %4292 = vmatpush1.msra.mxu0 0.0
        %4293 = vmatprep.subr.mxu0 0.0
        %4294 = vmatpush1.msra.mxu0 0.0
        %4295 = vmatprep.subr.mxu0 0.0
        %4296 = vmatpush1.msra.mxu0 0.0
        %4297 = vmatprep.subr.mxu0 0.0
        %4298 = vmatpush1.msra.mxu0 0.0
        %4299 = vmatprep.subr.mxu0 0.0
        %4300 = vmatpush1.msra.mxu0 0.0
        %4301 = vmatprep.subr.mxu0 0.0
        %4302 = vmatpush1.msra.mxu0 0.0
        %4303 = vmatprep.subr.mxu0 0.0
        %4304 = vmatpush1.msra.mxu0 0.0
        %4305 = vmatprep.subr.mxu0 0.0
        %4306 = vmatpush1.msra.mxu0 0.0
        %4307 = vmatprep.subr.mxu0 0.0
        %4308 = vmatpush1.msra.mxu0 0.0
        %4309 = vmatprep.subr.mxu0 0.0
        %4310 = vmatpush1.msra.mxu0 0.0
        %4311 = vmatprep.subr.mxu0 0.0
        %4312 = vmatpush1.msra.mxu0 0.0
        %4313 = vmatprep.subr.mxu0 0.0
        %4314 = vmatpush1.msra.mxu0 0.0
        %4315 = vmatprep.subr.mxu0 0.0
        %4316 = vmatpush1.msra.mxu0 0.0
        %4317 = vmatprep.subr.mxu0 0.0
        %4318 = vmatpush1.msra.mxu0 0.0
        %4319 = vmatprep.subr.mxu0 0.0
        %4320 = vmatpush1.msra.mxu0 0.0
        %4321 = vmatprep.subr.mxu0 0.0
        %4322 = vmatpush1.msra.mxu0 0.0
        %4323 = vmatprep.subr.mxu0 0.0
        %4324 = vmatpush1.msra.mxu0 0.0
        %4325 = vmatprep.subr.mxu0 0.0
        %4326 = vmatpush1.msra.mxu0 0.0
        %4327 = vmatprep.subr.mxu0 0.0
        %4328 = vmatpush1.msra.mxu0 0.0
        %4329 = vmatprep.subr.mxu0 0.0
        %4330 = vmatpush1.msra.mxu0 0.0
        %4331 = vmatprep.subr.mxu0 0.0
        %4332 = vmatpush1.msra.mxu0 0.0
        %4333 = vmatprep.subr.mxu0 0.0
        %4334 = vmatpush1.msra.mxu0 0.0
        %4335 = vmatprep.subr.mxu0 0.0
        %4336 = vmatpush1.msra.mxu0 0.0
        %4337 = vmatprep.subr.mxu0 0.0
        %4338 = vmatpush1.msra.mxu0 0.0
        %4339 = vmatprep.subr.mxu0 0.0
        %4340 = vmatpush1.msra.mxu0 0.0
        %4341 = vmatprep.subr.mxu0 0.0
        %4342 = vmatpush1.msra.mxu0 0.0
        %4343 = vmatprep.subr.mxu0 0.0
        %4344 = vmatpush1.msra.mxu0 0.0
        %4345 = vmatprep.mubr.f32.mxu0 0.0
        %4346 = vmatmul.mubr.f32.gmra.mrb[0].mxu0 %v4276
        %v4347 = vpop.f32.mrb[0].mxu0
        %v4348 = vadd.f32 0.0, %v4347
        %v4349 = vpop.f32.mrb[0].mxu0
        %4350 = vmatprep.mubr.f32.mxu0 0.0
        %4351 = vmatmul.mubr.f32.gmra.mrb[0].mxu0 %v4279
        %v4352 = vpop.f32.mrb[0].mxu0
        %v4353 = vadd.f32 0.0, %v4352
        %v4354 = vpop.f32.mrb[0].mxu0
        %4355 = vdwg.mxu0
        %4372 = vrot.lane.b32.xlu0 %v3725, 64
        %v4373 = vpop.permute.xlu0 %4372
        %4374 = vrot.lane.b32.xlu0 %v3730, 64
        %v4375 = vpop.permute.xlu0 %4374
        %4376 = vrot.lane.b32.xlu0 %v3814, 64
        %v4377 = vpop.permute.xlu0 %4376
        %4378 = vrot.lane.b32.xlu0 %v3819, 64
        %v4379 = vpop.permute.xlu0 %4378
        %4380 = vrot.lane.b32.xlu0 %v3903, 64
        %v4381 = vpop.permute.xlu0 %4380
        %4382 = vrot.lane.b32.xlu0 %v3908, 64
        %v4383 = vpop.permute.xlu0 %4382
        %4384 = vrot.lane.b32.xlu0 %v3992, 64
        %v4385 = vpop.permute.xlu0 %4384
        %4386 = vrot.lane.b32.xlu0 %v3997, 64
        %v4387 = vpop.permute.xlu0 %4386
        %4388 = vrot.lane.b32.xlu0 %v4081, 64
        %v4389 = vpop.permute.xlu0 %4388
        %4390 = vrot.lane.b32.xlu0 %v4086, 64
        %v4391 = vpop.permute.xlu0 %4390
        %4392 = vrot.lane.b32.xlu0 %v4170, 64
        %v4393 = vpop.permute.xlu0 %4392
        %4394 = vrot.lane.b32.xlu0 %v4175, 64
        %v4395 = vpop.permute.xlu0 %4394
        %4396 = vrot.lane.b32.xlu0 %v4259, 64
        %v4397 = vpop.permute.xlu0 %4396
        %4398 = vrot.lane.b32.xlu0 %v4264, 64
        %v4399 = vpop.permute.xlu0 %4398
        %4400 = vrot.lane.b32.xlu0 %v4348, 64
        %v4401 = vpop.permute.xlu0 %4400
        %4402 = vrot.lane.b32.xlu0 %v4353, 64
        %v4403 = vpop.permute.xlu0 %4402
        %v4420 = vsel %vm622, %v2116, %v4373
        %v4421 = vsel %vm622, %v2121, %v4375
        %v4422 = vsel %vm622, %v2197, %v4377
        %v4423 = vsel %vm622, %v2202, %v4379
        %v4424 = vsel %vm622, %v2278, %v4381
        %v4425 = vsel %vm622, %v2283, %v4383
        %v4426 = vsel %vm622, %v2359, %v4385
        %v4427 = vsel %vm622, %v2364, %v4387
        %v4428 = vsel %vm622, %v2440, %v4389
        %v4429 = vsel %vm622, %v2445, %v4391
        %v4430 = vsel %vm622, %v2521, %v4393
        %v4431 = vsel %vm622, %v2526, %v4395
        %v4432 = vsel %vm622, %v2602, %v4397
        %v4433 = vsel %vm622, %v2607, %v4399
        %v4434 = vsel %vm622, %v2683, %v4401
        %v4435 = vsel %vm622, %v2688, %v4403
        %v4436 = vld [vmem:[%s6] sm:$0xff]
        %v4437 = vld [vmem:[%s6 + $0x8] sm:$0xff]
        %v4438 = vld [vmem:[%s6 + $0x10] sm:$0xff]
        %v4439 = vld [vmem:[%s6 + $0x18] sm:$0xff]
        %v4440 = vld [vmem:[%s6 + $0x20] sm:$0xff]
        %v4441 = vld [vmem:[%s6 + $0x28] sm:$0xff]
        %v4442 = vld [vmem:[%s6 + $0x30] sm:$0xff]
        %v4443 = vld [vmem:[%s6 + $0x38] sm:$0xff]
        %v4444 = vld [vmem:[%s6 + $0x40] sm:$0xff]
        %v4445 = vld [vmem:[%s6 + $0x48] sm:$0xff]
        %v4446 = vld [vmem:[%s6 + $0x50] sm:$0xff]
        %v4447 = vld [vmem:[%s6 + $0x58] sm:$0xff]
        %v4448 = vld [vmem:[%s6 + $0x60] sm:$0xff]
        %v4449 = vld [vmem:[%s6 + $0x68] sm:$0xff]
        %v4450 = vld [vmem:[%s6 + $0x70] sm:$0xff]
        %v4451 = vld [vmem:[%s6 + $0x78] sm:$0xff]
        %4452 = vmatprep.subr.mxu0 0.0
        %4453 = vmatpush1.msra.mxu0 %v4436
        %4454 = vmatprep.subr.mxu0 0.0
        %4455 = vmatpush1.msra.mxu0 %v4437
        %4456 = vmatprep.subr.mxu0 0.0
        %4457 = vmatpush1.msra.mxu0 %v4438
        %4458 = vmatprep.subr.mxu0 0.0
        %4459 = vmatpush1.msra.mxu0 %v4439
        %4460 = vmatprep.subr.mxu0 0.0
        %4461 = vmatpush1.msra.mxu0 %v4440
        %4462 = vmatprep.subr.mxu0 0.0
        %4463 = vmatpush1.msra.mxu0 %v4441
        %4464 = vmatprep.subr.mxu0 0.0
        %4465 = vmatpush1.msra.mxu0 %v4442
        %4466 = vmatprep.subr.mxu0 0.0
        %4467 = vmatpush1.msra.mxu0 %v4443
        %4468 = vmatprep.subr.mxu0 0.0
        %4469 = vmatpush1.msra.mxu0 %v4444
        %4470 = vmatprep.subr.mxu0 0.0
        %4471 = vmatpush1.msra.mxu0 %v4445
        %4472 = vmatprep.subr.mxu0 0.0
        %4473 = vmatpush1.msra.mxu0 %v4446
        %4474 = vmatprep.subr.mxu0 0.0
        %4475 = vmatpush1.msra.mxu0 %v4447
        %4476 = vmatprep.subr.mxu0 0.0
        %4477 = vmatpush1.msra.mxu0 %v4448
        %4478 = vmatprep.subr.mxu0 0.0
        %4479 = vmatpush1.msra.mxu0 %v4449
        %4480 = vmatprep.subr.mxu0 0.0
        %4481 = vmatpush1.msra.mxu0 %v4450
        %4482 = vmatprep.subr.mxu0 0.0
        %4483 = vmatpush1.msra.mxu0 %v4451
        %4484 = vmatprep.subr.mxu0 0.0
        %4485 = vmatpush1.msra.mxu0 0.0
        %4486 = vmatprep.subr.mxu0 0.0
        %4487 = vmatpush1.msra.mxu0 0.0
        %4488 = vmatprep.subr.mxu0 0.0
        %4489 = vmatpush1.msra.mxu0 0.0
        %4490 = vmatprep.subr.mxu0 0.0
        %4491 = vmatpush1.msra.mxu0 0.0
        %4492 = vmatprep.subr.mxu0 0.0
        %4493 = vmatpush1.msra.mxu0 0.0
        %4494 = vmatprep.subr.mxu0 0.0
        %4495 = vmatpush1.msra.mxu0 0.0
        %4496 = vmatprep.subr.mxu0 0.0
        %4497 = vmatpush1.msra.mxu0 0.0
        %4498 = vmatprep.subr.mxu0 0.0
        %4499 = vmatpush1.msra.mxu0 0.0
        %4500 = vmatprep.subr.mxu0 0.0
        %4501 = vmatpush1.msra.mxu0 0.0
        %4502 = vmatprep.subr.mxu0 0.0
        %4503 = vmatpush1.msra.mxu0 0.0
        %4504 = vmatprep.subr.mxu0 0.0
        %4505 = vmatpush1.msra.mxu0 0.0
        %4506 = vmatprep.subr.mxu0 0.0
        %4507 = vmatpush1.msra.mxu0 0.0
        %4508 = vmatprep.subr.mxu0 0.0
        %4509 = vmatpush1.msra.mxu0 0.0
        %4510 = vmatprep.subr.mxu0 0.0
        %4511 = vmatpush1.msra.mxu0 0.0
        %4512 = vmatprep.subr.mxu0 0.0
        %4513 = vmatpush1.msra.mxu0 0.0
        %4514 = vmatprep.subr.mxu0 0.0
        %4515 = vmatpush1.msra.mxu0 0.0
        %4516 = vmatprep.mubr.f32.mxu0 0.0
        %4517 = vmatmul.mubr.f32.gmra.mrb[0].mxu0 %v4420
        %v4518 = vpop.f32.mrb[0].mxu0
        %v4519 = vadd.f32 %v532, %v4518
        %v4520 = vpop.f32.mrb[0].mxu0
        %4521 = vmatprep.mubr.f32.mxu0 0.0
        %4522 = vmatmul.mubr.f32.gmra.mrb[0].mxu0 %v4421
        %v4523 = vpop.f32.mrb[0].mxu0
        %v4524 = vadd.f32 %v537, %v4523
        %v4525 = vpop.f32.mrb[0].mxu0
        %4526 = vmatprep.mubr.f32.mxu0 0.0
        %4527 = vmatmul.mubr.f32.gmra.mrb[0].mxu0 %v4422
        %v4528 = vpop.f32.mrb[0].mxu0
        %v4529 = vadd.f32 %v542, %v4528
        %v4530 = vpop.f32.mrb[0].mxu0
        %4531 = vmatprep.mubr.f32.mxu0 0.0
        %4532 = vmatmul.mubr.f32.gmra.mrb[0].mxu0 %v4423
        %v4533 = vpop.f32.mrb[0].mxu0
        %v4534 = vadd.f32 %v547, %v4533
        %v4535 = vpop.f32.mrb[0].mxu0
        %4536 = vmatprep.mubr.f32.mxu0 0.0
        %4537 = vmatmul.mubr.f32.gmra.mrb[0].mxu0 %v4424
        %v4538 = vpop.f32.mrb[0].mxu0
        %v4539 = vadd.f32 %v552, %v4538
        %v4540 = vpop.f32.mrb[0].mxu0
        %4541 = vmatprep.mubr.f32.mxu0 0.0
        %4542 = vmatmul.mubr.f32.gmra.mrb[0].mxu0 %v4425
        %v4543 = vpop.f32.mrb[0].mxu0
        %v4544 = vadd.f32 %v557, %v4543
        %v4545 = vpop.f32.mrb[0].mxu0
        %4546 = vmatprep.mubr.f32.mxu0 0.0
        %4547 = vmatmul.mubr.f32.gmra.mrb[0].mxu0 %v4426
        %v4548 = vpop.f32.mrb[0].mxu0
        %v4549 = vadd.f32 %v562, %v4548
        %v4550 = vpop.f32.mrb[0].mxu0
        %4551 = vmatprep.mubr.f32.mxu0 0.0
        %4552 = vmatmul.mubr.f32.gmra.mrb[0].mxu0 %v4427
        %v4553 = vpop.f32.mrb[0].mxu0
        %v4554 = vadd.f32 %v567, %v4553
        %v4555 = vpop.f32.mrb[0].mxu0
        %4556 = vmatprep.mubr.f32.mxu0 0.0
        %4557 = vmatmul.mubr.f32.gmra.mrb[0].mxu0 %v4428
        %v4558 = vpop.f32.mrb[0].mxu0
        %v4559 = vadd.f32 %v572, %v4558
        %v4560 = vpop.f32.mrb[0].mxu0
        %4561 = vmatprep.mubr.f32.mxu0 0.0
        %4562 = vmatmul.mubr.f32.gmra.mrb[0].mxu0 %v4429
        %v4563 = vpop.f32.mrb[0].mxu0
        %v4564 = vadd.f32 %v577, %v4563
        %v4565 = vpop.f32.mrb[0].mxu0
        %4566 = vmatprep.mubr.f32.mxu0 0.0
        %4567 = vmatmul.mubr.f32.gmra.mrb[0].mxu0 %v4430
        %v4568 = vpop.f32.mrb[0].mxu0
        %v4569 = vadd.f32 %v582, %v4568
        %v4570 = vpop.f32.mrb[0].mxu0
        %4571 = vmatprep.mubr.f32.mxu0 0.0
        %4572 = vmatmul.mubr.f32.gmra.mrb[0].mxu0 %v4431
        %v4573 = vpop.f32.mrb[0].mxu0
        %v4574 = vadd.f32 %v587, %v4573
        %v4575 = vpop.f32.mrb[0].mxu0
        %4576 = vmatprep.mubr.f32.mxu0 0.0
        %4577 = vmatmul.mubr.f32.gmra.mrb[0].mxu0 %v4432
        %v4578 = vpop.f32.mrb[0].mxu0
        %v4579 = vadd.f32 %v592, %v4578
        %v4580 = vpop.f32.mrb[0].mxu0
        %4581 = vmatprep.mubr.f32.mxu0 0.0
        %4582 = vmatmul.mubr.f32.gmra.mrb[0].mxu0 %v4433
        %v4583 = vpop.f32.mrb[0].mxu0
        %v4584 = vadd.f32 %v597, %v4583
        %v4585 = vpop.f32.mrb[0].mxu0
        %4586 = vmatprep.mubr.f32.mxu0 0.0
        %4587 = vmatmul.mubr.f32.gmra.mrb[0].mxu0 %v4434
        %v4588 = vpop.f32.mrb[0].mxu0
        %v4589 = vadd.f32 %v602, %v4588
        %v4590 = vpop.f32.mrb[0].mxu0
        %4591 = vmatprep.mubr.f32.mxu0 0.0
        %4592 = vmatmul.mubr.f32.gmra.mrb[0].mxu0 %v4435
        %v4593 = vpop.f32.mrb[0].mxu0
        %v4594 = vadd.f32 %v607, %v4593
        %v4595 = vpop.f32.mrb[0].mxu0
        %4596 = vdwg.mxu0
        %v4597 = vsel %vm622, %v4519, 0.0
        %4598 = vadd.xlane.f32.xlu0 %v4597
        %v4599 = vpop.xlane.xlu0 %4598
        %v4600 = vsel %vm622, %v4524, 0.0
        %4601 = vadd.xlane.f32.xlu0 %v4600
        %v4602 = vpop.xlane.xlu0 %4601
        %v4603 = vsel %vm622, %v4529, 0.0
        %4604 = vadd.xlane.f32.xlu0 %v4603
        %v4605 = vpop.xlane.xlu0 %4604
        %v4606 = vsel %vm622, %v4534, 0.0
        %4607 = vadd.xlane.f32.xlu0 %v4606
        %v4608 = vpop.xlane.xlu0 %4607
        %v4609 = vsel %vm622, %v4539, 0.0
        %4610 = vadd.xlane.f32.xlu0 %v4609
        %v4611 = vpop.xlane.xlu0 %4610
        %v4612 = vsel %vm622, %v4544, 0.0
        %4613 = vadd.xlane.f32.xlu0 %v4612
        %v4614 = vpop.xlane.xlu0 %4613
        %v4615 = vsel %vm622, %v4549, 0.0
        %4616 = vadd.xlane.f32.xlu0 %v4615
        %v4617 = vpop.xlane.xlu0 %4616
        %v4618 = vsel %vm622, %v4554, 0.0
        %4619 = vadd.xlane.f32.xlu0 %v4618
        %v4620 = vpop.xlane.xlu0 %4619
        %v4621 = vsel %vm622, %v4559, 0.0
        %4622 = vadd.xlane.f32.xlu0 %v4621
        %v4623 = vpop.xlane.xlu0 %4622
        %v4624 = vsel %vm622, %v4564, 0.0
        %4625 = vadd.xlane.f32.xlu0 %v4624
        %v4626 = vpop.xlane.xlu0 %4625
        %v4627 = vsel %vm622, %v4569, 0.0
        %4628 = vadd.xlane.f32.xlu0 %v4627
        %v4629 = vpop.xlane.xlu0 %4628
        %v4630 = vsel %vm622, %v4574, 0.0
        %4631 = vadd.xlane.f32.xlu0 %v4630
        %v4632 = vpop.xlane.xlu0 %4631
        %v4633 = vsel %vm622, %v4579, 0.0
        %4634 = vadd.xlane.f32.xlu0 %v4633
        %v4635 = vpop.xlane.xlu0 %4634
        %v4636 = vsel %vm622, %v4584, 0.0
        %4637 = vadd.xlane.f32.xlu0 %v4636
        %v4638 = vpop.xlane.xlu0 %4637
        %v4639 = vsel %vm622, %v4589, 0.0
        %4640 = vadd.xlane.f32.xlu0 %v4639
        %v4641 = vpop.xlane.xlu0 %4640
        %v4642 = vsel %vm622, %v4594, 0.0
        %4643 = vadd.xlane.f32.xlu0 %v4642
        %v4644 = vpop.xlane.xlu0 %4643
        %v4645 = vrcp.pop 64.0
        %v4646 = vmul.f32 %v4599, %v4645
        %v4647 = vmul.f32 %v4602, %v4645
        %v4648 = vmul.f32 %v4605, %v4645
        %v4649 = vmul.f32 %v4608, %v4645
        %v4650 = vmul.f32 %v4611, %v4645
        %v4651 = vmul.f32 %v4614, %v4645
        %v4652 = vmul.f32 %v4617, %v4645
        %v4653 = vmul.f32 %v4620, %v4645
        %v4654 = vmul.f32 %v4623, %v4645
        %v4655 = vmul.f32 %v4626, %v4645
        %v4656 = vmul.f32 %v4629, %v4645
        %v4657 = vmul.f32 %v4632, %v4645
        %v4658 = vmul.f32 %v4635, %v4645
        %v4659 = vmul.f32 %v4638, %v4645
        %v4660 = vmul.f32 %v4641, %v4645
        %v4661 = vmul.f32 %v4644, %v4645
        %v4662 = vsub.f32 %v4519, %v4646
        %v4663 = vsub.f32 %v4524, %v4647
        %v4664 = vsub.f32 %v4529, %v4648
        %v4665 = vsub.f32 %v4534, %v4649
        %v4666 = vsub.f32 %v4539, %v4650
        %v4667 = vsub.f32 %v4544, %v4651
        %v4668 = vsub.f32 %v4549, %v4652
        %v4669 = vsub.f32 %v4554, %v4653
        %v4670 = vsub.f32 %v4559, %v4654
        %v4671 = vsub.f32 %v4564, %v4655
        %v4672 = vsub.f32 %v4569, %v4656
        %v4673 = vsub.f32 %v4574, %v4657
        %v4674 = vsub.f32 %v4579, %v4658
        %v4675 = vsub.f32 %v4584, %v4659
        %v4676 = vsub.f32 %v4589, %v4660
        %v4677 = vsub.f32 %v4594, %v4661
        %v4678 = vmul.f32 %v4662, %v4662
        %v4679 = vmul.f32 %v4663, %v4663
        %v4680 = vmul.f32 %v4664, %v4664
        %v4681 = vmul.f32 %v4665, %v4665
        %v4682 = vmul.f32 %v4666, %v4666
        %v4683 = vmul.f32 %v4667, %v4667
        %v4684 = vmul.f32 %v4668, %v4668
        %v4685 = vmul.f32 %v4669, %v4669
        %v4686 = vmul.f32 %v4670, %v4670
        %v4687 = vmul.f32 %v4671, %v4671
        %v4688 = vmul.f32 %v4672, %v4672
        %v4689 = vmul.f32 %v4673, %v4673
        %v4690 = vmul.f32 %v4674, %v4674
        %v4691 = vmul.f32 %v4675, %v4675
        %v4692 = vmul.f32 %v4676, %v4676
        %v4693 = vmul.f32 %v4677, %v4677
        %v4694 = vsel %vm622, %v4678, 0.0
        %4695 = vadd.xlane.f32.xlu0 %v4694
        %v4696 = vpop.xlane.xlu0 %4695
        %v4697 = vsel %vm622, %v4679, 0.0
        %4698 = vadd.xlane.f32.xlu0 %v4697
        %v4699 = vpop.xlane.xlu0 %4698
        %v4700 = vsel %vm622, %v4680, 0.0
        %4701 = vadd.xlane.f32.xlu0 %v4700
        %v4702 = vpop.xlane.xlu0 %4701
        %v4703 = vsel %vm622, %v4681, 0.0
        %4704 = vadd.xlane.f32.xlu0 %v4703
        %v4705 = vpop.xlane.xlu0 %4704
        %v4706 = vsel %vm622, %v4682, 0.0
        %4707 = vadd.xlane.f32.xlu0 %v4706
        %v4708 = vpop.xlane.xlu0 %4707
        %v4709 = vsel %vm622, %v4683, 0.0
        %4710 = vadd.xlane.f32.xlu0 %v4709
        %v4711 = vpop.xlane.xlu0 %4710
        %v4712 = vsel %vm622, %v4684, 0.0
        %4713 = vadd.xlane.f32.xlu0 %v4712
        %v4714 = vpop.xlane.xlu0 %4713
        %v4715 = vsel %vm622, %v4685, 0.0
        %4716 = vadd.xlane.f32.xlu0 %v4715
        %v4717 = vpop.xlane.xlu0 %4716
        %v4718 = vsel %vm622, %v4686, 0.0
        %4719 = vadd.xlane.f32.xlu0 %v4718
        %v4720 = vpop.xlane.xlu0 %4719
        %v4721 = vsel %vm622, %v4687, 0.0
        %4722 = vadd.xlane.f32.xlu0 %v4721
        %v4723 = vpop.xlane.xlu0 %4722
        %v4724 = vsel %vm622, %v4688, 0.0
        %4725 = vadd.xlane.f32.xlu0 %v4724
        %v4726 = vpop.xlane.xlu0 %4725
        %v4727 = vsel %vm622, %v4689, 0.0
        %4728 = vadd.xlane.f32.xlu0 %v4727
        %v4729 = vpop.xlane.xlu0 %4728
        %v4730 = vsel %vm622, %v4690, 0.0
        %4731 = vadd.xlane.f32.xlu0 %v4730
        %v4732 = vpop.xlane.xlu0 %4731
        %v4733 = vsel %vm622, %v4691, 0.0
        %4734 = vadd.xlane.f32.xlu0 %v4733
        %v4735 = vpop.xlane.xlu0 %4734
        %v4736 = vsel %vm622, %v4692, 0.0
        %4737 = vadd.xlane.f32.xlu0 %v4736
        %v4738 = vpop.xlane.xlu0 %4737
        %v4739 = vsel %vm622, %v4693, 0.0
        %4740 = vadd.xlane.f32.xlu0 %v4739
        %v4741 = vpop.xlane.xlu0 %4740
        %v4742 = vmul.f32 %v4696, %v4645
        %v4743 = vmul.f32 %v4699, %v4645
        %v4744 = vmul.f32 %v4702, %v4645
        %v4745 = vmul.f32 %v4705, %v4645
        %v4746 = vmul.f32 %v4708, %v4645
        %v4747 = vmul.f32 %v4711, %v4645
        %v4748 = vmul.f32 %v4714, %v4645
        %v4749 = vmul.f32 %v4717, %v4645
        %v4750 = vmul.f32 %v4720, %v4645
        %v4751 = vmul.f32 %v4723, %v4645
        %v4752 = vmul.f32 %v4726, %v4645
        %v4753 = vmul.f32 %v4729, %v4645
        %v4754 = vmul.f32 %v4732, %v4645
        %v4755 = vmul.f32 %v4735, %v4645
        %v4756 = vmul.f32 %v4738, %v4645
        %v4757 = vmul.f32 %v4741, %v4645
        %v4758 = vadd.f32 %v4742, 1e-05
        %v4759 = vadd.f32 %v4743, 1e-05
        %v4760 = vadd.f32 %v4744, 1e-05
        %v4761 = vadd.f32 %v4745, 1e-05
        %v4762 = vadd.f32 %v4746, 1e-05
        %v4763 = vadd.f32 %v4747, 1e-05
        %v4764 = vadd.f32 %v4748, 1e-05
        %v4765 = vadd.f32 %v4749, 1e-05
        %v4766 = vadd.f32 %v4750, 1e-05
        %v4767 = vadd.f32 %v4751, 1e-05
        %v4768 = vadd.f32 %v4752, 1e-05
        %v4769 = vadd.f32 %v4753, 1e-05
        %v4770 = vadd.f32 %v4754, 1e-05
        %v4771 = vadd.f32 %v4755, 1e-05
        %v4772 = vadd.f32 %v4756, 1e-05
        %v4773 = vadd.f32 %v4757, 1e-05
        %v4774 = vrsqrt.pop %v4758
        %v4775 = vrsqrt.pop %v4759
        %v4776 = vrsqrt.pop %v4760
        %v4777 = vrsqrt.pop %v4761
        %v4778 = vrsqrt.pop %v4762
        %v4779 = vrsqrt.pop %v4763
        %v4780 = vrsqrt.pop %v4764
        %v4781 = vrsqrt.pop %v4765
        %v4782 = vrsqrt.pop %v4766
        %v4783 = vrsqrt.pop %v4767
        %v4784 = vrsqrt.pop %v4768
        %v4785 = vrsqrt.pop %v4769
        %v4786 = vrsqrt.pop %v4770
        %v4787 = vrsqrt.pop %v4771
        %v4788 = vrsqrt.pop %v4772
        %v4789 = vrsqrt.pop %v4773
        %v4790 = vmul.f32 %v4662, %v4774
        %v4791 = vmul.f32 %v4663, %v4775
        %v4792 = vmul.f32 %v4664, %v4776
        %v4793 = vmul.f32 %v4665, %v4777
        %v4794 = vmul.f32 %v4666, %v4778
        %v4795 = vmul.f32 %v4667, %v4779
        %v4796 = vmul.f32 %v4668, %v4780
        %v4797 = vmul.f32 %v4669, %v4781
        %v4798 = vmul.f32 %v4670, %v4782
        %v4799 = vmul.f32 %v4671, %v4783
        %v4800 = vmul.f32 %v4672, %v4784
        %v4801 = vmul.f32 %v4673, %v4785
        %v4802 = vmul.f32 %v4674, %v4786
        %v4803 = vmul.f32 %v4675, %v4787
        %v4804 = vmul.f32 %v4676, %v4788
        %v4805 = vmul.f32 %v4677, %v4789
        %v4806 = vld [vmem:[%s7] sm:$0xff]
        %v4807 = vld [vmem:[%s7 + $0x8] sm:$0xff]
        %v4808 = vld [vmem:[%s7 + $0x10] sm:$0xff]
        %v4809 = vld [vmem:[%s7 + $0x18] sm:$0xff]
        %v4810 = vld [vmem:[%s7 + $0x20] sm:$0xff]
        %v4811 = vld [vmem:[%s7 + $0x28] sm:$0xff]
        %v4812 = vld [vmem:[%s7 + $0x30] sm:$0xff]
        %v4813 = vld [vmem:[%s7 + $0x38] sm:$0xff]
        %v4814 = vld [vmem:[%s7 + $0x40] sm:$0xff]
        %v4815 = vld [vmem:[%s7 + $0x48] sm:$0xff]
        %v4816 = vld [vmem:[%s7 + $0x50] sm:$0xff]
        %v4817 = vld [vmem:[%s7 + $0x58] sm:$0xff]
        %v4818 = vld [vmem:[%s7 + $0x60] sm:$0xff]
        %v4819 = vld [vmem:[%s7 + $0x68] sm:$0xff]
        %v4820 = vld [vmem:[%s7 + $0x70] sm:$0xff]
        %v4821 = vld [vmem:[%s7 + $0x78] sm:$0xff]
        %v4822 = vld [vmem:[%s7 + $0x80] sm:$0xff]
        %v4823 = vld [vmem:[%s7 + $0x88] sm:$0xff]
        %v4824 = vld [vmem:[%s7 + $0x90] sm:$0xff]
        %v4825 = vld [vmem:[%s7 + $0x98] sm:$0xff]
        %v4826 = vld [vmem:[%s7 + $0xa0] sm:$0xff]
        %v4827 = vld [vmem:[%s7 + $0xa8] sm:$0xff]
        %v4828 = vld [vmem:[%s7 + $0xb0] sm:$0xff]
        %v4829 = vld [vmem:[%s7 + $0xb8] sm:$0xff]
        %v4830 = vld [vmem:[%s7 + $0xc0] sm:$0xff]
        %v4831 = vld [vmem:[%s7 + $0xc8] sm:$0xff]
        %v4832 = vld [vmem:[%s7 + $0xd0] sm:$0xff]
        %v4833 = vld [vmem:[%s7 + $0xd8] sm:$0xff]
        %v4834 = vld [vmem:[%s7 + $0xe0] sm:$0xff]
        %v4835 = vld [vmem:[%s7 + $0xe8] sm:$0xff]
        %v4836 = vld [vmem:[%s7 + $0xf0] sm:$0xff]
        %v4837 = vld [vmem:[%s7 + $0xf8] sm:$0xff]
        %v4839 = vsel %vm622, %v4790, 0
        %v4842 = vsel %vm622, %v4791, 0
        %v4845 = vsel %vm622, %v4792, 0
        %v4848 = vsel %vm622, %v4793, 0
        %v4851 = vsel %vm622, %v4794, 0
        %v4854 = vsel %vm622, %v4795, 0
        %v4857 = vsel %vm622, %v4796, 0
        %v4860 = vsel %vm622, %v4797, 0
        %v4863 = vsel %vm622, %v4798, 0
        %v4866 = vsel %vm622, %v4799, 0
        %v4869 = vsel %vm622, %v4800, 0
        %v4872 = vsel %vm622, %v4801, 0
        %v4875 = vsel %vm622, %v4802, 0
        %v4878 = vsel %vm622, %v4803, 0
        %v4881 = vsel %vm622, %v4804, 0
        %v4884 = vsel %vm622, %v4805, 0
        %4886 = vmatprep.subr.mxu0 %v4807
        %4887 = vmatpush1.msra.mxu0 %v4806
        %4888 = vmatprep.subr.mxu0 %v4811
        %4889 = vmatpush1.msra.mxu0 %v4810
        %4890 = vmatprep.subr.mxu0 %v4815
        %4891 = vmatpush1.msra.mxu0 %v4814
        %4892 = vmatprep.subr.mxu0 %v4819
        %4893 = vmatpush1.msra.mxu0 %v4818
        %4894 = vmatprep.subr.mxu0 %v4823
        %4895 = vmatpush1.msra.mxu0 %v4822
        %4896 = vmatprep.subr.mxu0 %v4827
        %4897 = vmatpush1.msra.mxu0 %v4826
        %4898 = vmatprep.subr.mxu0 %v4831
        %4899 = vmatpush1.msra.mxu0 %v4830
        %4900 = vmatprep.subr.mxu0 %v4835
        %4901 = vmatpush1.msra.mxu0 %v4834
        %4902 = vmatprep.subr.mxu0 0.0
        %4903 = vmatpush1.msra.mxu0 0.0
        %4904 = vmatprep.subr.mxu0 0.0
        %4905 = vmatpush1.msra.mxu0 0.0
        %4906 = vmatprep.subr.mxu0 0.0
        %4907 = vmatpush1.msra.mxu0 0.0
        %4908 = vmatprep.subr.mxu0 0.0
        %4909 = vmatpush1.msra.mxu0 0.0
        %4910 = vmatprep.subr.mxu0 0.0
        %4911 = vmatpush1.msra.mxu0 0.0
        %4912 = vmatprep.subr.mxu0 0.0
        %4913 = vmatpush1.msra.mxu0 0.0
        %4914 = vmatprep.subr.mxu0 0.0
        %4915 = vmatpush1.msra.mxu0 0.0
        %4916 = vmatprep.subr.mxu0 0.0
        %4917 = vmatpush1.msra.mxu0 0.0
        %4918 = vmatprep.subr.mxu0 0.0
        %4919 = vmatpush1.msra.mxu0 0.0
        %4920 = vmatprep.subr.mxu0 0.0
        %4921 = vmatpush1.msra.mxu0 0.0
        %4922 = vmatprep.subr.mxu0 0.0
        %4923 = vmatpush1.msra.mxu0 0.0
        %4924 = vmatprep.subr.mxu0 0.0
        %4925 = vmatpush1.msra.mxu0 0.0
        %4926 = vmatprep.subr.mxu0 0.0
        %4927 = vmatpush1.msra.mxu0 0.0
        %4928 = vmatprep.subr.mxu0 0.0
        %4929 = vmatpush1.msra.mxu0 0.0
        %4930 = vmatprep.subr.mxu0 0.0
        %4931 = vmatpush1.msra.mxu0 0.0
        %4932 = vmatprep.subr.mxu0 0.0
        %4933 = vmatpush1.msra.mxu0 0.0
        %4934 = vmatprep.subr.mxu0 0.0
        %4935 = vmatpush1.msra.mxu0 0.0
        %4936 = vmatprep.subr.mxu0 0.0
        %4937 = vmatpush1.msra.mxu0 0.0
        %4938 = vmatprep.subr.mxu0 0.0
        %4939 = vmatpush1.msra.mxu0 0.0
        %4940 = vmatprep.subr.mxu0 0.0
        %4941 = vmatpush1.msra.mxu0 0.0
        %4942 = vmatprep.subr.mxu0 0.0
        %4943 = vmatpush1.msra.mxu0 0.0
        %4944 = vmatprep.subr.mxu0 0.0
        %4945 = vmatpush1.msra.mxu0 0.0
        %4946 = vmatprep.subr.mxu0 0.0
        %4947 = vmatpush1.msra.mxu0 0.0
        %4948 = vmatprep.subr.mxu0 0.0
        %4949 = vmatpush1.msra.mxu0 0.0
        %4950 = vmatprep.mubr.f32.mxu0 0.0
        %4951 = vmatmul.mubr.f32.gmra.mrb[0].mxu0 %v4839
        %v4952 = vpop.f32.mrb[0].mxu0
        %v4953 = vadd.f32 0.0, %v4952
        %v4954 = vpop.f32.mrb[0].mxu0
        %v4955 = vadd.f32 0.0, %v4954
        %4956 = vmatprep.mubr.f32.mxu0 0.0
        %4957 = vmatmul.mubr.f32.gmra.mrb[0].mxu0 %v4842
        %v4958 = vpop.f32.mrb[0].mxu0
        %v4959 = vadd.f32 0.0, %v4958
        %v4960 = vpop.f32.mrb[0].mxu0
        %v4961 = vadd.f32 0.0, %v4960
        %4962 = vmatprep.mubr.f32.mxu0 0.0
        %4963 = vmatmul.mubr.f32.gmra.mrb[0].mxu0 %v4845
        %v4964 = vpop.f32.mrb[0].mxu0
        %v4965 = vadd.f32 0.0, %v4964
        %v4966 = vpop.f32.mrb[0].mxu0
        %v4967 = vadd.f32 0.0, %v4966
        %4968 = vmatprep.mubr.f32.mxu0 0.0
        %4969 = vmatmul.mubr.f32.gmra.mrb[0].mxu0 %v4848
        %v4970 = vpop.f32.mrb[0].mxu0
        %v4971 = vadd.f32 0.0, %v4970
        %v4972 = vpop.f32.mrb[0].mxu0
        %v4973 = vadd.f32 0.0, %v4972
        %4974 = vmatprep.mubr.f32.mxu0 0.0
        %4975 = vmatmul.mubr.f32.gmra.mrb[0].mxu0 %v4851
        %v4976 = vpop.f32.mrb[0].mxu0
        %v4977 = vadd.f32 0.0, %v4976
        %v4978 = vpop.f32.mrb[0].mxu0
        %v4979 = vadd.f32 0.0, %v4978
        %4980 = vmatprep.mubr.f32.mxu0 0.0
        %4981 = vmatmul.mubr.f32.gmra.mrb[0].mxu0 %v4854
        %v4982 = vpop.f32.mrb[0].mxu0
        %v4983 = vadd.f32 0.0, %v4982
        %v4984 = vpop.f32.mrb[0].mxu0
        %v4985 = vadd.f32 0.0, %v4984
        %4986 = vmatprep.mubr.f32.mxu0 0.0
        %4987 = vmatmul.mubr.f32.gmra.mrb[0].mxu0 %v4857
        %v4988 = vpop.f32.mrb[0].mxu0
        %v4989 = vadd.f32 0.0, %v4988
        %v4990 = vpop.f32.mrb[0].mxu0
        %v4991 = vadd.f32 0.0, %v4990
        %4992 = vmatprep.mubr.f32.mxu0 0.0
        %4993 = vmatmul.mubr.f32.gmra.mrb[0].mxu0 %v4860
        %v4994 = vpop.f32.mrb[0].mxu0
        %v4995 = vadd.f32 0.0, %v4994
        %v4996 = vpop.f32.mrb[0].mxu0
        %v4997 = vadd.f32 0.0, %v4996
        %4998 = vmatprep.mubr.f32.mxu0 0.0
        %4999 = vmatmul.mubr.f32.gmra.mrb[0].mxu0 %v4863
        %v5000 = vpop.f32.mrb[0].mxu0
        %v5001 = vadd.f32 0.0, %v5000
        %v5002 = vpop.f32.mrb[0].mxu0
        %v5003 = vadd.f32 0.0, %v5002
        %5004 = vmatprep.mubr.f32.mxu0 0.0
        %5005 = vmatmul.mubr.f32.gmra.mrb[0].mxu0 %v4866
        %v5006 = vpop.f32.mrb[0].mxu0
        %v5007 = vadd.f32 0.0, %v5006
        %v5008 = vpop.f32.mrb[0].mxu0
        %v5009 = vadd.f32 0.0, %v5008
        %5010 = vmatprep.mubr.f32.mxu0 0.0
        %5011 = vmatmul.mubr.f32.gmra.mrb[0].mxu0 %v4869
        %v5012 = vpop.f32.mrb[0].mxu0
        %v5013 = vadd.f32 0.0, %v5012
        %v5014 = vpop.f32.mrb[0].mxu0
        %v5015 = vadd.f32 0.0, %v5014
        %5016 = vmatprep.mubr.f32.mxu0 0.0
        %5017 = vmatmul.mubr.f32.gmra.mrb[0].mxu0 %v4872
        %v5018 = vpop.f32.mrb[0].mxu0
        %v5019 = vadd.f32 0.0, %v5018
        %v5020 = vpop.f32.mrb[0].mxu0
        %v5021 = vadd.f32 0.0, %v5020
        %5022 = vmatprep.mubr.f32.mxu0 0.0
        %5023 = vmatmul.mubr.f32.gmra.mrb[0].mxu0 %v4875
        %v5024 = vpop.f32.mrb[0].mxu0
        %v5025 = vadd.f32 0.0, %v5024
        %v5026 = vpop.f32.mrb[0].mxu0
        %v5027 = vadd.f32 0.0, %v5026
        %5028 = vmatprep.mubr.f32.mxu0 0.0
        %5029 = vmatmul.mubr.f32.gmra.mrb[0].mxu0 %v4878
        %v5030 = vpop.f32.mrb[0].mxu0
        %v5031 = vadd.f32 0.0, %v5030
        %v5032 = vpop.f32.mrb[0].mxu0
        %v5033 = vadd.f32 0.0, %v5032
        %5034 = vmatprep.mubr.f32.mxu0 0.0
        %5035 = vmatmul.mubr.f32.gmra.mrb[0].mxu0 %v4881
        %v5036 = vpop.f32.mrb[0].mxu0
        %v5037 = vadd.f32 0.0, %v5036
        %v5038 = vpop.f32.mrb[0].mxu0
        %v5039 = vadd.f32 0.0, %v5038
        %5040 = vmatprep.mubr.f32.mxu0 0.0
        %5041 = vmatmul.mubr.f32.gmra.mrb[0].mxu0 %v4884
        %v5042 = vpop.f32.mrb[0].mxu0
        %v5043 = vadd.f32 0.0, %v5042
        %v5044 = vpop.f32.mrb[0].mxu0
        %v5045 = vadd.f32 0.0, %v5044
        %5046 = vdwg.mxu0
        %5047 = vmatprep.subr.mxu0 %v4809
        %5048 = vmatpush1.msra.mxu0 %v4808
        %5049 = vmatprep.subr.mxu0 %v4813
        %5050 = vmatpush1.msra.mxu0 %v4812
        %5051 = vmatprep.subr.mxu0 %v4817
        %5052 = vmatpush1.msra.mxu0 %v4816
        %5053 = vmatprep.subr.mxu0 %v4821
        %5054 = vmatpush1.msra.mxu0 %v4820
        %5055 = vmatprep.subr.mxu0 %v4825
        %5056 = vmatpush1.msra.mxu0 %v4824
        %5057 = vmatprep.subr.mxu0 %v4829
        %5058 = vmatpush1.msra.mxu0 %v4828
        %5059 = vmatprep.subr.mxu0 %v4833
        %5060 = vmatpush1.msra.mxu0 %v4832
        %5061 = vmatprep.subr.mxu0 %v4837
        %5062 = vmatpush1.msra.mxu0 %v4836
        %5063 = vmatprep.subr.mxu0 0.0
        %5064 = vmatpush1.msra.mxu0 0.0
        %5065 = vmatprep.subr.mxu0 0.0
        %5066 = vmatpush1.msra.mxu0 0.0
        %5067 = vmatprep.subr.mxu0 0.0
        %5068 = vmatpush1.msra.mxu0 0.0
        %5069 = vmatprep.subr.mxu0 0.0
        %5070 = vmatpush1.msra.mxu0 0.0
        %5071 = vmatprep.subr.mxu0 0.0
        %5072 = vmatpush1.msra.mxu0 0.0
        %5073 = vmatprep.subr.mxu0 0.0
        %5074 = vmatpush1.msra.mxu0 0.0
        %5075 = vmatprep.subr.mxu0 0.0
        %5076 = vmatpush1.msra.mxu0 0.0
        %5077 = vmatprep.subr.mxu0 0.0
        %5078 = vmatpush1.msra.mxu0 0.0
        %5079 = vmatprep.subr.mxu0 0.0
        %5080 = vmatpush1.msra.mxu0 0.0
        %5081 = vmatprep.subr.mxu0 0.0
        %5082 = vmatpush1.msra.mxu0 0.0
        %5083 = vmatprep.subr.mxu0 0.0
        %5084 = vmatpush1.msra.mxu0 0.0
        %5085 = vmatprep.subr.mxu0 0.0
        %5086 = vmatpush1.msra.mxu0 0.0
        %5087 = vmatprep.subr.mxu0 0.0
        %5088 = vmatpush1.msra.mxu0 0.0
        %5089 = vmatprep.subr.mxu0 0.0
        %5090 = vmatpush1.msra.mxu0 0.0
        %5091 = vmatprep.subr.mxu0 0.0
        %5092 = vmatpush1.msra.mxu0 0.0
        %5093 = vmatprep.subr.mxu0 0.0
        %5094 = vmatpush1.msra.mxu0 0.0
        %5095 = vmatprep.subr.mxu0 0.0
        %5096 = vmatpush1.msra.mxu0 0.0
        %5097 = vmatprep.subr.mxu0 0.0
        %5098 = vmatpush1.msra.mxu0 0.0
        %5099 = vmatprep.subr.mxu0 0.0
        %5100 = vmatpush1.msra.mxu0 0.0
        %5101 = vmatprep.subr.mxu0 0.0
        %5102 = vmatpush1.msra.mxu0 0.0
        %5103 = vmatprep.subr.mxu0 0.0
        %5104 = vmatpush1.msra.mxu0 0.0
        %5105 = vmatprep.subr.mxu0 0.0
        %5106 = vmatpush1.msra.mxu0 0.0
        %5107 = vmatprep.subr.mxu0 0.0
        %5108 = vmatpush1.msra.mxu0 0.0
        %5109 = vmatprep.subr.mxu0 0.0
        %5110 = vmatpush1.msra.mxu0 0.0
        %5111 = vmatprep.mubr.f32.mxu0 0.0
        %5112 = vmatmul.mubr.f32.gmra.mrb[0].mxu0 %v4839
        %v5113 = vpop.f32.mrb[0].mxu0
        %v5114 = vadd.f32 0.0, %v5113
        %v5115 = vpop.f32.mrb[0].mxu0
        %v5116 = vadd.f32 0.0, %v5115
        %5117 = vmatprep.mubr.f32.mxu0 0.0
        %5118 = vmatmul.mubr.f32.gmra.mrb[0].mxu0 %v4842
        %v5119 = vpop.f32.mrb[0].mxu0
        %v5120 = vadd.f32 0.0, %v5119
        %v5121 = vpop.f32.mrb[0].mxu0
        %v5122 = vadd.f32 0.0, %v5121
        %5123 = vmatprep.mubr.f32.mxu0 0.0
        %5124 = vmatmul.mubr.f32.gmra.mrb[0].mxu0 %v4845
        %v5125 = vpop.f32.mrb[0].mxu0
        %v5126 = vadd.f32 0.0, %v5125
        %v5127 = vpop.f32.mrb[0].mxu0
        %v5128 = vadd.f32 0.0, %v5127
        %5129 = vmatprep.mubr.f32.mxu0 0.0
        %5130 = vmatmul.mubr.f32.gmra.mrb[0].mxu0 %v4848
        %v5131 = vpop.f32.mrb[0].mxu0
        %v5132 = vadd.f32 0.0, %v5131
        %v5133 = vpop.f32.mrb[0].mxu0
        %v5134 = vadd.f32 0.0, %v5133
        %5135 = vmatprep.mubr.f32.mxu0 0.0
        %5136 = vmatmul.mubr.f32.gmra.mrb[0].mxu0 %v4851
        %v5137 = vpop.f32.mrb[0].mxu0
        %v5138 = vadd.f32 0.0, %v5137
        %v5139 = vpop.f32.mrb[0].mxu0
        %v5140 = vadd.f32 0.0, %v5139
        %5141 = vmatprep.mubr.f32.mxu0 0.0
        %5142 = vmatmul.mubr.f32.gmra.mrb[0].mxu0 %v4854
        %v5143 = vpop.f32.mrb[0].mxu0
        %v5144 = vadd.f32 0.0, %v5143
        %v5145 = vpop.f32.mrb[0].mxu0
        %v5146 = vadd.f32 0.0, %v5145
        %5147 = vmatprep.mubr.f32.mxu0 0.0
        %5148 = vmatmul.mubr.f32.gmra.mrb[0].mxu0 %v4857
        %v5149 = vpop.f32.mrb[0].mxu0
        %v5150 = vadd.f32 0.0, %v5149
        %v5151 = vpop.f32.mrb[0].mxu0
        %v5152 = vadd.f32 0.0, %v5151
        %5153 = vmatprep.mubr.f32.mxu0 0.0
        %5154 = vmatmul.mubr.f32.gmra.mrb[0].mxu0 %v4860
        %v5155 = vpop.f32.mrb[0].mxu0
        %v5156 = vadd.f32 0.0, %v5155
        %v5157 = vpop.f32.mrb[0].mxu0
        %v5158 = vadd.f32 0.0, %v5157
        %5159 = vmatprep.mubr.f32.mxu0 0.0
        %5160 = vmatmul.mubr.f32.gmra.mrb[0].mxu0 %v4863
        %v5161 = vpop.f32.mrb[0].mxu0
        %v5162 = vadd.f32 0.0, %v5161
        %v5163 = vpop.f32.mrb[0].mxu0
        %v5164 = vadd.f32 0.0, %v5163
        %5165 = vmatprep.mubr.f32.mxu0 0.0
        %5166 = vmatmul.mubr.f32.gmra.mrb[0].mxu0 %v4866
        %v5167 = vpop.f32.mrb[0].mxu0
        %v5168 = vadd.f32 0.0, %v5167
        %v5169 = vpop.f32.mrb[0].mxu0
        %v5170 = vadd.f32 0.0, %v5169
        %5171 = vmatprep.mubr.f32.mxu0 0.0
        %5172 = vmatmul.mubr.f32.gmra.mrb[0].mxu0 %v4869
        %v5173 = vpop.f32.mrb[0].mxu0
        %v5174 = vadd.f32 0.0, %v5173
        %v5175 = vpop.f32.mrb[0].mxu0
        %v5176 = vadd.f32 0.0, %v5175
        %5177 = vmatprep.mubr.f32.mxu0 0.0
        %5178 = vmatmul.mubr.f32.gmra.mrb[0].mxu0 %v4872
        %v5179 = vpop.f32.mrb[0].mxu0
        %v5180 = vadd.f32 0.0, %v5179
        %v5181 = vpop.f32.mrb[0].mxu0
        %v5182 = vadd.f32 0.0, %v5181
        %5183 = vmatprep.mubr.f32.mxu0 0.0
        %5184 = vmatmul.mubr.f32.gmra.mrb[0].mxu0 %v4875
        %v5185 = vpop.f32.mrb[0].mxu0
        %v5186 = vadd.f32 0.0, %v5185
        %v5187 = vpop.f32.mrb[0].mxu0
        %v5188 = vadd.f32 0.0, %v5187
        %5189 = vmatprep.mubr.f32.mxu0 0.0
        %5190 = vmatmul.mubr.f32.gmra.mrb[0].mxu0 %v4878
        %v5191 = vpop.f32.mrb[0].mxu0
        %v5192 = vadd.f32 0.0, %v5191
        %v5193 = vpop.f32.mrb[0].mxu0
        %v5194 = vadd.f32 0.0, %v5193
        %5195 = vmatprep.mubr.f32.mxu0 0.0
        %5196 = vmatmul.mubr.f32.gmra.mrb[0].mxu0 %v4881
        %v5197 = vpop.f32.mrb[0].mxu0
        %v5198 = vadd.f32 0.0, %v5197
        %v5199 = vpop.f32.mrb[0].mxu0
        %v5200 = vadd.f32 0.0, %v5199
        %5201 = vmatprep.mubr.f32.mxu0 0.0
        %5202 = vmatmul.mubr.f32.gmra.mrb[0].mxu0 %v4884
        %v5203 = vpop.f32.mrb[0].mxu0
        %v5204 = vadd.f32 0.0, %v5203
        %v5205 = vpop.f32.mrb[0].mxu0
        %v5206 = vadd.f32 0.0, %v5205
        %5207 = vdwg.mxu0
        %v5208 = vmax.f32 %v4953, 0.0
        %v5209 = vmax.f32 %v4955, 0.0
        %v5210 = vmax.f32 %v5114, 0.0
        %v5211 = vmax.f32 %v5116, 0.0
        %v5212 = vmax.f32 %v4959, 0.0
        %v5213 = vmax.f32 %v4961, 0.0
        %v5214 = vmax.f32 %v5120, 0.0
        %v5215 = vmax.f32 %v5122, 0.0
        %v5216 = vmax.f32 %v4965, 0.0
        %v5217 = vmax.f32 %v4967, 0.0
        %v5218 = vmax.f32 %v5126, 0.0
        %v5219 = vmax.f32 %v5128, 0.0
        %v5220 = vmax.f32 %v4971, 0.0
        %v5221 = vmax.f32 %v4973, 0.0
        %v5222 = vmax.f32 %v5132, 0.0
        %v5223 = vmax.f32 %v5134, 0.0
        %v5224 = vmax.f32 %v4977, 0.0
        %v5225 = vmax.f32 %v4979, 0.0
        %v5226 = vmax.f32 %v5138, 0.0
        %v5227 = vmax.f32 %v5140, 0.0
        %v5228 = vmax.f32 %v4983, 0.0
        %v5229 = vmax.f32 %v4985, 0.0
        %v5230 = vmax.f32 %v5144, 0.0
        %v5231 = vmax.f32 %v5146, 0.0
        %v5232 = vmax.f32 %v4989, 0.0
        %v5233 = vmax.f32 %v4991, 0.0
        %v5234 = vmax.f32 %v5150, 0.0
        %v5235 = vmax.f32 %v5152, 0.0
        %v5236 = vmax.f32 %v4995, 0.0
        %v5237 = vmax.f32 %v4997, 0.0
        %v5238 = vmax.f32 %v5156, 0.0
        %v5239 = vmax.f32 %v5158, 0.0
        %v5240 = vmax.f32 %v5001, 0.0
        %v5241 = vmax.f32 %v5003, 0.0
        %v5242 = vmax.f32 %v5162, 0.0
        %v5243 = vmax.f32 %v5164, 0.0
        %v5244 = vmax.f32 %v5007, 0.0
        %v5245 = vmax.f32 %v5009, 0.0
        %v5246 = vmax.f32 %v5168, 0.0
        %v5247 = vmax.f32 %v5170, 0.0
        %v5248 = vmax.f32 %v5013, 0.0
        %v5249 = vmax.f32 %v5015, 0.0
        %v5250 = vmax.f32 %v5174, 0.0
        %v5251 = vmax.f32 %v5176, 0.0
        %v5252 = vmax.f32 %v5019, 0.0
        %v5253 = vmax.f32 %v5021, 0.0
        %v5254 = vmax.f32 %v5180, 0.0
        %v5255 = vmax.f32 %v5182, 0.0
        %v5256 = vmax.f32 %v5025, 0.0
        %v5257 = vmax.f32 %v5027, 0.0
        %v5258 = vmax.f32 %v5186, 0.0
        %v5259 = vmax.f32 %v5188, 0.0
        %v5260 = vmax.f32 %v5031, 0.0
        %v5261 = vmax.f32 %v5033, 0.0
        %v5262 = vmax.f32 %v5192, 0.0
        %v5263 = vmax.f32 %v5194, 0.0
        %v5264 = vmax.f32 %v5037, 0.0
        %v5265 = vmax.f32 %v5039, 0.0
        %v5266 = vmax.f32 %v5198, 0.0
        %v5267 = vmax.f32 %v5200, 0.0
        %v5268 = vmax.f32 %v5043, 0.0
        %v5269 = vmax.f32 %v5045, 0.0
        %v5270 = vmax.f32 %v5204, 0.0
        %v5271 = vmax.f32 %v5206, 0.0
        %v5272 = vld [vmem:[%s8] sm:$0xff]
        %v5273 = vld [vmem:[%s8 + $0x8] sm:$0xff]
        %v5274 = vld [vmem:[%s8 + $0x10] sm:$0xff]
        %v5275 = vld [vmem:[%s8 + $0x18] sm:$0xff]
        %v5276 = vld [vmem:[%s8 + $0x20] sm:$0xff]
        %v5277 = vld [vmem:[%s8 + $0x28] sm:$0xff]
        %v5278 = vld [vmem:[%s8 + $0x30] sm:$0xff]
        %v5279 = vld [vmem:[%s8 + $0x38] sm:$0xff]
        %v5280 = vld [vmem:[%s8 + $0x40] sm:$0xff]
        %v5281 = vld [vmem:[%s8 + $0x48] sm:$0xff]
        %v5282 = vld [vmem:[%s8 + $0x50] sm:$0xff]
        %v5283 = vld [vmem:[%s8 + $0x58] sm:$0xff]
        %v5284 = vld [vmem:[%s8 + $0x60] sm:$0xff]
        %v5285 = vld [vmem:[%s8 + $0x68] sm:$0xff]
        %v5286 = vld [vmem:[%s8 + $0x70] sm:$0xff]
        %v5287 = vld [vmem:[%s8 + $0x78] sm:$0xff]
        %v5288 = vld [vmem:[%s8 + $0x80] sm:$0xff]
        %v5289 = vld [vmem:[%s8 + $0x88] sm:$0xff]
        %v5290 = vld [vmem:[%s8 + $0x90] sm:$0xff]
        %v5291 = vld [vmem:[%s8 + $0x98] sm:$0xff]
        %v5292 = vld [vmem:[%s8 + $0xa0] sm:$0xff]
        %v5293 = vld [vmem:[%s8 + $0xa8] sm:$0xff]
        %v5294 = vld [vmem:[%s8 + $0xb0] sm:$0xff]
        %v5295 = vld [vmem:[%s8 + $0xb8] sm:$0xff]
        %v5296 = vld [vmem:[%s8 + $0xc0] sm:$0xff]
        %v5297 = vld [vmem:[%s8 + $0xc8] sm:$0xff]
        %v5298 = vld [vmem:[%s8 + $0xd0] sm:$0xff]
        %v5299 = vld [vmem:[%s8 + $0xd8] sm:$0xff]
        %v5300 = vld [vmem:[%s8 + $0xe0] sm:$0xff]
        %v5301 = vld [vmem:[%s8 + $0xe8] sm:$0xff]
        %v5302 = vld [vmem:[%s8 + $0xf0] sm:$0xff]
        %v5303 = vld [vmem:[%s8 + $0xf8] sm:$0xff]
        %v5304 = vld [vmem:[%s8 + $0x100] sm:$0xff]
        %v5305 = vld [vmem:[%s8 + $0x108] sm:$0xff]
        %v5306 = vld [vmem:[%s8 + $0x110] sm:$0xff]
        %v5307 = vld [vmem:[%s8 + $0x118] sm:$0xff]
        %v5308 = vld [vmem:[%s8 + $0x120] sm:$0xff]
        %v5309 = vld [vmem:[%s8 + $0x128] sm:$0xff]
        %v5310 = vld [vmem:[%s8 + $0x130] sm:$0xff]
        %v5311 = vld [vmem:[%s8 + $0x138] sm:$0xff]
        %v5312 = vld [vmem:[%s8 + $0x140] sm:$0xff]
        %v5313 = vld [vmem:[%s8 + $0x148] sm:$0xff]
        %v5314 = vld [vmem:[%s8 + $0x150] sm:$0xff]
        %v5315 = vld [vmem:[%s8 + $0x158] sm:$0xff]
        %v5316 = vld [vmem:[%s8 + $0x160] sm:$0xff]
        %v5317 = vld [vmem:[%s8 + $0x168] sm:$0xff]
        %v5318 = vld [vmem:[%s8 + $0x170] sm:$0xff]
        %v5319 = vld [vmem:[%s8 + $0x178] sm:$0xff]
        %v5320 = vld [vmem:[%s8 + $0x180] sm:$0xff]
        %v5321 = vld [vmem:[%s8 + $0x188] sm:$0xff]
        %v5322 = vld [vmem:[%s8 + $0x190] sm:$0xff]
        %v5323 = vld [vmem:[%s8 + $0x198] sm:$0xff]
        %v5324 = vld [vmem:[%s8 + $0x1a0] sm:$0xff]
        %v5325 = vld [vmem:[%s8 + $0x1a8] sm:$0xff]
        %v5326 = vld [vmem:[%s8 + $0x1b0] sm:$0xff]
        %v5327 = vld [vmem:[%s8 + $0x1b8] sm:$0xff]
        %v5328 = vld [vmem:[%s8 + $0x1c0] sm:$0xff]
        %v5329 = vld [vmem:[%s8 + $0x1c8] sm:$0xff]
        %v5330 = vld [vmem:[%s8 + $0x1d0] sm:$0xff]
        %v5331 = vld [vmem:[%s8 + $0x1d8] sm:$0xff]
        %v5332 = vld [vmem:[%s8 + $0x1e0] sm:$0xff]
        %v5333 = vld [vmem:[%s8 + $0x1e8] sm:$0xff]
        %v5334 = vld [vmem:[%s8 + $0x1f0] sm:$0xff]
        %v5335 = vld [vmem:[%s8 + $0x1f8] sm:$0xff]
        %5336 = vmatprep.subr.mxu0 0.0
        %5337 = vmatpush1.msra.mxu0 %v5272
        %5338 = vmatprep.subr.mxu0 0.0
        %5339 = vmatpush1.msra.mxu0 %v5273
        %5340 = vmatprep.subr.mxu0 0.0
        %5341 = vmatpush1.msra.mxu0 %v5274
        %5342 = vmatprep.subr.mxu0 0.0
        %5343 = vmatpush1.msra.mxu0 %v5275
        %5344 = vmatprep.subr.mxu0 0.0
        %5345 = vmatpush1.msra.mxu0 %v5276
        %5346 = vmatprep.subr.mxu0 0.0
        %5347 = vmatpush1.msra.mxu0 %v5277
        %5348 = vmatprep.subr.mxu0 0.0
        %5349 = vmatpush1.msra.mxu0 %v5278
        %5350 = vmatprep.subr.mxu0 0.0
        %5351 = vmatpush1.msra.mxu0 %v5279
        %5352 = vmatprep.subr.mxu0 0.0
        %5353 = vmatpush1.msra.mxu0 %v5280
        %5354 = vmatprep.subr.mxu0 0.0
        %5355 = vmatpush1.msra.mxu0 %v5281
        %5356 = vmatprep.subr.mxu0 0.0
        %5357 = vmatpush1.msra.mxu0 %v5282
        %5358 = vmatprep.subr.mxu0 0.0
        %5359 = vmatpush1.msra.mxu0 %v5283
        %5360 = vmatprep.subr.mxu0 0.0
        %5361 = vmatpush1.msra.mxu0 %v5284
        %5362 = vmatprep.subr.mxu0 0.0
        %5363 = vmatpush1.msra.mxu0 %v5285
        %5364 = vmatprep.subr.mxu0 0.0
        %5365 = vmatpush1.msra.mxu0 %v5286
        %5366 = vmatprep.subr.mxu0 0.0
        %5367 = vmatpush1.msra.mxu0 %v5287
        %5368 = vmatprep.subr.mxu0 0.0
        %5369 = vmatpush1.msra.mxu0 %v5288
        %5370 = vmatprep.subr.mxu0 0.0
        %5371 = vmatpush1.msra.mxu0 %v5289
        %5372 = vmatprep.subr.mxu0 0.0
        %5373 = vmatpush1.msra.mxu0 %v5290
        %5374 = vmatprep.subr.mxu0 0.0
        %5375 = vmatpush1.msra.mxu0 %v5291
        %5376 = vmatprep.subr.mxu0 0.0
        %5377 = vmatpush1.msra.mxu0 %v5292
        %5378 = vmatprep.subr.mxu0 0.0
        %5379 = vmatpush1.msra.mxu0 %v5293
        %5380 = vmatprep.subr.mxu0 0.0
        %5381 = vmatpush1.msra.mxu0 %v5294
        %5382 = vmatprep.subr.mxu0 0.0
        %5383 = vmatpush1.msra.mxu0 %v5295
        %5384 = vmatprep.subr.mxu0 0.0
        %5385 = vmatpush1.msra.mxu0 %v5296
        %5386 = vmatprep.subr.mxu0 0.0
        %5387 = vmatpush1.msra.mxu0 %v5297
        %5388 = vmatprep.subr.mxu0 0.0
        %5389 = vmatpush1.msra.mxu0 %v5298
        %5390 = vmatprep.subr.mxu0 0.0
        %5391 = vmatpush1.msra.mxu0 %v5299
        %5392 = vmatprep.subr.mxu0 0.0
        %5393 = vmatpush1.msra.mxu0 %v5300
        %5394 = vmatprep.subr.mxu0 0.0
        %5395 = vmatpush1.msra.mxu0 %v5301
        %5396 = vmatprep.subr.mxu0 0.0
        %5397 = vmatpush1.msra.mxu0 %v5302
        %5398 = vmatprep.subr.mxu0 0.0
        %5399 = vmatpush1.msra.mxu0 %v5303
        %5400 = vmatprep.mubr.f32.mxu0 %v5209
        %5401 = vmatmul.mubr.f32.gmra.mrb[0].mxu0 %v5208
        %v5402 = vpop.f32.mrb[0].mxu0
        %v5403 = vadd.f32 %v4790, %v5402
        %v5404 = vpop.f32.mrb[0].mxu0
        %5405 = vmatprep.mubr.f32.mxu0 %v5213
        %5406 = vmatmul.mubr.f32.gmra.mrb[0].mxu0 %v5212
        %v5407 = vpop.f32.mrb[0].mxu0
        %v5408 = vadd.f32 %v4791, %v5407
        %v5409 = vpop.f32.mrb[0].mxu0
        %5410 = vmatprep.mubr.f32.mxu0 %v5217
        %5411 = vmatmul.mubr.f32.gmra.mrb[0].mxu0 %v5216
        %v5412 = vpop.f32.mrb[0].mxu0
        %v5413 = vadd.f32 %v4792, %v5412
        %v5414 = vpop.f32.mrb[0].mxu0
        %5415 = vmatprep.mubr.f32.mxu0 %v5221
        %5416 = vmatmul.mubr.f32.gmra.mrb[0].mxu0 %v5220
        %v5417 = vpop.f32.mrb[0].mxu0
        %v5418 = vadd.f32 %v4793, %v5417
        %v5419 = vpop.f32.mrb[0].mxu0
        %5420 = vmatprep.mubr.f32.mxu0 %v5225
        %5421 = vmatmul.mubr.f32.gmra.mrb[0].mxu0 %v5224
        %v5422 = vpop.f32.mrb[0].mxu0
        %v5423 = vadd.f32 %v4794, %v5422
        %v5424 = vpop.f32.mrb[0].mxu0
        %5425 = vmatprep.mubr.f32.mxu0 %v5229
        %5426 = vmatmul.mubr.f32.gmra.mrb[0].mxu0 %v5228
        %v5427 = vpop.f32.mrb[0].mxu0
        %v5428 = vadd.f32 %v4795, %v5427
        %v5429 = vpop.f32.mrb[0].mxu0
        %5430 = vmatprep.mubr.f32.mxu0 %v5233
        %5431 = vmatmul.mubr.f32.gmra.mrb[0].mxu0 %v5232
        %v5432 = vpop.f32.mrb[0].mxu0
        %v5433 = vadd.f32 %v4796, %v5432
        %v5434 = vpop.f32.mrb[0].mxu0
        %5435 = vmatprep.mubr.f32.mxu0 %v5237
        %5436 = vmatmul.mubr.f32.gmra.mrb[0].mxu0 %v5236
        %v5437 = vpop.f32.mrb[0].mxu0
        %v5438 = vadd.f32 %v4797, %v5437
        %v5439 = vpop.f32.mrb[0].mxu0
        %5440 = vmatprep.mubr.f32.mxu0 %v5241
        %5441 = vmatmul.mubr.f32.gmra.mrb[0].mxu0 %v5240
        %v5442 = vpop.f32.mrb[0].mxu0
        %v5443 = vadd.f32 %v4798, %v5442
        %v5444 = vpop.f32.mrb[0].mxu0
        %5445 = vmatprep.mubr.f32.mxu0 %v5245
        %5446 = vmatmul.mubr.f32.gmra.mrb[0].mxu0 %v5244
        %v5447 = vpop.f32.mrb[0].mxu0
        %v5448 = vadd.f32 %v4799, %v5447
        %v5449 = vpop.f32.mrb[0].mxu0
        %5450 = vmatprep.mubr.f32.mxu0 %v5249
        %5451 = vmatmul.mubr.f32.gmra.mrb[0].mxu0 %v5248
        %v5452 = vpop.f32.mrb[0].mxu0
        %v5453 = vadd.f32 %v4800, %v5452
        %v5454 = vpop.f32.mrb[0].mxu0
        %5455 = vmatprep.mubr.f32.mxu0 %v5253
        %5456 = vmatmul.mubr.f32.gmra.mrb[0].mxu0 %v5252
        %v5457 = vpop.f32.mrb[0].mxu0
        %v5458 = vadd.f32 %v4801, %v5457
        %v5459 = vpop.f32.mrb[0].mxu0
        %5460 = vmatprep.mubr.f32.mxu0 %v5257
        %5461 = vmatmul.mubr.f32.gmra.mrb[0].mxu0 %v5256
        %v5462 = vpop.f32.mrb[0].mxu0
        %v5463 = vadd.f32 %v4802, %v5462
        %v5464 = vpop.f32.mrb[0].mxu0
        %5465 = vmatprep.mubr.f32.mxu0 %v5261
        %5466 = vmatmul.mubr.f32.gmra.mrb[0].mxu0 %v5260
        %v5467 = vpop.f32.mrb[0].mxu0
        %v5468 = vadd.f32 %v4803, %v5467
        %v5469 = vpop.f32.mrb[0].mxu0
        %5470 = vmatprep.mubr.f32.mxu0 %v5265
        %5471 = vmatmul.mubr.f32.gmra.mrb[0].mxu0 %v5264
        %v5472 = vpop.f32.mrb[0].mxu0
        %v5473 = vadd.f32 %v4804, %v5472
        %v5474 = vpop.f32.mrb[0].mxu0
        %5475 = vmatprep.mubr.f32.mxu0 %v5269
        %5476 = vmatmul.mubr.f32.gmra.mrb[0].mxu0 %v5268
        %v5477 = vpop.f32.mrb[0].mxu0
        %v5478 = vadd.f32 %v4805, %v5477
        %v5479 = vpop.f32.mrb[0].mxu0
        %5480 = vdwg.mxu0
        %5481 = vmatprep.subr.mxu0 0.0
        %5482 = vmatpush1.msra.mxu0 %v5304
        %5483 = vmatprep.subr.mxu0 0.0
        %5484 = vmatpush1.msra.mxu0 %v5305
        %5485 = vmatprep.subr.mxu0 0.0
        %5486 = vmatpush1.msra.mxu0 %v5306
        %5487 = vmatprep.subr.mxu0 0.0
        %5488 = vmatpush1.msra.mxu0 %v5307
        %5489 = vmatprep.subr.mxu0 0.0
        %5490 = vmatpush1.msra.mxu0 %v5308
        %5491 = vmatprep.subr.mxu0 0.0
        %5492 = vmatpush1.msra.mxu0 %v5309
        %5493 = vmatprep.subr.mxu0 0.0
        %5494 = vmatpush1.msra.mxu0 %v5310
        %5495 = vmatprep.subr.mxu0 0.0
        %5496 = vmatpush1.msra.mxu0 %v5311
        %5497 = vmatprep.subr.mxu0 0.0
        %5498 = vmatpush1.msra.mxu0 %v5312
        %5499 = vmatprep.subr.mxu0 0.0
        %5500 = vmatpush1.msra.mxu0 %v5313
        %5501 = vmatprep.subr.mxu0 0.0
        %5502 = vmatpush1.msra.mxu0 %v5314
        %5503 = vmatprep.subr.mxu0 0.0
        %5504 = vmatpush1.msra.mxu0 %v5315
        %5505 = vmatprep.subr.mxu0 0.0
        %5506 = vmatpush1.msra.mxu0 %v5316
        %5507 = vmatprep.subr.mxu0 0.0
        %5508 = vmatpush1.msra.mxu0 %v5317
        %5509 = vmatprep.subr.mxu0 0.0
        %5510 = vmatpush1.msra.mxu0 %v5318
        %5511 = vmatprep.subr.mxu0 0.0
        %5512 = vmatpush1.msra.mxu0 %v5319
        %5513 = vmatprep.subr.mxu0 0.0
        %5514 = vmatpush1.msra.mxu0 %v5320
        %5515 = vmatprep.subr.mxu0 0.0
        %5516 = vmatpush1.msra.mxu0 %v5321
        %5517 = vmatprep.subr.mxu0 0.0
        %5518 = vmatpush1.msra.mxu0 %v5322
        %5519 = vmatprep.subr.mxu0 0.0
        %5520 = vmatpush1.msra.mxu0 %v5323
        %5521 = vmatprep.subr.mxu0 0.0
        %5522 = vmatpush1.msra.mxu0 %v5324
        %5523 = vmatprep.subr.mxu0 0.0
        %5524 = vmatpush1.msra.mxu0 %v5325
        %5525 = vmatprep.subr.mxu0 0.0
        %5526 = vmatpush1.msra.mxu0 %v5326
        %5527 = vmatprep.subr.mxu0 0.0
        %5528 = vmatpush1.msra.mxu0 %v5327
        %5529 = vmatprep.subr.mxu0 0.0
        %5530 = vmatpush1.msra.mxu0 %v5328
        %5531 = vmatprep.subr.mxu0 0.0
        %5532 = vmatpush1.msra.mxu0 %v5329
        %5533 = vmatprep.subr.mxu0 0.0
        %5534 = vmatpush1.msra.mxu0 %v5330
        %5535 = vmatprep.subr.mxu0 0.0
        %5536 = vmatpush1.msra.mxu0 %v5331
        %5537 = vmatprep.subr.mxu0 0.0
        %5538 = vmatpush1.msra.mxu0 %v5332
        %5539 = vmatprep.subr.mxu0 0.0
        %5540 = vmatpush1.msra.mxu0 %v5333
        %5541 = vmatprep.subr.mxu0 0.0
        %5542 = vmatpush1.msra.mxu0 %v5334
        %5543 = vmatprep.subr.mxu0 0.0
        %5544 = vmatpush1.msra.mxu0 %v5335
        %5545 = vmatprep.mubr.f32.mxu0 %v5211
        %5546 = vmatmul.mubr.f32.gmra.mrb[0].mxu0 %v5210
        %v5547 = vpop.f32.mrb[0].mxu0
        %v5548 = vadd.f32 %v5403, %v5547
        %v5549 = vpop.f32.mrb[0].mxu0
        %5550 = vmatprep.mubr.f32.mxu0 %v5215
        %5551 = vmatmul.mubr.f32.gmra.mrb[0].mxu0 %v5214
        %v5552 = vpop.f32.mrb[0].mxu0
        %v5553 = vadd.f32 %v5408, %v5552
        %v5554 = vpop.f32.mrb[0].mxu0
        %5555 = vmatprep.mubr.f32.mxu0 %v5219
        %5556 = vmatmul.mubr.f32.gmra.mrb[0].mxu0 %v5218
        %v5557 = vpop.f32.mrb[0].mxu0
        %v5558 = vadd.f32 %v5413, %v5557
        %v5559 = vpop.f32.mrb[0].mxu0
        %5560 = vmatprep.mubr.f32.mxu0 %v5223
        %5561 = vmatmul.mubr.f32.gmra.mrb[0].mxu0 %v5222
        %v5562 = vpop.f32.mrb[0].mxu0
        %v5563 = vadd.f32 %v5418, %v5562
        %v5564 = vpop.f32.mrb[0].mxu0
        %5565 = vmatprep.mubr.f32.mxu0 %v5227
        %5566 = vmatmul.mubr.f32.gmra.mrb[0].mxu0 %v5226
        %v5567 = vpop.f32.mrb[0].mxu0
        %v5568 = vadd.f32 %v5423, %v5567
        %v5569 = vpop.f32.mrb[0].mxu0
        %5570 = vmatprep.mubr.f32.mxu0 %v5231
        %5571 = vmatmul.mubr.f32.gmra.mrb[0].mxu0 %v5230
        %v5572 = vpop.f32.mrb[0].mxu0
        %v5573 = vadd.f32 %v5428, %v5572
        %v5574 = vpop.f32.mrb[0].mxu0
        %5575 = vmatprep.mubr.f32.mxu0 %v5235
        %5576 = vmatmul.mubr.f32.gmra.mrb[0].mxu0 %v5234
        %v5577 = vpop.f32.mrb[0].mxu0
        %v5578 = vadd.f32 %v5433, %v5577
        %v5579 = vpop.f32.mrb[0].mxu0
        %5580 = vmatprep.mubr.f32.mxu0 %v5239
        %5581 = vmatmul.mubr.f32.gmra.mrb[0].mxu0 %v5238
        %v5582 = vpop.f32.mrb[0].mxu0
        %v5583 = vadd.f32 %v5438, %v5582
        %v5584 = vpop.f32.mrb[0].mxu0
        %5585 = vmatprep.mubr.f32.mxu0 %v5243
        %5586 = vmatmul.mubr.f32.gmra.mrb[0].mxu0 %v5242
        %v5587 = vpop.f32.mrb[0].mxu0
        %v5588 = vadd.f32 %v5443, %v5587
        %v5589 = vpop.f32.mrb[0].mxu0
        %5590 = vmatprep.mubr.f32.mxu0 %v5247
        %5591 = vmatmul.mubr.f32.gmra.mrb[0].mxu0 %v5246
        %v5592 = vpop.f32.mrb[0].mxu0
        %v5593 = vadd.f32 %v5448, %v5592
        %v5594 = vpop.f32.mrb[0].mxu0
        %5595 = vmatprep.mubr.f32.mxu0 %v5251
        %5596 = vmatmul.mubr.f32.gmra.mrb[0].mxu0 %v5250
        %v5597 = vpop.f32.mrb[0].mxu0
        %v5598 = vadd.f32 %v5453, %v5597
        %v5599 = vpop.f32.mrb[0].mxu0
        %5600 = vmatprep.mubr.f32.mxu0 %v5255
        %5601 = vmatmul.mubr.f32.gmra.mrb[0].mxu0 %v5254
        %v5602 = vpop.f32.mrb[0].mxu0
        %v5603 = vadd.f32 %v5458, %v5602
        %v5604 = vpop.f32.mrb[0].mxu0
        %5605 = vmatprep.mubr.f32.mxu0 %v5259
        %5606 = vmatmul.mubr.f32.gmra.mrb[0].mxu0 %v5258
        %v5607 = vpop.f32.mrb[0].mxu0
        %v5608 = vadd.f32 %v5463, %v5607
        %v5609 = vpop.f32.mrb[0].mxu0
        %5610 = vmatprep.mubr.f32.mxu0 %v5263
        %5611 = vmatmul.mubr.f32.gmra.mrb[0].mxu0 %v5262
        %v5612 = vpop.f32.mrb[0].mxu0
        %v5613 = vadd.f32 %v5468, %v5612
        %v5614 = vpop.f32.mrb[0].mxu0
        %5615 = vmatprep.mubr.f32.mxu0 %v5267
        %5616 = vmatmul.mubr.f32.gmra.mrb[0].mxu0 %v5266
        %v5617 = vpop.f32.mrb[0].mxu0
        %v5618 = vadd.f32 %v5473, %v5617
        %v5619 = vpop.f32.mrb[0].mxu0
        %5620 = vmatprep.mubr.f32.mxu0 %v5271
        %5621 = vmatmul.mubr.f32.gmra.mrb[0].mxu0 %v5270
        %v5622 = vpop.f32.mrb[0].mxu0
        %v5623 = vadd.f32 %v5478, %v5622
        %v5624 = vpop.f32.mrb[0].mxu0
        %5625 = vdwg.mxu0
        %v5626 = vsel %vm622, %v5548, 0.0
        %5627 = vadd.xlane.f32.xlu0 %v5626
        %v5628 = vpop.xlane.xlu0 %5627
        %v5629 = vsel %vm622, %v5553, 0.0
        %5630 = vadd.xlane.f32.xlu0 %v5629
        %v5631 = vpop.xlane.xlu0 %5630
        %v5632 = vsel %vm622, %v5558, 0.0
        %5633 = vadd.xlane.f32.xlu0 %v5632
        %v5634 = vpop.xlane.xlu0 %5633
        %v5635 = vsel %vm622, %v5563, 0.0
        %5636 = vadd.xlane.f32.xlu0 %v5635
        %v5637 = vpop.xlane.xlu0 %5636
        %v5638 = vsel %vm622, %v5568, 0.0
        %5639 = vadd.xlane.f32.xlu0 %v5638
        %v5640 = vpop.xlane.xlu0 %5639
        %v5641 = vsel %vm622, %v5573, 0.0
        %5642 = vadd.xlane.f32.xlu0 %v5641
        %v5643 = vpop.xlane.xlu0 %5642
        %v5644 = vsel %vm622, %v5578, 0.0
        %5645 = vadd.xlane.f32.xlu0 %v5644
        %v5646 = vpop.xlane.xlu0 %5645
        %v5647 = vsel %vm622, %v5583, 0.0
        %5648 = vadd.xlane.f32.xlu0 %v5647
        %v5649 = vpop.xlane.xlu0 %5648
        %v5650 = vsel %vm622, %v5588, 0.0
        %5651 = vadd.xlane.f32.xlu0 %v5650
        %v5652 = vpop.xlane.xlu0 %5651
        %v5653 = vsel %vm622, %v5593, 0.0
        %5654 = vadd.xlane.f32.xlu0 %v5653
        %v5655 = vpop.xlane.xlu0 %5654
        %v5656 = vsel %vm622, %v5598, 0.0
        %5657 = vadd.xlane.f32.xlu0 %v5656
        %v5658 = vpop.xlane.xlu0 %5657
        %v5659 = vsel %vm622, %v5603, 0.0
        %5660 = vadd.xlane.f32.xlu0 %v5659
        %v5661 = vpop.xlane.xlu0 %5660
        %v5662 = vsel %vm622, %v5608, 0.0
        %5663 = vadd.xlane.f32.xlu0 %v5662
        %v5664 = vpop.xlane.xlu0 %5663
        %v5665 = vsel %vm622, %v5613, 0.0
        %5666 = vadd.xlane.f32.xlu0 %v5665
        %v5667 = vpop.xlane.xlu0 %5666
        %v5668 = vsel %vm622, %v5618, 0.0
        %5669 = vadd.xlane.f32.xlu0 %v5668
        %v5670 = vpop.xlane.xlu0 %5669
        %v5671 = vsel %vm622, %v5623, 0.0
        %5672 = vadd.xlane.f32.xlu0 %v5671
        %v5673 = vpop.xlane.xlu0 %5672
        %v5674 = vmul.f32 %v5628, %v4645
        %v5675 = vmul.f32 %v5631, %v4645
        %v5676 = vmul.f32 %v5634, %v4645
        %v5677 = vmul.f32 %v5637, %v4645
        %v5678 = vmul.f32 %v5640, %v4645
        %v5679 = vmul.f32 %v5643, %v4645
        %v5680 = vmul.f32 %v5646, %v4645
        %v5681 = vmul.f32 %v5649, %v4645
        %v5682 = vmul.f32 %v5652, %v4645
        %v5683 = vmul.f32 %v5655, %v4645
        %v5684 = vmul.f32 %v5658, %v4645
        %v5685 = vmul.f32 %v5661, %v4645
        %v5686 = vmul.f32 %v5664, %v4645
        %v5687 = vmul.f32 %v5667, %v4645
        %v5688 = vmul.f32 %v5670, %v4645
        %v5689 = vmul.f32 %v5673, %v4645
        %v5690 = vsub.f32 %v5548, %v5674
        %v5691 = vsub.f32 %v5553, %v5675
        %v5692 = vsub.f32 %v5558, %v5676
        %v5693 = vsub.f32 %v5563, %v5677
        %v5694 = vsub.f32 %v5568, %v5678
        %v5695 = vsub.f32 %v5573, %v5679
        %v5696 = vsub.f32 %v5578, %v5680
        %v5697 = vsub.f32 %v5583, %v5681
        %v5698 = vsub.f32 %v5588, %v5682
        %v5699 = vsub.f32 %v5593, %v5683
        %v5700 = vsub.f32 %v5598, %v5684
        %v5701 = vsub.f32 %v5603, %v5685
        %v5702 = vsub.f32 %v5608, %v5686
        %v5703 = vsub.f32 %v5613, %v5687
        %v5704 = vsub.f32 %v5618, %v5688
        %v5705 = vsub.f32 %v5623, %v5689
        %v5706 = vmul.f32 %v5690, %v5690
        %v5707 = vmul.f32 %v5691, %v5691
        %v5708 = vmul.f32 %v5692, %v5692
        %v5709 = vmul.f32 %v5693, %v5693
        %v5710 = vmul.f32 %v5694, %v5694
        %v5711 = vmul.f32 %v5695, %v5695
        %v5712 = vmul.f32 %v5696, %v5696
        %v5713 = vmul.f32 %v5697, %v5697
        %v5714 = vmul.f32 %v5698, %v5698
        %v5715 = vmul.f32 %v5699, %v5699
        %v5716 = vmul.f32 %v5700, %v5700
        %v5717 = vmul.f32 %v5701, %v5701
        %v5718 = vmul.f32 %v5702, %v5702
        %v5719 = vmul.f32 %v5703, %v5703
        %v5720 = vmul.f32 %v5704, %v5704
        %v5721 = vmul.f32 %v5705, %v5705
        %v5722 = vsel %vm622, %v5706, 0.0
        %5723 = vadd.xlane.f32.xlu0 %v5722
        %v5724 = vpop.xlane.xlu0 %5723
        %v5725 = vsel %vm622, %v5707, 0.0
        %5726 = vadd.xlane.f32.xlu0 %v5725
        %v5727 = vpop.xlane.xlu0 %5726
        %v5728 = vsel %vm622, %v5708, 0.0
        %5729 = vadd.xlane.f32.xlu0 %v5728
        %v5730 = vpop.xlane.xlu0 %5729
        %v5731 = vsel %vm622, %v5709, 0.0
        %5732 = vadd.xlane.f32.xlu0 %v5731
        %v5733 = vpop.xlane.xlu0 %5732
        %v5734 = vsel %vm622, %v5710, 0.0
        %5735 = vadd.xlane.f32.xlu0 %v5734
        %v5736 = vpop.xlane.xlu0 %5735
        %v5737 = vsel %vm622, %v5711, 0.0
        %5738 = vadd.xlane.f32.xlu0 %v5737
        %v5739 = vpop.xlane.xlu0 %5738
        %v5740 = vsel %vm622, %v5712, 0.0
        %5741 = vadd.xlane.f32.xlu0 %v5740
        %v5742 = vpop.xlane.xlu0 %5741
        %v5743 = vsel %vm622, %v5713, 0.0
        %5744 = vadd.xlane.f32.xlu0 %v5743
        %v5745 = vpop.xlane.xlu0 %5744
        %v5746 = vsel %vm622, %v5714, 0.0
        %5747 = vadd.xlane.f32.xlu0 %v5746
        %v5748 = vpop.xlane.xlu0 %5747
        %v5749 = vsel %vm622, %v5715, 0.0
        %5750 = vadd.xlane.f32.xlu0 %v5749
        %v5751 = vpop.xlane.xlu0 %5750
        %v5752 = vsel %vm622, %v5716, 0.0
        %5753 = vadd.xlane.f32.xlu0 %v5752
        %v5754 = vpop.xlane.xlu0 %5753
        %v5755 = vsel %vm622, %v5717, 0.0
        %5756 = vadd.xlane.f32.xlu0 %v5755
        %v5757 = vpop.xlane.xlu0 %5756
        %v5758 = vsel %vm622, %v5718, 0.0
        %5759 = vadd.xlane.f32.xlu0 %v5758
        %v5760 = vpop.xlane.xlu0 %5759
        %v5761 = vsel %vm622, %v5719, 0.0
        %5762 = vadd.xlane.f32.xlu0 %v5761
        %v5763 = vpop.xlane.xlu0 %5762
        %v5764 = vsel %vm622, %v5720, 0.0
        %5765 = vadd.xlane.f32.xlu0 %v5764
        %v5766 = vpop.xlane.xlu0 %5765
        %v5767 = vsel %vm622, %v5721, 0.0
        %5768 = vadd.xlane.f32.xlu0 %v5767
        %v5769 = vpop.xlane.xlu0 %5768
        %v5770 = vmul.f32 %v5724, %v4645
        %v5771 = vmul.f32 %v5727, %v4645
        %v5772 = vmul.f32 %v5730, %v4645
        %v5773 = vmul.f32 %v5733, %v4645
        %v5774 = vmul.f32 %v5736, %v4645
        %v5775 = vmul.f32 %v5739, %v4645
        %v5776 = vmul.f32 %v5742, %v4645
        %v5777 = vmul.f32 %v5745, %v4645
        %v5778 = vmul.f32 %v5748, %v4645
        %v5779 = vmul.f32 %v5751, %v4645
        %v5780 = vmul.f32 %v5754, %v4645
        %v5781 = vmul.f32 %v5757, %v4645
        %v5782 = vmul.f32 %v5760, %v4645
        %v5783 = vmul.f32 %v5763, %v4645
        %v5784 = vmul.f32 %v5766, %v4645
        %v5785 = vmul.f32 %v5769, %v4645
        %v5786 = vadd.f32 %v5770, 1e-05
        %v5787 = vadd.f32 %v5771, 1e-05
        %v5788 = vadd.f32 %v5772, 1e-05
        %v5789 = vadd.f32 %v5773, 1e-05
        %v5790 = vadd.f32 %v5774, 1e-05
        %v5791 = vadd.f32 %v5775, 1e-05
        %v5792 = vadd.f32 %v5776, 1e-05
        %v5793 = vadd.f32 %v5777, 1e-05
        %v5794 = vadd.f32 %v5778, 1e-05
        %v5795 = vadd.f32 %v5779, 1e-05
        %v5796 = vadd.f32 %v5780, 1e-05
        %v5797 = vadd.f32 %v5781, 1e-05
        %v5798 = vadd.f32 %v5782, 1e-05
        %v5799 = vadd.f32 %v5783, 1e-05
        %v5800 = vadd.f32 %v5784, 1e-05
        %v5801 = vadd.f32 %v5785, 1e-05
        %v5802 = vrsqrt.pop %v5786
        %v5803 = vrsqrt.pop %v5787
        %v5804 = vrsqrt.pop %v5788
        %v5805 = vrsqrt.pop %v5789
        %v5806 = vrsqrt.pop %v5790
        %v5807 = vrsqrt.pop %v5791
        %v5808 = vrsqrt.pop %v5792
        %v5809 = vrsqrt.pop %v5793
        %v5810 = vrsqrt.pop %v5794
        %v5811 = vrsqrt.pop %v5795
        %v5812 = vrsqrt.pop %v5796
        %v5813 = vrsqrt.pop %v5797
        %v5814 = vrsqrt.pop %v5798
        %v5815 = vrsqrt.pop %v5799
        %v5816 = vrsqrt.pop %v5800
        %v5817 = vrsqrt.pop %v5801
        %v5818 = vmul.f32 %v5690, %v5802
        %v5819 = vmul.f32 %v5691, %v5803
        %v5820 = vmul.f32 %v5692, %v5804
        %v5821 = vmul.f32 %v5693, %v5805
        %v5822 = vmul.f32 %v5694, %v5806
        %v5823 = vmul.f32 %v5695, %v5807
        %v5824 = vmul.f32 %v5696, %v5808
        %v5825 = vmul.f32 %v5697, %v5809
        %v5826 = vmul.f32 %v5698, %v5810
        %v5827 = vmul.f32 %v5699, %v5811
        %v5828 = vmul.f32 %v5700, %v5812
        %v5829 = vmul.f32 %v5701, %v5813
        %v5830 = vmul.f32 %v5702, %v5814
        %v5831 = vmul.f32 %v5703, %v5815
        %v5832 = vmul.f32 %v5704, %v5816
        %v5833 = vmul.f32 %v5705, %v5817
        %5834 = vst.msk [vmem:[%s372] sm:$0xff] %vm622, %v5818
        %5835 = vst.msk [vmem:[%s372 + $0x8] sm:$0xff] %vm622, %v5819
        %5836 = vst.msk [vmem:[%s372 + $0x10] sm:$0xff] %vm622, %v5820
        %5837 = vst.msk [vmem:[%s372 + $0x18] sm:$0xff] %vm622, %v5821
        %5838 = vst.msk [vmem:[%s372 + $0x20] sm:$0xff] %vm622, %v5822
        %5839 = vst.msk [vmem:[%s372 + $0x28] sm:$0xff] %vm622, %v5823
        %5840 = vst.msk [vmem:[%s372 + $0x30] sm:$0xff] %vm622, %v5824
        %5841 = vst.msk [vmem:[%s372 + $0x38] sm:$0xff] %vm622, %v5825
        %5842 = vst.msk [vmem:[%s372 + $0x40] sm:$0xff] %vm622, %v5826
        %5843 = vst.msk [vmem:[%s372 + $0x48] sm:$0xff] %vm622, %v5827
        %5844 = vst.msk [vmem:[%s372 + $0x50] sm:$0xff] %vm622, %v5828
        %5845 = vst.msk [vmem:[%s372 + $0x58] sm:$0xff] %vm622, %v5829
        %5846 = vst.msk [vmem:[%s372 + $0x60] sm:$0xff] %vm622, %v5830
        %5847 = vst.msk [vmem:[%s372 + $0x68] sm:$0xff] %vm622, %v5831
        %5848 = vst.msk [vmem:[%s372 + $0x70] sm:$0xff] %vm622, %v5832
        %5849 = vst.msk [vmem:[%s372 + $0x78] sm:$0xff] %vm622, %v5833
        %s5850 = smul.u32 16, %s25
        %p5851 = scmp.lt.s32.totalorder %s5850, 31
        %s5852 = scalar_select %p5851, %s5850, 31
        %s5853 = smul.addr %s5852, 8
        %s5854 = scalar_lea.vmem %s9, %s5853
        %s5855 = sand.u32 %s253, 1
        %s5856 = scalar_lea.sflag [#allocation3], %s5855
        %s5857 = sand.u32 %s253, 1
        %s5858 = smul.addr %s5857, 256
        %s5859 = scalar_lea.vmem [#allocation2], %s5858
        // Predicated region
        $region57: #{tpu_custom_call.1} parent=55 // pred_check
          %p5860 = pneg %p237
        $region58: #{tpu_custom_call.1} parent=55 // pred_check_branch
          %5862 = sbr.rel (%p5860) target = $region60
        $region59: #{tpu_custom_call.1} parent=55 // pred_region
          %s5863 = smul.u32 16, %s25
        $region60: #{tpu_custom_call.1} parent=55 // pred_fallthru
          _
        // Predicated region
        $region61: #{tpu_custom_call.1} parent=55 // pred_check
          %p5864 = pneg %p263
        $region62: #{tpu_custom_call.1} parent=55 // pred_check_branch
          %5866 = sbr.rel (%p5864) target = $region64
        $region63: #{tpu_custom_call.1} parent=55 // pred_region
          #allocation5 [shape = 'u32[6]{0}', space=smem, size = 0x18, scoped, tag = 'DMA stride descriptor']
          %s5867 = smul.u32 8, %s25
          %s5869 = ssub.s32 4096, 4096
          %5870 = vsyncadd %s5856, %s5869
          %s5871 = smul.addr %s5867, 2
          %s5872 = smul.addr %s5871, 128
          %s5873 = scalar_lea.hbm %s10, %s5872
          %s5875 = sshll.u32 1, 14
          %s5876 = sxor.u32 4294967295, %s5875
          %s5879 = sshll.u32 7, 18
          %s5880 = sxor.u32 4294967295, %s5879
          %s5881 = sand.u32 0, %s5880
          %s5883 = sor.u32 %s5881, 0
          %s5885 = sshll.u32 3, 24
          %s5886 = sxor.u32 4294967295, %s5885
          %s5887 = sand.u32 %s5883, %s5886
          %s5889 = sor.u32 %s5887, 0
          %s5890 = sshll.u32 %s5859, 4
          %s5891 = int_to_ptr.vmem [resolvable:$true] %s5890
          %5897 = sst [smem:[#allocation5]] 2048
          %s5898 = scalar_lea.smem [#allocation5], 1
          %5899 = sst [smem:[%s5898]] 4096
          %s5900 = scalar_lea.smem [#allocation5], 2
          %5901 = sst [smem:[%s5900]] 16
          %s5902 = scalar_lea.smem [#allocation5], 3
          %5903 = sst [smem:[%s5902]] 128
          %s5904 = scalar_lea.smem [#allocation5], 4
          %5905 = sst [smem:[%s5904]] 128
          %s5906 = scalar_lea.smem [#allocation5], 5
          %5907 = sst [smem:[%s5906]] 8
          %5909 = dma.general %s5891, 4096, %s5873, %s5856, [#allocation4], [#allocation5], %s5889, 0
        $region64: #{tpu_custom_call.1} parent=55 // pred_fallthru
          _
      $region56: #{tpu_custom_call.1} parent=5 // pred_fallthru
        _
      %p5910 = scmp.le.s32.totalorder 2, %s20
      // Predicated region
      $region65: #{tpu_custom_call.1} parent=5 // pred_check
        %p5911 = pneg %p5910
      $region66: #{tpu_custom_call.1} parent=5 // pred_check_branch
        %5913 = sbr.rel (%p5911) target = $region68
      $region67: #{tpu_custom_call.1} parent=5 // pred_region
        %s5914 = ssub.s32 %s20, 2
        // Predicated region
        $region69: #{tpu_custom_call.1} parent=67 // pred_check
          %p5915 = pneg %p243
        $region70: #{tpu_custom_call.1} parent=67 // pred_check_branch
          %5917 = sbr.rel (%p5915) target = $region72
        $region71: #{tpu_custom_call.1} parent=67 // pred_region
          %s5918 = smul.u32 16, %s26
          %p5919 = scmp.lt.s32.totalorder %s5918, 31
          %s5920 = scalar_select %p5919, %s5918, 31
          %s5921 = smul.addr %s5920, 8
          %s5922 = scalar_lea.vmem %s9, %s5921
        $region72: #{tpu_custom_call.1} parent=67 // pred_fallthru
          _
        // Predicated region
        $region73: #{tpu_custom_call.1} parent=67 // pred_check
          %p5923 = pneg %p269
        $region74: #{tpu_custom_call.1} parent=67 // pred_check_branch
          %5925 = sbr.rel (%p5923) target = $region76
        $region75: #{tpu_custom_call.1} parent=67 // pred_region
          %s5926 = sand.u32 %s254, 1
          %s5927 = scalar_lea.sflag [#allocation3], %s5926
          %s5928 = sand.u32 %s254, 1
          %s5929 = smul.addr %s5928, 256
          %s5930 = scalar_lea.vmem [#allocation2], %s5929
          %5931 = dma.done %s5927, 4096
        $region76: #{tpu_custom_call.1} parent=67 // pred_fallthru
          _
      $region68: #{tpu_custom_call.1} parent=5 // pred_fallthru
        _
    $region6: #{tpu_custom_call.1} parent=1 // loop_footer
      %s24 = sadd.s32 1, %s20
    $region7: #{tpu_custom_call.1} parent=1 // loop_footer_branch
      %19 = sbr.rel target = $region3
    $region8: #{tpu_custom_call.1} parent=1 // loop_exit
      _
    %5932 = vsyncpa [#allocation3], 1
    %s5933 = scalar_lea.sflag [#allocation3], 1
    %5934 = vsyncpa %s5933, 1

</llo_original>
